<compile_context>
chip_gen: v7x
topology: tpu7x:2x2x1
jax: 0.10.0
libtpu: 0.0.40
codegen_flags: <defaults>
</compile_context>

<pallas_src>
import functools

import jax
import jax.numpy as jnp
from jax.experimental import pallas as pl
from jax.experimental.pallas import tpu as pltpu  # noqa: F401  (TPU backend namespace)


def _round_up(n, m):
    return ((n + m - 1) // m) * m


# ------------------------------ Fused model kernel ------------------------------
def _make_fused_kernel(num_layers, T, Bp, Hp, tail_start):
    """Gate order in the prepared weights is [i, f, o, g], each block Hp lanes."""
    G3 = 3 * Hp  # sigmoid block [i, f, o]; tanh block is [3Hp:4Hp] (g)

    def kernel(*refs):
        x_ref = refs[0]                          # (T*Bp, Dp) f32, time-major
        lyr = refs[1:1 + 3 * num_layers]         # per layer: w_ih, w_hh, bias
        fcw_ref = refs[1 + 3 * num_layers]       # (Hp, Op) bf16
        fcb_ref = refs[2 + 3 * num_layers]       # (1, Op) f32
        o_ref = refs[3 + 3 * num_layers]         # (T_out*Bp, Op) f32

        def mxu(a_f32, w_ref):
            # bf16 operands, f32 accumulation: MXU-native, deterministic.
            return jnp.dot(a_f32.astype(jnp.bfloat16), w_ref[...],
                           preferred_element_type=jnp.float32)

        # Layer-0 input projection for ALL timesteps in one MXU pass.  The input
        # is external, so this does NOT serialize the layer recurrences.
        xproj0 = mxu(x_ref[...], lyr[0]) + lyr[2][...]        # (T*Bp, 4Hp) f32

        h = [jnp.zeros((Bp, Hp), jnp.float32) for _ in range(num_layers)]
        c = [jnp.zeros((Bp, Hp), jnp.float32) for _ in range(num_layers)]

        for t in range(T):                       # fully unrolled (T is tiny)
            for l in range(num_layers):          # interleaved: layer l step t
                                                 # starts right after layer l-1
                if l == 0:
                    gates = xproj0[t * Bp:(t + 1) * Bp, :] + mxu(h[0], lyr[1])
                else:
                    w_ih, w_hh, b = lyr[3 * l], lyr[3 * l + 1], lyr[3 * l + 2]
                    gates = b[...] + mxu(h[l - 1], w_ih) + mxu(h[l], w_hh)
                # Every slice below is a 128-lane-aligned whole-vreg selection.
                ifo = jax.nn.sigmoid(gates[:, :G3])
                g_g = jnp.tanh(gates[:, G3:])
                i_g = ifo[:, 0:Hp]
                f_g = ifo[:, Hp:2 * Hp]
                o_g = ifo[:, 2 * Hp:3 * Hp]
                c[l] = f_g * c[l] + i_g * g_g
                h[l] = o_g * jnp.tanh(c[l])
            # Tail ReLU + FC head, per step, stored straight into the output.
            if t >= tail_start:
                y = mxu(jnp.maximum(h[-1], 0.0), fcw_ref) + fcb_ref[...]
                r = (t - tail_start) * Bp
                o_ref[r:r + Bp, :] = y.astype(o_ref.dtype)

    return kernel


# --------------------------------- Full model ----------------------------------
@functools.partial(jax.jit,
                   static_argnames=("input_sequence_length", "output_sequence_length"))
def lstm_forward(x_btd, prepared, *, input_sequence_length, output_sequence_length):
    """Mirrors LSTM.forward: multilayer LSTM -> tail ReLU -> Linear.

    x_btd: (B, T, input_size) float32, batch_first (PyTorch layout).
    prepared: output of prepare_params() (padded / reordered / bf16 weights).
    Returns (B, output_sequence_length, output_size) float32.
    """
    x = jnp.asarray(x_btd, jnp.float32)
    B, T, D = x.shape
    num_layers = len(prepared["lstm"])
    Dp = prepared["lstm"][0]["w_ih"].shape[0]
    Hp = prepared["lstm"][0]["w_hh"].shape[0]
    Op = prepared["fc_w"].shape[1]
    O = prepared["fc_b"].shape[1]
    Bp = _round_up(B, 8)                         # f32 sublane tile
    tail_start = input_sequence_length - output_sequence_length
    T_out = T - tail_start

    # Layout plumbing stays outside the kernel: time-major, batch padded to the
    # sublane tile, input feature dim padded to the lane tile.
    x_tb = jnp.transpose(x, (1, 0, 2))
    x_tb = jnp.pad(x_tb, ((0, 0), (0, Bp - B), (0, Dp - D)))
    x2 = x_tb.reshape(T * Bp, Dp)

    fcb_pad = jnp.pad(prepared["fc_b"], ((0, 0), (0, Op - O)))

    inputs = [x2]
    for lp in prepared["lstm"]:
        inputs += [lp["w_ih"], lp["w_hh"], lp["bias"]]
    inputs += [prepared["fc_w"], fcb_pad]

    in_specs = [pl.BlockSpec(a.shape, lambda: (0, 0)) for a in inputs]

    kernel = _make_fused_kernel(num_layers, T, Bp, Hp, tail_start)
    y = pl.pallas_call(
        kernel,
        out_shape=jax.ShapeDtypeStruct((T_out * Bp, Op), jnp.float32),
        in_specs=in_specs,
        out_specs=pl.BlockSpec((T_out * Bp, Op), lambda: (0, 0)),
    )(*inputs)

    # Rows are time-major (t, b); only the tiny output is reordered/sliced here.
    return y.reshape(T_out, Bp, Op)[:, :B, :O].transpose(1, 0, 2)


# ------------------------- Param prep (hoisted, one-time) -----------------------
def prepare_params(params):
    """Transpose, reorder gates to [i,f,o,g], pad H->Hp / D->Dp, cast to bf16."""
    H = params["lstm"][0]["w_hh"].shape[1]
    D = params["lstm"][0]["w_ih"].shape[1]
    Hp = _round_up(H, 128)
    Dp = _round_up(D, 128)
    O = params["fc1_w"].shape[0]
    Op = _round_up(O, 128)

    def gate_cols(w_t):
        # (rows, 4H) -> (rows, 4Hp); PyTorch order [i,f,g,o] -> [i,f,o,g];
        # each gate block zero-padded from H to Hp (padding is exactly neutral:
        # padded gates stay at sigmoid(0)/tanh(0) so padded h/c stay 0).
        blocks = [w_t[:, k * H:(k + 1) * H] for k in (0, 1, 3, 2)]
        blocks = [jnp.pad(b, ((0, 0), (0, Hp - H))) for b in blocks]
        return jnp.concatenate(blocks, axis=1)

    prepared = {"lstm": []}
    for i, lp in enumerate(params["lstm"]):
        d_in = D if i == 0 else H
        d_in_p = Dp if i == 0 else Hp
        w_ih_t = gate_cols(jnp.asarray(lp["w_ih"], jnp.float32).T)   # (d_in, 4Hp)
        w_hh_t = gate_cols(jnp.asarray(lp["w_hh"], jnp.float32).T)   # (H, 4Hp)
        w_ih_t = jnp.pad(w_ih_t, ((0, d_in_p - d_in), (0, 0)))
        w_hh_t = jnp.pad(w_hh_t, ((0, Hp - H), (0, 0)))
        bias = gate_cols((jnp.asarray(lp["b_ih"], jnp.float32)
                          + jnp.asarray(lp["b_hh"], jnp.float32))[None, :])
        prepared["lstm"].append({
            "w_ih": w_ih_t.astype(jnp.bfloat16),
            "w_hh": w_hh_t.astype(jnp.bfloat16),
            "bias": bias,                                            # f32 (1, 4Hp)
        })
    fc_w_t = jnp.asarray(params["fc1_w"], jnp.float32).T             # (H, O)
    prepared["fc_w"] = jnp.pad(fc_w_t, ((0, Hp - H), (0, Op - O))).astype(jnp.bfloat16)
    prepared["fc_b"] = jnp.asarray(params["fc1_b"], jnp.float32)[None, :]   # (1, O) f32
    return prepared


# ---------------------------- Deterministic params ------------------------------
def init_params(key, input_size, hidden_size, num_layers, output_size):
    params = {"lstm": []}
    bound = 1.0 / jnp.sqrt(hidden_size)
    for l in range(num_layers):
        d_in = input_size if l == 0 else hidden_size
        key, k1, k2, k3, k4 = jax.random.split(key, 5)
        params["lstm"].append({
            "w_ih": jax.random.uniform(k1, (4 * hidden_size, d_in), jnp.float32, -bound, bound),
            "w_hh": jax.random.uniform(k2, (4 * hidden_size, hidden_size), jnp.float32, -bound, bound),
            "b_ih": jax.random.uniform(k3, (4 * hidden_size,), jnp.float32, -bound, bound),
            "b_hh": jax.random.uniform(k4, (4 * hidden_size,), jnp.float32, -bound, bound),
        })
    key, k5, k6 = jax.random.split(key, 3)
    fc_bound = 1.0 / jnp.sqrt(hidden_size)
    params["fc1_w"] = jax.random.uniform(k5, (output_size, hidden_size), jnp.float32, -fc_bound, fc_bound)
    params["fc1_b"] = jax.random.uniform(k6, (output_size,), jnp.float32, -fc_bound, fc_bound)
    return params


# ------------------------------ Pure-JAX references -----------------------------
def _reference_forward(x_btd, params, in_len, out_len, *, bf16_matmuls):
    """bf16_matmuls=True mirrors the kernel's MXU dtype (bf16 ops, f32 acc);
    bf16_matmuls=False is the full-fp32 module semantics."""
    if bf16_matmuls:
        def mm(a, b):
            return jnp.dot(a.astype(jnp.bfloat16), b.astype(jnp.bfloat16),
                           preferred_element_type=jnp.float32)
    else:
        def mm(a, b):
            return jnp.dot(a, b, precision=jax.lax.Precision.HIGHEST)

    seq = jnp.transpose(jnp.asarray(x_btd, jnp.float32), (1, 0, 2))   # (T, B, D)
    T, B, _ = seq.shape
    for lp in params["lstm"]:
        H = lp["w_hh"].shape[1]
        wih_t, whh_t = lp["w_ih"].T, lp["w_hh"].T
        bias = lp["b_ih"] + lp["b_hh"]
        h = jnp.zeros((B, H), jnp.float32)
        c = jnp.zeros((B, H), jnp.float32)
        outs = []
        for t in range(T):
            gates = mm(seq[t], wih_t) + mm(h, whh_t) + bias
            i, f, g, o = jnp.split(gates, 4, axis=-1)
            c = jax.nn.sigmoid(f) * c + jax.nn.sigmoid(i) * jnp.tanh(g)
            h = jax.nn.sigmoid(o) * jnp.tanh(c)
            outs.append(h)
        seq = jnp.stack(outs, axis=0)
    out = jnp.transpose(seq, (1, 0, 2))[:, in_len - out_len:, :]
    out = jnp.maximum(out, 0.0)
    B_, To, H_ = out.shape
    y = mm(out.reshape(B_ * To, H_), params["fc1_w"].T) + params["fc1_b"]
    return y.reshape(B_, To, -1)


if __name__ == "__main__":
    # Model hyperparameters (small, consistent with the module's forward).
    input_size = 4
    hidden_size = 32
    num_layers = 2
    output_size = 3
    input_sequence_length = 8
    output_sequence_length = 4
    batch = 2

    key = jax.random.PRNGKey(0)
    key, kx, kp = jax.random.split(key, 3)
    x = jax.random.normal(kx, (batch, input_sequence_length, input_size), jnp.float32)
    params = init_params(kp, input_size, hidden_size, num_layers, output_size)
    prepared = prepare_params(params)   # one-time transpose / reorder / pad / bf16

    out = jax.block_until_ready(
        lstm_forward(x, prepared,
                     input_sequence_length=input_sequence_length,
                     output_sequence_length=output_sequence_length))
    assert out.shape == (batch, output_sequence_length, output_size), out.shape

    # Tight structural check against a reference that uses the same MXU dtype
    # (bf16 operands, f32 accumulation) as the kernel.
    ref_bf16 = _reference_forward(x, params, input_sequence_length,
                                  output_sequence_length, bf16_matmuls=True)
    assert jnp.allclose(out, ref_bf16, atol=2e-3, rtol=2e-3), "mismatch vs bf16 reference"

    # Loose check against full-fp32 module semantics; difference is bounded by
    # the deliberate bf16 weight/activation quantization on the MXU path.
    ref_f32 = _reference_forward(x, params, input_sequence_length,
                                 output_sequence_length, bf16_matmuls=False)
    assert jnp.allclose(out, ref_f32, atol=1e-1, rtol=1e-1), "mismatch vs fp32 reference"

    # TODO(synk): the PyTorch module's train() (MSELoss + SGD loop) is host-side
    # training logic, not part of the forward pass, and is not translated.
    print("KERNEL_OK")
</pallas_src>

<mosaic_0001>
module attributes {stable_mosaic.version = 11 : i64} {
  func.func @kernel(%arg0: memref<64x128xf32, #tpu.memory_space<vmem>>, %arg1: memref<128x512xbf16, #tpu.memory_space<vmem>>, %arg2: memref<128x512xbf16, #tpu.memory_space<vmem>>, %arg3: memref<1x512xf32, #tpu.memory_space<vmem>>, %arg4: memref<128x512xbf16, #tpu.memory_space<vmem>>, %arg5: memref<128x512xbf16, #tpu.memory_space<vmem>>, %arg6: memref<1x512xf32, #tpu.memory_space<vmem>>, %arg7: memref<128x128xbf16, #tpu.memory_space<vmem>>, %arg8: memref<1x128xf32, #tpu.memory_space<vmem>>, %arg9: memref<32x128xf32, #tpu.memory_space<vmem>>) attributes {dimension_semantics = [], scalar_prefetch = 0 : i64, scratch_operands = 0 : i64, tpu.core_type = #tpu.core_type<tc>} {
    %c0 = arith.constant 0 : index
    %c0_0 = arith.constant 0 : index
    %0 = vector.load %arg0[%c0, %c0_0] : memref<64x128xf32, #tpu.memory_space<vmem>>, vector<64x128xf32>
    %1 = arith.truncf %0 : vector<64x128xf32> to vector<64x128xbf16>
    %c0_1 = arith.constant 0 : index
    %c0_2 = arith.constant 0 : index
    %2 = vector.load %arg1[%c0_1, %c0_2] : memref<128x512xbf16, #tpu.memory_space<vmem>>, vector<128x512xbf16>
    %cst = arith.constant dense<0.000000e+00> : vector<64x512xf32>
    %3 = tpu.matmul %1, %2, %cst {dimension_numbers = #tpu.dot_dimension_numbers<[1], [0], [0], [1], [0, 0, 1, 1], [], []>} : vector<64x128xbf16>, vector<128x512xbf16>, vector<64x512xf32> -> vector<64x512xf32>
    %c0_3 = arith.constant 0 : index
    %c0_4 = arith.constant 0 : index
    %4 = vector.load %arg3[%c0_3, %c0_4] : memref<1x512xf32, #tpu.memory_space<vmem>>, vector<1x512xf32>
    %5 = vector.broadcast %4 : vector<1x512xf32> to vector<64x512xf32>
    %6 = arith.addf %3, %5 : vector<64x512xf32>
    %cst_5 = arith.constant 0.000000e+00 : f32
    %7 = vector.broadcast %cst_5 : f32 to vector<8x128xf32>
    %cst_6 = arith.constant 0.000000e+00 : f32
    %8 = vector.broadcast %cst_6 : f32 to vector<8x128xf32>
    %cst_7 = arith.constant 0.000000e+00 : f32
    %9 = vector.broadcast %cst_7 : f32 to vector<8x128xf32>
    %cst_8 = arith.constant 0.000000e+00 : f32
    %10 = vector.broadcast %cst_8 : f32 to vector<8x128xf32>
    %11 = vector.extract_strided_slice %6 {offsets = [0, 0], sizes = [8, 512], strides = [1, 1]} : vector<64x512xf32> to vector<8x512xf32>
    %12 = arith.truncf %7 : vector<8x128xf32> to vector<8x128xbf16>
    %c0_9 = arith.constant 0 : index
    %c0_10 = arith.constant 0 : index
    %13 = vector.load %arg2[%c0_9, %c0_10] : memref<128x512xbf16, #tpu.memory_space<vmem>>, vector<128x512xbf16>
    %cst_11 = arith.constant dense<0.000000e+00> : vector<8x512xf32>
    %14 = tpu.matmul %12, %13, %cst_11 {dimension_numbers = #tpu.dot_dimension_numbers<[1], [0], [0], [1], [0, 0, 1, 1], [], []>} : vector<8x128xbf16>, vector<128x512xbf16>, vector<8x512xf32> -> vector<8x512xf32>
    %15 = arith.addf %11, %14 : vector<8x512xf32>
    %16 = vector.extract_strided_slice %15 {offsets = [0, 0], sizes = [8, 384], strides = [1, 1]} : vector<8x512xf32> to vector<8x384xf32>
    %17 = arith.negf %16 : vector<8x384xf32>
    %18 = math.exp %17 : vector<8x384xf32>
    %cst_12 = arith.constant 1.000000e+00 : f32
    %19 = vector.broadcast %cst_12 : f32 to vector<8x384xf32>
    %20 = arith.addf %19, %18 : vector<8x384xf32>
    %21 = arith.divf %19, %20 : vector<8x384xf32>
    %22 = vector.extract_strided_slice %15 {offsets = [0, 384], sizes = [8, 128], strides = [1, 1]} : vector<8x512xf32> to vector<8x128xf32>
    %23 = math.tanh %22 : vector<8x128xf32>
    %24 = vector.extract_strided_slice %21 {offsets = [0, 0], sizes = [8, 128], strides = [1, 1]} : vector<8x384xf32> to vector<8x128xf32>
    %25 = vector.extract_strided_slice %21 {offsets = [0, 128], sizes = [8, 128], strides = [1, 1]} : vector<8x384xf32> to vector<8x128xf32>
    %26 = vector.extract_strided_slice %21 {offsets = [0, 256], sizes = [8, 128], strides = [1, 1]} : vector<8x384xf32> to vector<8x128xf32>
    %27 = arith.mulf %25, %9 : vector<8x128xf32>
    %28 = arith.mulf %24, %23 : vector<8x128xf32>
    %29 = arith.addf %27, %28 : vector<8x128xf32>
    %30 = math.tanh %29 : vector<8x128xf32>
    %31 = arith.mulf %26, %30 : vector<8x128xf32>
    %c0_13 = arith.constant 0 : index
    %c0_14 = arith.constant 0 : index
    %32 = vector.load %arg6[%c0_13, %c0_14] : memref<1x512xf32, #tpu.memory_space<vmem>>, vector<1x512xf32>
    %33 = arith.truncf %31 : vector<8x128xf32> to vector<8x128xbf16>
    %c0_15 = arith.constant 0 : index
    %c0_16 = arith.constant 0 : index
    %34 = vector.load %arg4[%c0_15, %c0_16] : memref<128x512xbf16, #tpu.memory_space<vmem>>, vector<128x512xbf16>
    %cst_17 = arith.constant dense<0.000000e+00> : vector<8x512xf32>
    %35 = tpu.matmul %33, %34, %cst_17 {dimension_numbers = #tpu.dot_dimension_numbers<[1], [0], [0], [1], [0, 0, 1, 1], [], []>} : vector<8x128xbf16>, vector<128x512xbf16>, vector<8x512xf32> -> vector<8x512xf32>
    %36 = vector.broadcast %32 : vector<1x512xf32> to vector<8x512xf32>
    %37 = arith.addf %36, %35 : vector<8x512xf32>
    %38 = arith.truncf %8 : vector<8x128xf32> to vector<8x128xbf16>
    %c0_18 = arith.constant 0 : index
    %c0_19 = arith.constant 0 : index
    %39 = vector.load %arg5[%c0_18, %c0_19] : memref<128x512xbf16, #tpu.memory_space<vmem>>, vector<128x512xbf16>
    %cst_20 = arith.constant dense<0.000000e+00> : vector<8x512xf32>
    %40 = tpu.matmul %38, %39, %cst_20 {dimension_numbers = #tpu.dot_dimension_numbers<[1], [0], [0], [1], [0, 0, 1, 1], [], []>} : vector<8x128xbf16>, vector<128x512xbf16>, vector<8x512xf32> -> vector<8x512xf32>
    %41 = arith.addf %37, %40 : vector<8x512xf32>
    %42 = vector.extract_strided_slice %41 {offsets = [0, 0], sizes = [8, 384], strides = [1, 1]} : vector<8x512xf32> to vector<8x384xf32>
    %43 = arith.negf %42 : vector<8x384xf32>
    %44 = math.exp %43 : vector<8x384xf32>
    %cst_21 = arith.constant 1.000000e+00 : f32
    %45 = vector.broadcast %cst_21 : f32 to vector<8x384xf32>
    %46 = arith.addf %45, %44 : vector<8x384xf32>
    %47 = arith.divf %45, %46 : vector<8x384xf32>
    %48 = vector.extract_strided_slice %41 {offsets = [0, 384], sizes = [8, 128], strides = [1, 1]} : vector<8x512xf32> to vector<8x128xf32>
    %49 = math.tanh %48 : vector<8x128xf32>
    %50 = vector.extract_strided_slice %47 {offsets = [0, 0], sizes = [8, 128], strides = [1, 1]} : vector<8x384xf32> to vector<8x128xf32>
    %51 = vector.extract_strided_slice %47 {offsets = [0, 128], sizes = [8, 128], strides = [1, 1]} : vector<8x384xf32> to vector<8x128xf32>
    %52 = vector.extract_strided_slice %47 {offsets = [0, 256], sizes = [8, 128], strides = [1, 1]} : vector<8x384xf32> to vector<8x128xf32>
    %53 = arith.mulf %51, %10 : vector<8x128xf32>
    %54 = arith.mulf %50, %49 : vector<8x128xf32>
    %55 = arith.addf %53, %54 : vector<8x128xf32>
    %56 = math.tanh %55 : vector<8x128xf32>
    %57 = arith.mulf %52, %56 : vector<8x128xf32>
    %58 = vector.extract_strided_slice %6 {offsets = [8, 0], sizes = [8, 512], strides = [1, 1]} : vector<64x512xf32> to vector<8x512xf32>
    %59 = arith.truncf %31 : vector<8x128xf32> to vector<8x128xbf16>
    %c0_22 = arith.constant 0 : index
    %c0_23 = arith.constant 0 : index
    %60 = vector.load %arg2[%c0_22, %c0_23] : memref<128x512xbf16, #tpu.memory_space<vmem>>, vector<128x512xbf16>
    %cst_24 = arith.constant dense<0.000000e+00> : vector<8x512xf32>
    %61 = tpu.matmul %59, %60, %cst_24 {dimension_numbers = #tpu.dot_dimension_numbers<[1], [0], [0], [1], [0, 0, 1, 1], [], []>} : vector<8x128xbf16>, vector<128x512xbf16>, vector<8x512xf32> -> vector<8x512xf32>
    %62 = arith.addf %58, %61 : vector<8x512xf32>
    %63 = vector.extract_strided_slice %62 {offsets = [0, 0], sizes = [8, 384], strides = [1, 1]} : vector<8x512xf32> to vector<8x384xf32>
    %64 = arith.negf %63 : vector<8x384xf32>
    %65 = math.exp %64 : vector<8x384xf32>
    %cst_25 = arith.constant 1.000000e+00 : f32
    %66 = vector.broadcast %cst_25 : f32 to vector<8x384xf32>
    %67 = arith.addf %66, %65 : vector<8x384xf32>
    %68 = arith.divf %66, %67 : vector<8x384xf32>
    %69 = vector.extract_strided_slice %62 {offsets = [0, 384], sizes = [8, 128], strides = [1, 1]} : vector<8x512xf32> to vector<8x128xf32>
    %70 = math.tanh %69 : vector<8x128xf32>
    %71 = vector.extract_strided_slice %68 {offsets = [0, 0], sizes = [8, 128], strides = [1, 1]} : vector<8x384xf32> to vector<8x128xf32>
    %72 = vector.extract_strided_slice %68 {offsets = [0, 128], sizes = [8, 128], strides = [1, 1]} : vector<8x384xf32> to vector<8x128xf32>
    %73 = vector.extract_strided_slice %68 {offsets = [0, 256], sizes = [8, 128], strides = [1, 1]} : vector<8x384xf32> to vector<8x128xf32>
    %74 = arith.mulf %72, %29 : vector<8x128xf32>
    %75 = arith.mulf %71, %70 : vector<8x128xf32>
    %76 = arith.addf %74, %75 : vector<8x128xf32>
    %77 = math.tanh %76 : vector<8x128xf32>
    %78 = arith.mulf %73, %77 : vector<8x128xf32>
    %c0_26 = arith.constant 0 : index
    %c0_27 = arith.constant 0 : index
    %79 = vector.load %arg6[%c0_26, %c0_27] : memref<1x512xf32, #tpu.memory_space<vmem>>, vector<1x512xf32>
    %80 = arith.truncf %78 : vector<8x128xf32> to vector<8x128xbf16>
    %c0_28 = arith.constant 0 : index
    %c0_29 = arith.constant 0 : index
    %81 = vector.load %arg4[%c0_28, %c0_29] : memref<128x512xbf16, #tpu.memory_space<vmem>>, vector<128x512xbf16>
    %cst_30 = arith.constant dense<0.000000e+00> : vector<8x512xf32>
    %82 = tpu.matmul %80, %81, %cst_30 {dimension_numbers = #tpu.dot_dimension_numbers<[1], [0], [0], [1], [0, 0, 1, 1], [], []>} : vector<8x128xbf16>, vector<128x512xbf16>, vector<8x512xf32> -> vector<8x512xf32>
    %83 = vector.broadcast %79 : vector<1x512xf32> to vector<8x512xf32>
    %84 = arith.addf %83, %82 : vector<8x512xf32>
    %85 = arith.truncf %57 : vector<8x128xf32> to vector<8x128xbf16>
    %c0_31 = arith.constant 0 : index
    %c0_32 = arith.constant 0 : index
    %86 = vector.load %arg5[%c0_31, %c0_32] : memref<128x512xbf16, #tpu.memory_space<vmem>>, vector<128x512xbf16>
    %cst_33 = arith.constant dense<0.000000e+00> : vector<8x512xf32>
    %87 = tpu.matmul %85, %86, %cst_33 {dimension_numbers = #tpu.dot_dimension_numbers<[1], [0], [0], [1], [0, 0, 1, 1], [], []>} : vector<8x128xbf16>, vector<128x512xbf16>, vector<8x512xf32> -> vector<8x512xf32>
    %88 = arith.addf %84, %87 : vector<8x512xf32>
    %89 = vector.extract_strided_slice %88 {offsets = [0, 0], sizes = [8, 384], strides = [1, 1]} : vector<8x512xf32> to vector<8x384xf32>
    %90 = arith.negf %89 : vector<8x384xf32>
    %91 = math.exp %90 : vector<8x384xf32>
    %cst_34 = arith.constant 1.000000e+00 : f32
    %92 = vector.broadcast %cst_34 : f32 to vector<8x384xf32>
    %93 = arith.addf %92, %91 : vector<8x384xf32>
    %94 = arith.divf %92, %93 : vector<8x384xf32>
    %95 = vector.extract_strided_slice %88 {offsets = [0, 384], sizes = [8, 128], strides = [1, 1]} : vector<8x512xf32> to vector<8x128xf32>
    %96 = math.tanh %95 : vector<8x128xf32>
    %97 = vector.extract_strided_slice %94 {offsets = [0, 0], sizes = [8, 128], strides = [1, 1]} : vector<8x384xf32> to vector<8x128xf32>
    %98 = vector.extract_strided_slice %94 {offsets = [0, 128], sizes = [8, 128], strides = [1, 1]} : vector<8x384xf32> to vector<8x128xf32>
    %99 = vector.extract_strided_slice %94 {offsets = [0, 256], sizes = [8, 128], strides = [1, 1]} : vector<8x384xf32> to vector<8x128xf32>
    %100 = arith.mulf %98, %55 : vector<8x128xf32>
    %101 = arith.mulf %97, %96 : vector<8x128xf32>
    %102 = arith.addf %100, %101 : vector<8x128xf32>
    %103 = math.tanh %102 : vector<8x128xf32>
    %104 = arith.mulf %99, %103 : vector<8x128xf32>
    %105 = vector.extract_strided_slice %6 {offsets = [16, 0], sizes = [8, 512], strides = [1, 1]} : vector<64x512xf32> to vector<8x512xf32>
    %106 = arith.truncf %78 : vector<8x128xf32> to vector<8x128xbf16>
    %c0_35 = arith.constant 0 : index
    %c0_36 = arith.constant 0 : index
    %107 = vector.load %arg2[%c0_35, %c0_36] : memref<128x512xbf16, #tpu.memory_space<vmem>>, vector<128x512xbf16>
    %cst_37 = arith.constant dense<0.000000e+00> : vector<8x512xf32>
    %108 = tpu.matmul %106, %107, %cst_37 {dimension_numbers = #tpu.dot_dimension_numbers<[1], [0], [0], [1], [0, 0, 1, 1], [], []>} : vector<8x128xbf16>, vector<128x512xbf16>, vector<8x512xf32> -> vector<8x512xf32>
    %109 = arith.addf %105, %108 : vector<8x512xf32>
    %110 = vector.extract_strided_slice %109 {offsets = [0, 0], sizes = [8, 384], strides = [1, 1]} : vector<8x512xf32> to vector<8x384xf32>
    %111 = arith.negf %110 : vector<8x384xf32>
    %112 = math.exp %111 : vector<8x384xf32>
    %cst_38 = arith.constant 1.000000e+00 : f32
    %113 = vector.broadcast %cst_38 : f32 to vector<8x384xf32>
    %114 = arith.addf %113, %112 : vector<8x384xf32>
    %115 = arith.divf %113, %114 : vector<8x384xf32>
    %116 = vector.extract_strided_slice %109 {offsets = [0, 384], sizes = [8, 128], strides = [1, 1]} : vector<8x512xf32> to vector<8x128xf32>
    %117 = math.tanh %116 : vector<8x128xf32>
    %118 = vector.extract_strided_slice %115 {offsets = [0, 0], sizes = [8, 128], strides = [1, 1]} : vector<8x384xf32> to vector<8x128xf32>
    %119 = vector.extract_strided_slice %115 {offsets = [0, 128], sizes = [8, 128], strides = [1, 1]} : vector<8x384xf32> to vector<8x128xf32>
    %120 = vector.extract_strided_slice %115 {offsets = [0, 256], sizes = [8, 128], strides = [1, 1]} : vector<8x384xf32> to vector<8x128xf32>
    %121 = arith.mulf %119, %76 : vector<8x128xf32>
    %122 = arith.mulf %118, %117 : vector<8x128xf32>
    %123 = arith.addf %121, %122 : vector<8x128xf32>
    %124 = math.tanh %123 : vector<8x128xf32>
    %125 = arith.mulf %120, %124 : vector<8x128xf32>
    %c0_39 = arith.constant 0 : index
    %c0_40 = arith.constant 0 : index
    %126 = vector.load %arg6[%c0_39, %c0_40] : memref<1x512xf32, #tpu.memory_space<vmem>>, vector<1x512xf32>
    %127 = arith.truncf %125 : vector<8x128xf32> to vector<8x128xbf16>
    %c0_41 = arith.constant 0 : index
    %c0_42 = arith.constant 0 : index
    %128 = vector.load %arg4[%c0_41, %c0_42] : memref<128x512xbf16, #tpu.memory_space<vmem>>, vector<128x512xbf16>
    %cst_43 = arith.constant dense<0.000000e+00> : vector<8x512xf32>
    %129 = tpu.matmul %127, %128, %cst_43 {dimension_numbers = #tpu.dot_dimension_numbers<[1], [0], [0], [1], [0, 0, 1, 1], [], []>} : vector<8x128xbf16>, vector<128x512xbf16>, vector<8x512xf32> -> vector<8x512xf32>
    %130 = vector.broadcast %126 : vector<1x512xf32> to vector<8x512xf32>
    %131 = arith.addf %130, %129 : vector<8x512xf32>
    %132 = arith.truncf %104 : vector<8x128xf32> to vector<8x128xbf16>
    %c0_44 = arith.constant 0 : index
    %c0_45 = arith.constant 0 : index
    %133 = vector.load %arg5[%c0_44, %c0_45] : memref<128x512xbf16, #tpu.memory_space<vmem>>, vector<128x512xbf16>
    %cst_46 = arith.constant dense<0.000000e+00> : vector<8x512xf32>
    %134 = tpu.matmul %132, %133, %cst_46 {dimension_numbers = #tpu.dot_dimension_numbers<[1], [0], [0], [1], [0, 0, 1, 1], [], []>} : vector<8x128xbf16>, vector<128x512xbf16>, vector<8x512xf32> -> vector<8x512xf32>
    %135 = arith.addf %131, %134 : vector<8x512xf32>
    %136 = vector.extract_strided_slice %135 {offsets = [0, 0], sizes = [8, 384], strides = [1, 1]} : vector<8x512xf32> to vector<8x384xf32>
    %137 = arith.negf %136 : vector<8x384xf32>
    %138 = math.exp %137 : vector<8x384xf32>
    %cst_47 = arith.constant 1.000000e+00 : f32
    %139 = vector.broadcast %cst_47 : f32 to vector<8x384xf32>
    %140 = arith.addf %139, %138 : vector<8x384xf32>
    %141 = arith.divf %139, %140 : vector<8x384xf32>
    %142 = vector.extract_strided_slice %135 {offsets = [0, 384], sizes = [8, 128], strides = [1, 1]} : vector<8x512xf32> to vector<8x128xf32>
    %143 = math.tanh %142 : vector<8x128xf32>
    %144 = vector.extract_strided_slice %141 {offsets = [0, 0], sizes = [8, 128], strides = [1, 1]} : vector<8x384xf32> to vector<8x128xf32>
    %145 = vector.extract_strided_slice %141 {offsets = [0, 128], sizes = [8, 128], strides = [1, 1]} : vector<8x384xf32> to vector<8x128xf32>
    %146 = vector.extract_strided_slice %141 {offsets = [0, 256], sizes = [8, 128], strides = [1, 1]} : vector<8x384xf32> to vector<8x128xf32>
    %147 = arith.mulf %145, %102 : vector<8x128xf32>
    %148 = arith.mulf %144, %143 : vector<8x128xf32>
    %149 = arith.addf %147, %148 : vector<8x128xf32>
    %150 = math.tanh %149 : vector<8x128xf32>
    %151 = arith.mulf %146, %150 : vector<8x128xf32>
    %152 = vector.extract_strided_slice %6 {offsets = [24, 0], sizes = [8, 512], strides = [1, 1]} : vector<64x512xf32> to vector<8x512xf32>
    %153 = arith.truncf %125 : vector<8x128xf32> to vector<8x128xbf16>
    %c0_48 = arith.constant 0 : index
    %c0_49 = arith.constant 0 : index
    %154 = vector.load %arg2[%c0_48, %c0_49] : memref<128x512xbf16, #tpu.memory_space<vmem>>, vector<128x512xbf16>
    %cst_50 = arith.constant dense<0.000000e+00> : vector<8x512xf32>
    %155 = tpu.matmul %153, %154, %cst_50 {dimension_numbers = #tpu.dot_dimension_numbers<[1], [0], [0], [1], [0, 0, 1, 1], [], []>} : vector<8x128xbf16>, vector<128x512xbf16>, vector<8x512xf32> -> vector<8x512xf32>
    %156 = arith.addf %152, %155 : vector<8x512xf32>
    %157 = vector.extract_strided_slice %156 {offsets = [0, 0], sizes = [8, 384], strides = [1, 1]} : vector<8x512xf32> to vector<8x384xf32>
    %158 = arith.negf %157 : vector<8x384xf32>
    %159 = math.exp %158 : vector<8x384xf32>
    %cst_51 = arith.constant 1.000000e+00 : f32
    %160 = vector.broadcast %cst_51 : f32 to vector<8x384xf32>
    %161 = arith.addf %160, %159 : vector<8x384xf32>
    %162 = arith.divf %160, %161 : vector<8x384xf32>
    %163 = vector.extract_strided_slice %156 {offsets = [0, 384], sizes = [8, 128], strides = [1, 1]} : vector<8x512xf32> to vector<8x128xf32>
    %164 = math.tanh %163 : vector<8x128xf32>
    %165 = vector.extract_strided_slice %162 {offsets = [0, 0], sizes = [8, 128], strides = [1, 1]} : vector<8x384xf32> to vector<8x128xf32>
    %166 = vector.extract_strided_slice %162 {offsets = [0, 128], sizes = [8, 128], strides = [1, 1]} : vector<8x384xf32> to vector<8x128xf32>
    %167 = vector.extract_strided_slice %162 {offsets = [0, 256], sizes = [8, 128], strides = [1, 1]} : vector<8x384xf32> to vector<8x128xf32>
    %168 = arith.mulf %166, %123 : vector<8x128xf32>
    %169 = arith.mulf %165, %164 : vector<8x128xf32>
    %170 = arith.addf %168, %169 : vector<8x128xf32>
    %171 = math.tanh %170 : vector<8x128xf32>
    %172 = arith.mulf %167, %171 : vector<8x128xf32>
    %c0_52 = arith.constant 0 : index
    %c0_53 = arith.constant 0 : index
    %173 = vector.load %arg6[%c0_52, %c0_53] : memref<1x512xf32, #tpu.memory_space<vmem>>, vector<1x512xf32>
    %174 = arith.truncf %172 : vector<8x128xf32> to vector<8x128xbf16>
    %c0_54 = arith.constant 0 : index
    %c0_55 = arith.constant 0 : index
    %175 = vector.load %arg4[%c0_54, %c0_55] : memref<128x512xbf16, #tpu.memory_space<vmem>>, vector<128x512xbf16>
    %cst_56 = arith.constant dense<0.000000e+00> : vector<8x512xf32>
    %176 = tpu.matmul %174, %175, %cst_56 {dimension_numbers = #tpu.dot_dimension_numbers<[1], [0], [0], [1], [0, 0, 1, 1], [], []>} : vector<8x128xbf16>, vector<128x512xbf16>, vector<8x512xf32> -> vector<8x512xf32>
    %177 = vector.broadcast %173 : vector<1x512xf32> to vector<8x512xf32>
    %178 = arith.addf %177, %176 : vector<8x512xf32>
    %179 = arith.truncf %151 : vector<8x128xf32> to vector<8x128xbf16>
    %c0_57 = arith.constant 0 : index
    %c0_58 = arith.constant 0 : index
    %180 = vector.load %arg5[%c0_57, %c0_58] : memref<128x512xbf16, #tpu.memory_space<vmem>>, vector<128x512xbf16>
    %cst_59 = arith.constant dense<0.000000e+00> : vector<8x512xf32>
    %181 = tpu.matmul %179, %180, %cst_59 {dimension_numbers = #tpu.dot_dimension_numbers<[1], [0], [0], [1], [0, 0, 1, 1], [], []>} : vector<8x128xbf16>, vector<128x512xbf16>, vector<8x512xf32> -> vector<8x512xf32>
    %182 = arith.addf %178, %181 : vector<8x512xf32>
    %183 = vector.extract_strided_slice %182 {offsets = [0, 0], sizes = [8, 384], strides = [1, 1]} : vector<8x512xf32> to vector<8x384xf32>
    %184 = arith.negf %183 : vector<8x384xf32>
    %185 = math.exp %184 : vector<8x384xf32>
    %cst_60 = arith.constant 1.000000e+00 : f32
    %186 = vector.broadcast %cst_60 : f32 to vector<8x384xf32>
    %187 = arith.addf %186, %185 : vector<8x384xf32>
    %188 = arith.divf %186, %187 : vector<8x384xf32>
    %189 = vector.extract_strided_slice %182 {offsets = [0, 384], sizes = [8, 128], strides = [1, 1]} : vector<8x512xf32> to vector<8x128xf32>
    %190 = math.tanh %189 : vector<8x128xf32>
    %191 = vector.extract_strided_slice %188 {offsets = [0, 0], sizes = [8, 128], strides = [1, 1]} : vector<8x384xf32> to vector<8x128xf32>
    %192 = vector.extract_strided_slice %188 {offsets = [0, 128], sizes = [8, 128], strides = [1, 1]} : vector<8x384xf32> to vector<8x128xf32>
    %193 = vector.extract_strided_slice %188 {offsets = [0, 256], sizes = [8, 128], strides = [1, 1]} : vector<8x384xf32> to vector<8x128xf32>
    %194 = arith.mulf %192, %149 : vector<8x128xf32>
    %195 = arith.mulf %191, %190 : vector<8x128xf32>
    %196 = arith.addf %194, %195 : vector<8x128xf32>
    %197 = math.tanh %196 : vector<8x128xf32>
    %198 = arith.mulf %193, %197 : vector<8x128xf32>
    %199 = vector.extract_strided_slice %6 {offsets = [32, 0], sizes = [8, 512], strides = [1, 1]} : vector<64x512xf32> to vector<8x512xf32>
    %200 = arith.truncf %172 : vector<8x128xf32> to vector<8x128xbf16>
    %c0_61 = arith.constant 0 : index
    %c0_62 = arith.constant 0 : index
    %201 = vector.load %arg2[%c0_61, %c0_62] : memref<128x512xbf16, #tpu.memory_space<vmem>>, vector<128x512xbf16>
    %cst_63 = arith.constant dense<0.000000e+00> : vector<8x512xf32>
    %202 = tpu.matmul %200, %201, %cst_63 {dimension_numbers = #tpu.dot_dimension_numbers<[1], [0], [0], [1], [0, 0, 1, 1], [], []>} : vector<8x128xbf16>, vector<128x512xbf16>, vector<8x512xf32> -> vector<8x512xf32>
    %203 = arith.addf %199, %202 : vector<8x512xf32>
    %204 = vector.extract_strided_slice %203 {offsets = [0, 0], sizes = [8, 384], strides = [1, 1]} : vector<8x512xf32> to vector<8x384xf32>
    %205 = arith.negf %204 : vector<8x384xf32>
    %206 = math.exp %205 : vector<8x384xf32>
    %cst_64 = arith.constant 1.000000e+00 : f32
    %207 = vector.broadcast %cst_64 : f32 to vector<8x384xf32>
    %208 = arith.addf %207, %206 : vector<8x384xf32>
    %209 = arith.divf %207, %208 : vector<8x384xf32>
    %210 = vector.extract_strided_slice %203 {offsets = [0, 384], sizes = [8, 128], strides = [1, 1]} : vector<8x512xf32> to vector<8x128xf32>
    %211 = math.tanh %210 : vector<8x128xf32>
    %212 = vector.extract_strided_slice %209 {offsets = [0, 0], sizes = [8, 128], strides = [1, 1]} : vector<8x384xf32> to vector<8x128xf32>
    %213 = vector.extract_strided_slice %209 {offsets = [0, 128], sizes = [8, 128], strides = [1, 1]} : vector<8x384xf32> to vector<8x128xf32>
    %214 = vector.extract_strided_slice %209 {offsets = [0, 256], sizes = [8, 128], strides = [1, 1]} : vector<8x384xf32> to vector<8x128xf32>
    %215 = arith.mulf %213, %170 : vector<8x128xf32>
    %216 = arith.mulf %212, %211 : vector<8x128xf32>
    %217 = arith.addf %215, %216 : vector<8x128xf32>
    %218 = math.tanh %217 : vector<8x128xf32>
    %219 = arith.mulf %214, %218 : vector<8x128xf32>
    %c0_65 = arith.constant 0 : index
    %c0_66 = arith.constant 0 : index
    %220 = vector.load %arg6[%c0_65, %c0_66] : memref<1x512xf32, #tpu.memory_space<vmem>>, vector<1x512xf32>
    %221 = arith.truncf %219 : vector<8x128xf32> to vector<8x128xbf16>
    %c0_67 = arith.constant 0 : index
    %c0_68 = arith.constant 0 : index
    %222 = vector.load %arg4[%c0_67, %c0_68] : memref<128x512xbf16, #tpu.memory_space<vmem>>, vector<128x512xbf16>
    %cst_69 = arith.constant dense<0.000000e+00> : vector<8x512xf32>
    %223 = tpu.matmul %221, %222, %cst_69 {dimension_numbers = #tpu.dot_dimension_numbers<[1], [0], [0], [1], [0, 0, 1, 1], [], []>} : vector<8x128xbf16>, vector<128x512xbf16>, vector<8x512xf32> -> vector<8x512xf32>
    %224 = vector.broadcast %220 : vector<1x512xf32> to vector<8x512xf32>
    %225 = arith.addf %224, %223 : vector<8x512xf32>
    %226 = arith.truncf %198 : vector<8x128xf32> to vector<8x128xbf16>
    %c0_70 = arith.constant 0 : index
    %c0_71 = arith.constant 0 : index
    %227 = vector.load %arg5[%c0_70, %c0_71] : memref<128x512xbf16, #tpu.memory_space<vmem>>, vector<128x512xbf16>
    %cst_72 = arith.constant dense<0.000000e+00> : vector<8x512xf32>
    %228 = tpu.matmul %226, %227, %cst_72 {dimension_numbers = #tpu.dot_dimension_numbers<[1], [0], [0], [1], [0, 0, 1, 1], [], []>} : vector<8x128xbf16>, vector<128x512xbf16>, vector<8x512xf32> -> vector<8x512xf32>
    %229 = arith.addf %225, %228 : vector<8x512xf32>
    %230 = vector.extract_strided_slice %229 {offsets = [0, 0], sizes = [8, 384], strides = [1, 1]} : vector<8x512xf32> to vector<8x384xf32>
    %231 = arith.negf %230 : vector<8x384xf32>
    %232 = math.exp %231 : vector<8x384xf32>
    %cst_73 = arith.constant 1.000000e+00 : f32
    %233 = vector.broadcast %cst_73 : f32 to vector<8x384xf32>
    %234 = arith.addf %233, %232 : vector<8x384xf32>
    %235 = arith.divf %233, %234 : vector<8x384xf32>
    %236 = vector.extract_strided_slice %229 {offsets = [0, 384], sizes = [8, 128], strides = [1, 1]} : vector<8x512xf32> to vector<8x128xf32>
    %237 = math.tanh %236 : vector<8x128xf32>
    %238 = vector.extract_strided_slice %235 {offsets = [0, 0], sizes = [8, 128], strides = [1, 1]} : vector<8x384xf32> to vector<8x128xf32>
    %239 = vector.extract_strided_slice %235 {offsets = [0, 128], sizes = [8, 128], strides = [1, 1]} : vector<8x384xf32> to vector<8x128xf32>
    %240 = vector.extract_strided_slice %235 {offsets = [0, 256], sizes = [8, 128], strides = [1, 1]} : vector<8x384xf32> to vector<8x128xf32>
    %241 = arith.mulf %239, %196 : vector<8x128xf32>
    %242 = arith.mulf %238, %237 : vector<8x128xf32>
    %243 = arith.addf %241, %242 : vector<8x128xf32>
    %244 = math.tanh %243 : vector<8x128xf32>
    %245 = arith.mulf %240, %244 : vector<8x128xf32>
    %cst_74 = arith.constant 0.000000e+00 : f32
    %246 = vector.broadcast %cst_74 : f32 to vector<8x128xf32>
    %247 = arith.maximumf %245, %246 : vector<8x128xf32>
    %248 = arith.truncf %247 : vector<8x128xf32> to vector<8x128xbf16>
    %c0_75 = arith.constant 0 : index
    %c0_76 = arith.constant 0 : index
    %249 = vector.load %arg7[%c0_75, %c0_76] : memref<128x128xbf16, #tpu.memory_space<vmem>>, vector<128x128xbf16>
    %cst_77 = arith.constant dense<0.000000e+00> : vector<8x128xf32>
    %250 = tpu.matmul %248, %249, %cst_77 {dimension_numbers = #tpu.dot_dimension_numbers<[1], [0], [0], [1], [0, 0, 1, 1], [], []>} : vector<8x128xbf16>, vector<128x128xbf16>, vector<8x128xf32> -> vector<8x128xf32>
    %c0_78 = arith.constant 0 : index
    %c0_79 = arith.constant 0 : index
    %251 = vector.load %arg8[%c0_78, %c0_79] : memref<1x128xf32, #tpu.memory_space<vmem>>, vector<1x128xf32>
    %252 = vector.broadcast %251 : vector<1x128xf32> to vector<8x128xf32>
    %253 = arith.addf %250, %252 : vector<8x128xf32>
    %c0_80 = arith.constant 0 : index
    %c0_81 = arith.constant 0 : index
    %254 = vector.load %arg9[%c0_80, %c0_81] : memref<32x128xf32, #tpu.memory_space<vmem>>, vector<8x128xf32>
    tpu.vector_store %arg9[%c0_80, %c0_81], %253 {strides = array<i32>} : memref<32x128xf32, #tpu.memory_space<vmem>>, vector<8x128xf32>,
    %255 = vector.extract_strided_slice %6 {offsets = [40, 0], sizes = [8, 512], strides = [1, 1]} : vector<64x512xf32> to vector<8x512xf32>
    %256 = arith.truncf %219 : vector<8x128xf32> to vector<8x128xbf16>
    %c0_82 = arith.constant 0 : index
    %c0_83 = arith.constant 0 : index
    %257 = vector.load %arg2[%c0_82, %c0_83] : memref<128x512xbf16, #tpu.memory_space<vmem>>, vector<128x512xbf16>
    %cst_84 = arith.constant dense<0.000000e+00> : vector<8x512xf32>
    %258 = tpu.matmul %256, %257, %cst_84 {dimension_numbers = #tpu.dot_dimension_numbers<[1], [0], [0], [1], [0, 0, 1, 1], [], []>} : vector<8x128xbf16>, vector<128x512xbf16>, vector<8x512xf32> -> vector<8x512xf32>
    %259 = arith.addf %255, %258 : vector<8x512xf32>
    %260 = vector.extract_strided_slice %259 {offsets = [0, 0], sizes = [8, 384], strides = [1, 1]} : vector<8x512xf32> to vector<8x384xf32>
    %261 = arith.negf %260 : vector<8x384xf32>
    %262 = math.exp %261 : vector<8x384xf32>
    %cst_85 = arith.constant 1.000000e+00 : f32
    %263 = vector.broadcast %cst_85 : f32 to vector<8x384xf32>
    %264 = arith.addf %263, %262 : vector<8x384xf32>
    %265 = arith.divf %263, %264 : vector<8x384xf32>
    %266 = vector.extract_strided_slice %259 {offsets = [0, 384], sizes = [8, 128], strides = [1, 1]} : vector<8x512xf32> to vector<8x128xf32>
    %267 = math.tanh %266 : vector<8x128xf32>
    %268 = vector.extract_strided_slice %265 {offsets = [0, 0], sizes = [8, 128], strides = [1, 1]} : vector<8x384xf32> to vector<8x128xf32>
    %269 = vector.extract_strided_slice %265 {offsets = [0, 128], sizes = [8, 128], strides = [1, 1]} : vector<8x384xf32> to vector<8x128xf32>
    %270 = vector.extract_strided_slice %265 {offsets = [0, 256], sizes = [8, 128], strides = [1, 1]} : vector<8x384xf32> to vector<8x128xf32>
    %271 = arith.mulf %269, %217 : vector<8x128xf32>
    %272 = arith.mulf %268, %267 : vector<8x128xf32>
    %273 = arith.addf %271, %272 : vector<8x128xf32>
    %274 = math.tanh %273 : vector<8x128xf32>
    %275 = arith.mulf %270, %274 : vector<8x128xf32>
    %c0_86 = arith.constant 0 : index
    %c0_87 = arith.constant 0 : index
    %276 = vector.load %arg6[%c0_86, %c0_87] : memref<1x512xf32, #tpu.memory_space<vmem>>, vector<1x512xf32>
    %277 = arith.truncf %275 : vector<8x128xf32> to vector<8x128xbf16>
    %c0_88 = arith.constant 0 : index
    %c0_89 = arith.constant 0 : index
    %278 = vector.load %arg4[%c0_88, %c0_89] : memref<128x512xbf16, #tpu.memory_space<vmem>>, vector<128x512xbf16>
    %cst_90 = arith.constant dense<0.000000e+00> : vector<8x512xf32>
    %279 = tpu.matmul %277, %278, %cst_90 {dimension_numbers = #tpu.dot_dimension_numbers<[1], [0], [0], [1], [0, 0, 1, 1], [], []>} : vector<8x128xbf16>, vector<128x512xbf16>, vector<8x512xf32> -> vector<8x512xf32>
    %280 = vector.broadcast %276 : vector<1x512xf32> to vector<8x512xf32>
    %281 = arith.addf %280, %279 : vector<8x512xf32>
    %282 = arith.truncf %245 : vector<8x128xf32> to vector<8x128xbf16>
    %c0_91 = arith.constant 0 : index
    %c0_92 = arith.constant 0 : index
    %283 = vector.load %arg5[%c0_91, %c0_92] : memref<128x512xbf16, #tpu.memory_space<vmem>>, vector<128x512xbf16>
    %cst_93 = arith.constant dense<0.000000e+00> : vector<8x512xf32>
    %284 = tpu.matmul %282, %283, %cst_93 {dimension_numbers = #tpu.dot_dimension_numbers<[1], [0], [0], [1], [0, 0, 1, 1], [], []>} : vector<8x128xbf16>, vector<128x512xbf16>, vector<8x512xf32> -> vector<8x512xf32>
    %285 = arith.addf %281, %284 : vector<8x512xf32>
    %286 = vector.extract_strided_slice %285 {offsets = [0, 0], sizes = [8, 384], strides = [1, 1]} : vector<8x512xf32> to vector<8x384xf32>
    %287 = arith.negf %286 : vector<8x384xf32>
    %288 = math.exp %287 : vector<8x384xf32>
    %cst_94 = arith.constant 1.000000e+00 : f32
    %289 = vector.broadcast %cst_94 : f32 to vector<8x384xf32>
    %290 = arith.addf %289, %288 : vector<8x384xf32>
    %291 = arith.divf %289, %290 : vector<8x384xf32>
    %292 = vector.extract_strided_slice %285 {offsets = [0, 384], sizes = [8, 128], strides = [1, 1]} : vector<8x512xf32> to vector<8x128xf32>
    %293 = math.tanh %292 : vector<8x128xf32>
    %294 = vector.extract_strided_slice %291 {offsets = [0, 0], sizes = [8, 128], strides = [1, 1]} : vector<8x384xf32> to vector<8x128xf32>
    %295 = vector.extract_strided_slice %291 {offsets = [0, 128], sizes = [8, 128], strides = [1, 1]} : vector<8x384xf32> to vector<8x128xf32>
    %296 = vector.extract_strided_slice %291 {offsets = [0, 256], sizes = [8, 128], strides = [1, 1]} : vector<8x384xf32> to vector<8x128xf32>
    %297 = arith.mulf %295, %243 : vector<8x128xf32>
    %298 = arith.mulf %294, %293 : vector<8x128xf32>
    %299 = arith.addf %297, %298 : vector<8x128xf32>
    %300 = math.tanh %299 : vector<8x128xf32>
    %301 = arith.mulf %296, %300 : vector<8x128xf32>
    %cst_95 = arith.constant 0.000000e+00 : f32
    %302 = vector.broadcast %cst_95 : f32 to vector<8x128xf32>
    %303 = arith.maximumf %301, %302 : vector<8x128xf32>
    %304 = arith.truncf %303 : vector<8x128xf32> to vector<8x128xbf16>
    %c0_96 = arith.constant 0 : index
    %c0_97 = arith.constant 0 : index
    %305 = vector.load %arg7[%c0_96, %c0_97] : memref<128x128xbf16, #tpu.memory_space<vmem>>, vector<128x128xbf16>
    %cst_98 = arith.constant dense<0.000000e+00> : vector<8x128xf32>
    %306 = tpu.matmul %304, %305, %cst_98 {dimension_numbers = #tpu.dot_dimension_numbers<[1], [0], [0], [1], [0, 0, 1, 1], [], []>} : vector<8x128xbf16>, vector<128x128xbf16>, vector<8x128xf32> -> vector<8x128xf32>
    %c0_99 = arith.constant 0 : index
    %c0_100 = arith.constant 0 : index
    %307 = vector.load %arg8[%c0_99, %c0_100] : memref<1x128xf32, #tpu.memory_space<vmem>>, vector<1x128xf32>
    %308 = vector.broadcast %307 : vector<1x128xf32> to vector<8x128xf32>
    %309 = arith.addf %306, %308 : vector<8x128xf32>
    %c8 = arith.constant 8 : index
    %c0_101 = arith.constant 0 : index
    %310 = vector.load %arg9[%c8, %c0_101] : memref<32x128xf32, #tpu.memory_space<vmem>>, vector<8x128xf32>
    tpu.vector_store %arg9[%c8, %c0_101], %309 {strides = array<i32>} : memref<32x128xf32, #tpu.memory_space<vmem>>, vector<8x128xf32>,
    %311 = vector.extract_strided_slice %6 {offsets = [48, 0], sizes = [8, 512], strides = [1, 1]} : vector<64x512xf32> to vector<8x512xf32>
    %312 = arith.truncf %275 : vector<8x128xf32> to vector<8x128xbf16>
    %c0_102 = arith.constant 0 : index
    %c0_103 = arith.constant 0 : index
    %313 = vector.load %arg2[%c0_102, %c0_103] : memref<128x512xbf16, #tpu.memory_space<vmem>>, vector<128x512xbf16>
    %cst_104 = arith.constant dense<0.000000e+00> : vector<8x512xf32>
    %314 = tpu.matmul %312, %313, %cst_104 {dimension_numbers = #tpu.dot_dimension_numbers<[1], [0], [0], [1], [0, 0, 1, 1], [], []>} : vector<8x128xbf16>, vector<128x512xbf16>, vector<8x512xf32> -> vector<8x512xf32>
    %315 = arith.addf %311, %314 : vector<8x512xf32>
    %316 = vector.extract_strided_slice %315 {offsets = [0, 0], sizes = [8, 384], strides = [1, 1]} : vector<8x512xf32> to vector<8x384xf32>
    %317 = arith.negf %316 : vector<8x384xf32>
    %318 = math.exp %317 : vector<8x384xf32>
    %cst_105 = arith.constant 1.000000e+00 : f32
    %319 = vector.broadcast %cst_105 : f32 to vector<8x384xf32>
    %320 = arith.addf %319, %318 : vector<8x384xf32>
    %321 = arith.divf %319, %320 : vector<8x384xf32>
    %322 = vector.extract_strided_slice %315 {offsets = [0, 384], sizes = [8, 128], strides = [1, 1]} : vector<8x512xf32> to vector<8x128xf32>
    %323 = math.tanh %322 : vector<8x128xf32>
    %324 = vector.extract_strided_slice %321 {offsets = [0, 0], sizes = [8, 128], strides = [1, 1]} : vector<8x384xf32> to vector<8x128xf32>
    %325 = vector.extract_strided_slice %321 {offsets = [0, 128], sizes = [8, 128], strides = [1, 1]} : vector<8x384xf32> to vector<8x128xf32>
    %326 = vector.extract_strided_slice %321 {offsets = [0, 256], sizes = [8, 128], strides = [1, 1]} : vector<8x384xf32> to vector<8x128xf32>
    %327 = arith.mulf %325, %273 : vector<8x128xf32>
    %328 = arith.mulf %324, %323 : vector<8x128xf32>
    %329 = arith.addf %327, %328 : vector<8x128xf32>
    %330 = math.tanh %329 : vector<8x128xf32>
    %331 = arith.mulf %326, %330 : vector<8x128xf32>
    %c0_106 = arith.constant 0 : index
    %c0_107 = arith.constant 0 : index
    %332 = vector.load %arg6[%c0_106, %c0_107] : memref<1x512xf32, #tpu.memory_space<vmem>>, vector<1x512xf32>
    %333 = arith.truncf %331 : vector<8x128xf32> to vector<8x128xbf16>
    %c0_108 = arith.constant 0 : index
    %c0_109 = arith.constant 0 : index
    %334 = vector.load %arg4[%c0_108, %c0_109] : memref<128x512xbf16, #tpu.memory_space<vmem>>, vector<128x512xbf16>
    %cst_110 = arith.constant dense<0.000000e+00> : vector<8x512xf32>
    %335 = tpu.matmul %333, %334, %cst_110 {dimension_numbers = #tpu.dot_dimension_numbers<[1], [0], [0], [1], [0, 0, 1, 1], [], []>} : vector<8x128xbf16>, vector<128x512xbf16>, vector<8x512xf32> -> vector<8x512xf32>
    %336 = vector.broadcast %332 : vector<1x512xf32> to vector<8x512xf32>
    %337 = arith.addf %336, %335 : vector<8x512xf32>
    %338 = arith.truncf %301 : vector<8x128xf32> to vector<8x128xbf16>
    %c0_111 = arith.constant 0 : index
    %c0_112 = arith.constant 0 : index
    %339 = vector.load %arg5[%c0_111, %c0_112] : memref<128x512xbf16, #tpu.memory_space<vmem>>, vector<128x512xbf16>
    %cst_113 = arith.constant dense<0.000000e+00> : vector<8x512xf32>
    %340 = tpu.matmul %338, %339, %cst_113 {dimension_numbers = #tpu.dot_dimension_numbers<[1], [0], [0], [1], [0, 0, 1, 1], [], []>} : vector<8x128xbf16>, vector<128x512xbf16>, vector<8x512xf32> -> vector<8x512xf32>
    %341 = arith.addf %337, %340 : vector<8x512xf32>
    %342 = vector.extract_strided_slice %341 {offsets = [0, 0], sizes = [8, 384], strides = [1, 1]} : vector<8x512xf32> to vector<8x384xf32>
    %343 = arith.negf %342 : vector<8x384xf32>
    %344 = math.exp %343 : vector<8x384xf32>
    %cst_114 = arith.constant 1.000000e+00 : f32
    %345 = vector.broadcast %cst_114 : f32 to vector<8x384xf32>
    %346 = arith.addf %345, %344 : vector<8x384xf32>
    %347 = arith.divf %345, %346 : vector<8x384xf32>
    %348 = vector.extract_strided_slice %341 {offsets = [0, 384], sizes = [8, 128], strides = [1, 1]} : vector<8x512xf32> to vector<8x128xf32>
    %349 = math.tanh %348 : vector<8x128xf32>
    %350 = vector.extract_strided_slice %347 {offsets = [0, 0], sizes = [8, 128], strides = [1, 1]} : vector<8x384xf32> to vector<8x128xf32>
    %351 = vector.extract_strided_slice %347 {offsets = [0, 128], sizes = [8, 128], strides = [1, 1]} : vector<8x384xf32> to vector<8x128xf32>
    %352 = vector.extract_strided_slice %347 {offsets = [0, 256], sizes = [8, 128], strides = [1, 1]} : vector<8x384xf32> to vector<8x128xf32>
    %353 = arith.mulf %351, %299 : vector<8x128xf32>
    %354 = arith.mulf %350, %349 : vector<8x128xf32>
    %355 = arith.addf %353, %354 : vector<8x128xf32>
    %356 = math.tanh %355 : vector<8x128xf32>
    %357 = arith.mulf %352, %356 : vector<8x128xf32>
    %cst_115 = arith.constant 0.000000e+00 : f32
    %358 = vector.broadcast %cst_115 : f32 to vector<8x128xf32>
    %359 = arith.maximumf %357, %358 : vector<8x128xf32>
    %360 = arith.truncf %359 : vector<8x128xf32> to vector<8x128xbf16>
    %c0_116 = arith.constant 0 : index
    %c0_117 = arith.constant 0 : index
    %361 = vector.load %arg7[%c0_116, %c0_117] : memref<128x128xbf16, #tpu.memory_space<vmem>>, vector<128x128xbf16>
    %cst_118 = arith.constant dense<0.000000e+00> : vector<8x128xf32>
    %362 = tpu.matmul %360, %361, %cst_118 {dimension_numbers = #tpu.dot_dimension_numbers<[1], [0], [0], [1], [0, 0, 1, 1], [], []>} : vector<8x128xbf16>, vector<128x128xbf16>, vector<8x128xf32> -> vector<8x128xf32>
    %c0_119 = arith.constant 0 : index
    %c0_120 = arith.constant 0 : index
    %363 = vector.load %arg8[%c0_119, %c0_120] : memref<1x128xf32, #tpu.memory_space<vmem>>, vector<1x128xf32>
    %364 = vector.broadcast %363 : vector<1x128xf32> to vector<8x128xf32>
    %365 = arith.addf %362, %364 : vector<8x128xf32>
    %c16 = arith.constant 16 : index
    %c0_121 = arith.constant 0 : index
    %366 = vector.load %arg9[%c16, %c0_121] : memref<32x128xf32, #tpu.memory_space<vmem>>, vector<8x128xf32>
    tpu.vector_store %arg9[%c16, %c0_121], %365 {strides = array<i32>} : memref<32x128xf32, #tpu.memory_space<vmem>>, vector<8x128xf32>,
    %367 = vector.extract_strided_slice %6 {offsets = [56, 0], sizes = [8, 512], strides = [1, 1]} : vector<64x512xf32> to vector<8x512xf32>
    %368 = arith.truncf %331 : vector<8x128xf32> to vector<8x128xbf16>
    %c0_122 = arith.constant 0 : index
    %c0_123 = arith.constant 0 : index
    %369 = vector.load %arg2[%c0_122, %c0_123] : memref<128x512xbf16, #tpu.memory_space<vmem>>, vector<128x512xbf16>
    %cst_124 = arith.constant dense<0.000000e+00> : vector<8x512xf32>
    %370 = tpu.matmul %368, %369, %cst_124 {dimension_numbers = #tpu.dot_dimension_numbers<[1], [0], [0], [1], [0, 0, 1, 1], [], []>} : vector<8x128xbf16>, vector<128x512xbf16>, vector<8x512xf32> -> vector<8x512xf32>
    %371 = arith.addf %367, %370 : vector<8x512xf32>
    %372 = vector.extract_strided_slice %371 {offsets = [0, 0], sizes = [8, 384], strides = [1, 1]} : vector<8x512xf32> to vector<8x384xf32>
    %373 = arith.negf %372 : vector<8x384xf32>
    %374 = math.exp %373 : vector<8x384xf32>
    %cst_125 = arith.constant 1.000000e+00 : f32
    %375 = vector.broadcast %cst_125 : f32 to vector<8x384xf32>
    %376 = arith.addf %375, %374 : vector<8x384xf32>
    %377 = arith.divf %375, %376 : vector<8x384xf32>
    %378 = vector.extract_strided_slice %371 {offsets = [0, 384], sizes = [8, 128], strides = [1, 1]} : vector<8x512xf32> to vector<8x128xf32>
    %379 = math.tanh %378 : vector<8x128xf32>
    %380 = vector.extract_strided_slice %377 {offsets = [0, 0], sizes = [8, 128], strides = [1, 1]} : vector<8x384xf32> to vector<8x128xf32>
    %381 = vector.extract_strided_slice %377 {offsets = [0, 128], sizes = [8, 128], strides = [1, 1]} : vector<8x384xf32> to vector<8x128xf32>
    %382 = vector.extract_strided_slice %377 {offsets = [0, 256], sizes = [8, 128], strides = [1, 1]} : vector<8x384xf32> to vector<8x128xf32>
    %383 = arith.mulf %381, %329 : vector<8x128xf32>
    %384 = arith.mulf %380, %379 : vector<8x128xf32>
    %385 = arith.addf %383, %384 : vector<8x128xf32>
    %386 = math.tanh %385 : vector<8x128xf32>
    %387 = arith.mulf %382, %386 : vector<8x128xf32>
    %c0_126 = arith.constant 0 : index
    %c0_127 = arith.constant 0 : index
    %388 = vector.load %arg6[%c0_126, %c0_127] : memref<1x512xf32, #tpu.memory_space<vmem>>, vector<1x512xf32>
    %389 = arith.truncf %387 : vector<8x128xf32> to vector<8x128xbf16>
    %c0_128 = arith.constant 0 : index
    %c0_129 = arith.constant 0 : index
    %390 = vector.load %arg4[%c0_128, %c0_129] : memref<128x512xbf16, #tpu.memory_space<vmem>>, vector<128x512xbf16>
    %cst_130 = arith.constant dense<0.000000e+00> : vector<8x512xf32>
    %391 = tpu.matmul %389, %390, %cst_130 {dimension_numbers = #tpu.dot_dimension_numbers<[1], [0], [0], [1], [0, 0, 1, 1], [], []>} : vector<8x128xbf16>, vector<128x512xbf16>, vector<8x512xf32> -> vector<8x512xf32>
    %392 = vector.broadcast %388 : vector<1x512xf32> to vector<8x512xf32>
    %393 = arith.addf %392, %391 : vector<8x512xf32>
    %394 = arith.truncf %357 : vector<8x128xf32> to vector<8x128xbf16>
    %c0_131 = arith.constant 0 : index
    %c0_132 = arith.constant 0 : index
    %395 = vector.load %arg5[%c0_131, %c0_132] : memref<128x512xbf16, #tpu.memory_space<vmem>>, vector<128x512xbf16>
    %cst_133 = arith.constant dense<0.000000e+00> : vector<8x512xf32>
    %396 = tpu.matmul %394, %395, %cst_133 {dimension_numbers = #tpu.dot_dimension_numbers<[1], [0], [0], [1], [0, 0, 1, 1], [], []>} : vector<8x128xbf16>, vector<128x512xbf16>, vector<8x512xf32> -> vector<8x512xf32>
    %397 = arith.addf %393, %396 : vector<8x512xf32>
    %398 = vector.extract_strided_slice %397 {offsets = [0, 0], sizes = [8, 384], strides = [1, 1]} : vector<8x512xf32> to vector<8x384xf32>
    %399 = arith.negf %398 : vector<8x384xf32>
    %400 = math.exp %399 : vector<8x384xf32>
    %cst_134 = arith.constant 1.000000e+00 : f32
    %401 = vector.broadcast %cst_134 : f32 to vector<8x384xf32>
    %402 = arith.addf %401, %400 : vector<8x384xf32>
    %403 = arith.divf %401, %402 : vector<8x384xf32>
    %404 = vector.extract_strided_slice %397 {offsets = [0, 384], sizes = [8, 128], strides = [1, 1]} : vector<8x512xf32> to vector<8x128xf32>
    %405 = math.tanh %404 : vector<8x128xf32>
    %406 = vector.extract_strided_slice %403 {offsets = [0, 0], sizes = [8, 128], strides = [1, 1]} : vector<8x384xf32> to vector<8x128xf32>
    %407 = vector.extract_strided_slice %403 {offsets = [0, 128], sizes = [8, 128], strides = [1, 1]} : vector<8x384xf32> to vector<8x128xf32>
    %408 = vector.extract_strided_slice %403 {offsets = [0, 256], sizes = [8, 128], strides = [1, 1]} : vector<8x384xf32> to vector<8x128xf32>
    %409 = arith.mulf %407, %355 : vector<8x128xf32>
    %410 = arith.mulf %406, %405 : vector<8x128xf32>
    %411 = arith.addf %409, %410 : vector<8x128xf32>
    %412 = math.tanh %411 : vector<8x128xf32>
    %413 = arith.mulf %408, %412 : vector<8x128xf32>
    %cst_135 = arith.constant 0.000000e+00 : f32
    %414 = vector.broadcast %cst_135 : f32 to vector<8x128xf32>
    %415 = arith.maximumf %413, %414 : vector<8x128xf32>
    %416 = arith.truncf %415 : vector<8x128xf32> to vector<8x128xbf16>
    %c0_136 = arith.constant 0 : index
    %c0_137 = arith.constant 0 : index
    %417 = vector.load %arg7[%c0_136, %c0_137] : memref<128x128xbf16, #tpu.memory_space<vmem>>, vector<128x128xbf16>
    %cst_138 = arith.constant dense<0.000000e+00> : vector<8x128xf32>
    %418 = tpu.matmul %416, %417, %cst_138 {dimension_numbers = #tpu.dot_dimension_numbers<[1], [0], [0], [1], [0, 0, 1, 1], [], []>} : vector<8x128xbf16>, vector<128x128xbf16>, vector<8x128xf32> -> vector<8x128xf32>
    %c0_139 = arith.constant 0 : index
    %c0_140 = arith.constant 0 : index
    %419 = vector.load %arg8[%c0_139, %c0_140] : memref<1x128xf32, #tpu.memory_space<vmem>>, vector<1x128xf32>
    %420 = vector.broadcast %419 : vector<1x128xf32> to vector<8x128xf32>
    %421 = arith.addf %418, %420 : vector<8x128xf32>
    %c24 = arith.constant 24 : index
    %c0_141 = arith.constant 0 : index
    %422 = vector.load %arg9[%c24, %c0_141] : memref<32x128xf32, #tpu.memory_space<vmem>>, vector<8x128xf32>
    tpu.vector_store %arg9[%c24, %c0_141], %421 {strides = array<i32>} : memref<32x128xf32, #tpu.memory_space<vmem>>, vector<8x128xf32>,
    return
  }
}

</mosaic_0001>

<llo_original>
// kernel: lstm_forward.1
$region0: #{lstm_forward.1}
  #allocation0 [shape = 'u32[]', space=smem, size = 0x4, offset = 0x4, fixed_abs, tag = 'smem constant byte address 0x4 - core index']
  #allocation1 [shape = 'u32[144,128]{1,0:T(1,128)}', space=vmem, size = 0x12000, scoped, tag = 'internal scratch']
  %s0 = inlined_call_operand.vmem [shape: f32[64,128], index: 0, kind: input, shape index: {}]
  %s1 = inlined_call_operand.hbm [shape: bf16[128,512], index: 1, kind: input, shape index: {}]
  %s2 = inlined_call_operand.hbm [shape: bf16[128,512], index: 2, kind: input, shape index: {}]
  %s3 = inlined_call_operand.vmem [shape: f32[1,512], index: 3, kind: input, shape index: {}]
  %s4 = inlined_call_operand.hbm [shape: bf16[128,512], index: 4, kind: input, shape index: {}]
  %s5 = inlined_call_operand.hbm [shape: bf16[128,512], index: 5, kind: input, shape index: {}]
  %s6 = inlined_call_operand.vmem [shape: f32[1,512], index: 6, kind: input, shape index: {}]
  %s7 = inlined_call_operand.vmem [shape: bf16[128,128], index: 7, kind: input, shape index: {}]
  %s8 = inlined_call_operand.vmem [shape: f32[1,128], index: 8, kind: input, shape index: {}]
  %s9 = inlined_call_operand.vmem [shape: f32[32,128], index: 9, kind: output, shape index: {}]
  %s10 = sld [smem:[#allocation0]]
  $region62: #{lstm_forward.1} parent=0
    _
  %s12 = ssub.s32 1, %s10
  %s13 = scalar_select 0, %s12, %s10
  $region1: #{lstm_forward.1} parent=0
    #allocation2 [shape = 'u8[131072]{0}', space=vmem, size = 0x20000, scoped, tag = 'input window, operand 1, single buffered']
    #allocation3 [shape = 's32[1]{0}', space=sflag, size = 0x4, scoped, tag = 'scoped memory for lstm_forward.1']
    #allocation4 [shape = 'u8[131072]{0}', space=vmem, size = 0x20000, scoped, tag = 'input window, operand 2, single buffered']
    #allocation5 [shape = 's32[1]{0}', space=sflag, size = 0x4, scoped, tag = 'scoped memory for lstm_forward.1']
    #allocation6 [shape = 'u8[131072]{0}', space=vmem, size = 0x20000, scoped, tag = 'input window, operand 4, single buffered']
    #allocation7 [shape = 'u8[131072]{0}', space=vmem, size = 0x20000, scoped, tag = 'input window, operand 5, single buffered']
    #allocation8 [shape = 's32[1]{0}', space=sflag, size = 0x4, scoped, tag = 'scoped memory for lstm_forward.1']
    %14 = vsyncpa [#allocation3], 0
    %15 = vsyncpa [#allocation5], 0
    %16 = vsyncpa [#allocation8], 0
    // Predicated region
    $region2: #{lstm_forward.1} parent=1 // pred_check
      _
    $region3: #{lstm_forward.1} parent=1 // pred_check_branch
      %18 = sbr.rel (0) target = $region5
    $region4: #{lstm_forward.1} parent=1 // pred_region
      _
    $region5: #{lstm_forward.1} parent=1 // pred_fallthru
      _
    // Predicated region
    $region6: #{lstm_forward.1} parent=1 // pred_check
      _
    $region7: #{lstm_forward.1} parent=1 // pred_check_branch
      %20 = sbr.rel (0) target = $region9
    $region8: #{lstm_forward.1} parent=1 // pred_region
      %s22 = ssub.s32 4096, 4096
      %23 = vsyncadd [#allocation3], %s22
      %s24 = sshll.u32 [#allocation2], 4
      %s25 = int_to_ptr.vmem [resolvable:$true] %s24
      %30 = dma.hbm_to_vmem [thread:$0]  %s1, 4096, %s25, [#allocation3], 256, 256, 16
    $region9: #{lstm_forward.1} parent=1 // pred_fallthru
      _
    // Predicated region
    $region10: #{lstm_forward.1} parent=1 // pred_check
      _
    $region11: #{lstm_forward.1} parent=1 // pred_check_branch
      %32 = sbr.rel (0) target = $region13
    $region12: #{lstm_forward.1} parent=1 // pred_region
      %s34 = ssub.s32 4096, 4096
      %35 = vsyncadd [#allocation5], %s34
      %s36 = sshll.u32 [#allocation4], 4
      %s37 = int_to_ptr.vmem [resolvable:$true] %s36
      %42 = dma.hbm_to_vmem [thread:$0]  %s2, 4096, %s37, [#allocation5], 256, 256, 16
    $region13: #{lstm_forward.1} parent=1 // pred_fallthru
      _
    // Predicated region
    $region14: #{lstm_forward.1} parent=1 // pred_check
      _
    $region15: #{lstm_forward.1} parent=1 // pred_check_branch
      %44 = sbr.rel (0) target = $region17
    $region16: #{lstm_forward.1} parent=1 // pred_region
      _
    $region17: #{lstm_forward.1} parent=1 // pred_fallthru
      _
    // Predicated region
    $region18: #{lstm_forward.1} parent=1 // pred_check
      _
    $region19: #{lstm_forward.1} parent=1 // pred_check_branch
      %46 = sbr.rel (0) target = $region21
    $region20: #{lstm_forward.1} parent=1 // pred_region
      %s48 = ssub.s32 4096, 4096
      %49 = vsyncadd [#allocation5], %s48
      %s50 = sshll.u32 [#allocation6], 4
      %s51 = int_to_ptr.vmem [resolvable:$true] %s50
      %56 = dma.hbm_to_vmem [thread:$0]  %s4, 4096, %s51, [#allocation5], 256, 256, 16
    $region21: #{lstm_forward.1} parent=1 // pred_fallthru
      _
    // Predicated region
    $region22: #{lstm_forward.1} parent=1 // pred_check
      _
    $region23: #{lstm_forward.1} parent=1 // pred_check_branch
      %58 = sbr.rel (0) target = $region25
    $region24: #{lstm_forward.1} parent=1 // pred_region
      %s60 = ssub.s32 4096, 4096
      %61 = vsyncadd [#allocation8], %s60
      %s62 = sshll.u32 [#allocation7], 4
      %s63 = int_to_ptr.vmem [resolvable:$true] %s62
      %68 = dma.hbm_to_vmem [thread:$0]  %s5, 4096, %s63, [#allocation8], 256, 256, 16
    $region25: #{lstm_forward.1} parent=1 // pred_fallthru
      _
    // Predicated region
    $region26: #{lstm_forward.1} parent=1 // pred_check
      _
    $region27: #{lstm_forward.1} parent=1 // pred_check_branch
      %70 = sbr.rel (0) target = $region29
    $region28: #{lstm_forward.1} parent=1 // pred_region
      _
    $region29: #{lstm_forward.1} parent=1 // pred_fallthru
      _
    // Predicated region
    $region30: #{lstm_forward.1} parent=1 // pred_check
      _
    $region31: #{lstm_forward.1} parent=1 // pred_check_branch
      %72 = sbr.rel (0) target = $region33
    $region32: #{lstm_forward.1} parent=1 // pred_region
      _
    $region33: #{lstm_forward.1} parent=1 // pred_fallthru
      _
    // Predicated region
    $region34: #{lstm_forward.1} parent=1 // pred_check
      _
    $region35: #{lstm_forward.1} parent=1 // pred_check_branch
      %74 = sbr.rel (0) target = $region37
    $region36: #{lstm_forward.1} parent=1 // pred_region
      _
    $region37: #{lstm_forward.1} parent=1 // pred_fallthru
      _
    // Predicated region
    $region38: #{lstm_forward.1} parent=1 // pred_check
      _
    $region39: #{lstm_forward.1} parent=1 // pred_check_branch
      %76 = sbr.rel (0) target = $region41
    $region40: #{lstm_forward.1} parent=1 // pred_region
      %77 = dma.done [#allocation3], 4096
    $region41: #{lstm_forward.1} parent=1 // pred_fallthru
      _
    // Predicated region
    $region42: #{lstm_forward.1} parent=1 // pred_check
      _
    $region43: #{lstm_forward.1} parent=1 // pred_check_branch
      %79 = sbr.rel (0) target = $region45
    $region44: #{lstm_forward.1} parent=1 // pred_region
      %80 = dma.done [#allocation5], 4096
    $region45: #{lstm_forward.1} parent=1 // pred_fallthru
      _
    // Predicated region
    $region46: #{lstm_forward.1} parent=1 // pred_check
      _
    $region47: #{lstm_forward.1} parent=1 // pred_check_branch
      %82 = sbr.rel (0) target = $region49
    $region48: #{lstm_forward.1} parent=1 // pred_region
      %83 = dma.done [#allocation5], 4096
    $region49: #{lstm_forward.1} parent=1 // pred_fallthru
      _
    // Predicated region
    $region50: #{lstm_forward.1} parent=1 // pred_check
      _
    $region51: #{lstm_forward.1} parent=1 // pred_check_branch
      %85 = sbr.rel (0) target = $region53
    $region52: #{lstm_forward.1} parent=1 // pred_region
      %86 = dma.done [#allocation8], 4096
    $region53: #{lstm_forward.1} parent=1 // pred_fallthru
      _
    %v88 = vld [vmem:[%s0] sm:$0xff]
    %v89 = vld [vmem:[%s0 + $0x8] sm:$0xff]
    %v90 = vld [vmem:[%s0 + $0x10] sm:$0xff]
    %v91 = vld [vmem:[%s0 + $0x18] sm:$0xff]
    %v92 = vld [vmem:[%s0 + $0x20] sm:$0xff]
    %v93 = vld [vmem:[%s0 + $0x28] sm:$0xff]
    %v94 = vld [vmem:[%s0 + $0x30] sm:$0xff]
    %v95 = vld [vmem:[%s0 + $0x38] sm:$0xff]
    %v96 = vpack.c.bf16 %v89, %v88
    %v97 = vpack.c.bf16 %v91, %v90
    %v98 = vpack.c.bf16 %v93, %v92
    %v99 = vpack.c.bf16 %v95, %v94
    %v100 = vld [vmem:[#allocation2] sm:$0xff]
    %v101 = vld [vmem:[#allocation2 + $0x8] sm:$0xff]
    %v102 = vld [vmem:[#allocation2 + $0x10] sm:$0xff]
    %v103 = vld [vmem:[#allocation2 + $0x18] sm:$0xff]
    %v104 = vld [vmem:[#allocation2 + $0x20] sm:$0xff]
    %v105 = vld [vmem:[#allocation2 + $0x28] sm:$0xff]
    %v106 = vld [vmem:[#allocation2 + $0x30] sm:$0xff]
    %v107 = vld [vmem:[#allocation2 + $0x38] sm:$0xff]
    %v108 = vld [vmem:[#allocation2 + $0x40] sm:$0xff]
    %v109 = vld [vmem:[#allocation2 + $0x48] sm:$0xff]
    %v110 = vld [vmem:[#allocation2 + $0x50] sm:$0xff]
    %v111 = vld [vmem:[#allocation2 + $0x58] sm:$0xff]
    %v112 = vld [vmem:[#allocation2 + $0x60] sm:$0xff]
    %v113 = vld [vmem:[#allocation2 + $0x68] sm:$0xff]
    %v114 = vld [vmem:[#allocation2 + $0x70] sm:$0xff]
    %v115 = vld [vmem:[#allocation2 + $0x78] sm:$0xff]
    %v116 = vld [vmem:[#allocation2 + $0x80] sm:$0xff]
    %v117 = vld [vmem:[#allocation2 + $0x88] sm:$0xff]
    %v118 = vld [vmem:[#allocation2 + $0x90] sm:$0xff]
    %v119 = vld [vmem:[#allocation2 + $0x98] sm:$0xff]
    %v120 = vld [vmem:[#allocation2 + $0xa0] sm:$0xff]
    %v121 = vld [vmem:[#allocation2 + $0xa8] sm:$0xff]
    %v122 = vld [vmem:[#allocation2 + $0xb0] sm:$0xff]
    %v123 = vld [vmem:[#allocation2 + $0xb8] sm:$0xff]
    %v124 = vld [vmem:[#allocation2 + $0xc0] sm:$0xff]
    %v125 = vld [vmem:[#allocation2 + $0xc8] sm:$0xff]
    %v126 = vld [vmem:[#allocation2 + $0xd0] sm:$0xff]
    %v127 = vld [vmem:[#allocation2 + $0xd8] sm:$0xff]
    %v128 = vld [vmem:[#allocation2 + $0xe0] sm:$0xff]
    %v129 = vld [vmem:[#allocation2 + $0xe8] sm:$0xff]
    %v130 = vld [vmem:[#allocation2 + $0xf0] sm:$0xff]
    %v131 = vld [vmem:[#allocation2 + $0xf8] sm:$0xff]
    %v132 = vld [vmem:[%s3] sm:$0xf]
    %v134 = vlaneseq
    %v135 = vshrl.u32 %v134, 7
    %v136 = vsub.s32 0, %v135
    %v137 = vrot.slane %v132, %v136
    %v138 = vlaneseq
    %v139 = vshrl.u32 %v138, 7
    %v140 = vsub.s32 1, %v139
    %v141 = vrot.slane %v132, %v140
    %v142 = vlaneseq
    %v143 = vshrl.u32 %v142, 7
    %v144 = vsub.s32 2, %v143
    %v145 = vrot.slane %v132, %v144
    %v146 = vlaneseq
    %v147 = vshrl.u32 %v146, 7
    %v148 = vsub.s32 3, %v147
    %v149 = vrot.slane %v132, %v148
    %v186 = vunpack.c.l.b16 %v100
    %v187 = vunpack.c.h.b16 %v100
    %v188 = vunpack.c.l.b16 %v101
    %v189 = vunpack.c.h.b16 %v101
    %v190 = vunpack.c.l.b16 %v102
    %v191 = vunpack.c.h.b16 %v102
    %v192 = vunpack.c.l.b16 %v103
    %v193 = vunpack.c.h.b16 %v103
    %v194 = vunpack.c.l.b16 %v104
    %v195 = vunpack.c.h.b16 %v104
    %v196 = vunpack.c.l.b16 %v105
    %v197 = vunpack.c.h.b16 %v105
    %v198 = vunpack.c.l.b16 %v106
    %v199 = vunpack.c.h.b16 %v106
    %v200 = vunpack.c.l.b16 %v107
    %v201 = vunpack.c.h.b16 %v107
    %v202 = vunpack.c.l.b16 %v108
    %v203 = vunpack.c.h.b16 %v108
    %v204 = vunpack.c.l.b16 %v109
    %v205 = vunpack.c.h.b16 %v109
    %v206 = vunpack.c.l.b16 %v110
    %v207 = vunpack.c.h.b16 %v110
    %v208 = vunpack.c.l.b16 %v111
    %v209 = vunpack.c.h.b16 %v111
    %v210 = vunpack.c.l.b16 %v112
    %v211 = vunpack.c.h.b16 %v112
    %v212 = vunpack.c.l.b16 %v113
    %v213 = vunpack.c.h.b16 %v113
    %v214 = vunpack.c.l.b16 %v114
    %v215 = vunpack.c.h.b16 %v114
    %v216 = vunpack.c.l.b16 %v115
    %v217 = vunpack.c.h.b16 %v115
    %v218 = vunpack.c.l.b16 %v116
    %v219 = vunpack.c.h.b16 %v116
    %v220 = vunpack.c.l.b16 %v117
    %v221 = vunpack.c.h.b16 %v117
    %v222 = vunpack.c.l.b16 %v118
    %v223 = vunpack.c.h.b16 %v118
    %v224 = vunpack.c.l.b16 %v119
    %v225 = vunpack.c.h.b16 %v119
    %v226 = vunpack.c.l.b16 %v120
    %v227 = vunpack.c.h.b16 %v120
    %v228 = vunpack.c.l.b16 %v121
    %v229 = vunpack.c.h.b16 %v121
    %v230 = vunpack.c.l.b16 %v122
    %v231 = vunpack.c.h.b16 %v122
    %v232 = vunpack.c.l.b16 %v123
    %v233 = vunpack.c.h.b16 %v123
    %v234 = vunpack.c.l.b16 %v124
    %v235 = vunpack.c.h.b16 %v124
    %v236 = vunpack.c.l.b16 %v125
    %v237 = vunpack.c.h.b16 %v125
    %v238 = vunpack.c.l.b16 %v126
    %v239 = vunpack.c.h.b16 %v126
    %v240 = vunpack.c.l.b16 %v127
    %v241 = vunpack.c.h.b16 %v127
    %v242 = vunpack.c.l.b16 %v128
    %v243 = vunpack.c.h.b16 %v128
    %v244 = vunpack.c.l.b16 %v129
    %v245 = vunpack.c.h.b16 %v129
    %v246 = vunpack.c.l.b16 %v130
    %v247 = vunpack.c.h.b16 %v130
    %v248 = vunpack.c.l.b16 %v131
    %v249 = vunpack.c.h.b16 %v131
    %v250 = vpack.c.b16 %v190, %v186
    %v251 = vpack.c.b16 %v191, %v187
    %v252 = vpack.c.b16 %v192, %v188
    %v253 = vpack.c.b16 %v193, %v189
    %v254 = vpack.c.b16 %v198, %v194
    %v255 = vpack.c.b16 %v199, %v195
    %v256 = vpack.c.b16 %v200, %v196
    %v257 = vpack.c.b16 %v201, %v197
    %v258 = vpack.c.b16 %v206, %v202
    %v259 = vpack.c.b16 %v207, %v203
    %v260 = vpack.c.b16 %v208, %v204
    %v261 = vpack.c.b16 %v209, %v205
    %v262 = vpack.c.b16 %v214, %v210
    %v263 = vpack.c.b16 %v215, %v211
    %v264 = vpack.c.b16 %v216, %v212
    %v265 = vpack.c.b16 %v217, %v213
    %v266 = vpack.c.b16 %v222, %v218
    %v267 = vpack.c.b16 %v223, %v219
    %v268 = vpack.c.b16 %v224, %v220
    %v269 = vpack.c.b16 %v225, %v221
    %v270 = vpack.c.b16 %v230, %v226
    %v271 = vpack.c.b16 %v231, %v227
    %v272 = vpack.c.b16 %v232, %v228
    %v273 = vpack.c.b16 %v233, %v229
    %v274 = vpack.c.b16 %v238, %v234
    %v275 = vpack.c.b16 %v239, %v235
    %v276 = vpack.c.b16 %v240, %v236
    %v277 = vpack.c.b16 %v241, %v237
    %v278 = vpack.c.b16 %v246, %v242
    %v279 = vpack.c.b16 %v247, %v243
    %v280 = vpack.c.b16 %v248, %v244
    %v281 = vpack.c.b16 %v249, %v245
    %314 = vmatprep.subr.bf16.mxu0 %v251
    %315 = vmatpush1.bf16.msra.mxu0 %v250
    %316 = vmatprep.subr.bf16.mxu0 %v255
    %317 = vmatpush1.bf16.msra.mxu0 %v254
    %318 = vmatprep.subr.bf16.mxu0 %v259
    %319 = vmatpush1.bf16.msra.mxu0 %v258
    %320 = vmatprep.subr.bf16.mxu0 %v263
    %321 = vmatpush1.bf16.msra.mxu0 %v262
    %322 = vmatprep.subr.bf16.mxu0 %v267
    %323 = vmatpush1.bf16.msra.mxu0 %v266
    %324 = vmatprep.subr.bf16.mxu0 %v271
    %325 = vmatpush1.bf16.msra.mxu0 %v270
    %326 = vmatprep.subr.bf16.mxu0 %v275
    %327 = vmatpush1.bf16.msra.mxu0 %v274
    %328 = vmatprep.subr.bf16.mxu0 %v279
    %329 = vmatpush1.bf16.msra.mxu0 %v278
    %330 = vmatprep.subr.bf16.mxu0 0
    %331 = vmatpush1.bf16.msra.mxu0 0
    %332 = vmatprep.subr.bf16.mxu0 0
    %333 = vmatpush1.bf16.msra.mxu0 0
    %334 = vmatprep.subr.bf16.mxu0 0
    %335 = vmatpush1.bf16.msra.mxu0 0
    %336 = vmatprep.subr.bf16.mxu0 0
    %337 = vmatpush1.bf16.msra.mxu0 0
    %338 = vmatprep.subr.bf16.mxu0 0
    %339 = vmatpush1.bf16.msra.mxu0 0
    %340 = vmatprep.subr.bf16.mxu0 0
    %341 = vmatpush1.bf16.msra.mxu0 0
    %342 = vmatprep.subr.bf16.mxu0 0
    %343 = vmatpush1.bf16.msra.mxu0 0
    %344 = vmatprep.subr.bf16.mxu0 0
    %345 = vmatpush1.bf16.msra.mxu0 0
    %346 = vmatprep.mubr.bf16.mxu0 0
    %347 = vmatmul.mubr.bf16.gmra.mrb[0].mxu0 %v96
    %v348 = vpop.f32.mrb[0].mxu0
    %v349 = vadd.f32 %v137, %v348
    %v350 = vpop.f32.mrb[0].mxu0
    %v351 = vadd.f32 %v141, %v350
    %v352 = vpop.f32.mrb[0].mxu0
    %v353 = vadd.f32 %v137, %v352
    %v354 = vpop.f32.mrb[0].mxu0
    %v355 = vadd.f32 %v141, %v354
    %356 = vmatprep.mubr.bf16.mxu0 0
    %357 = vmatmul.mubr.bf16.gmra.mrb[0].mxu0 %v97
    %v358 = vpop.f32.mrb[0].mxu0
    %v359 = vadd.f32 %v137, %v358
    %v360 = vpop.f32.mrb[0].mxu0
    %v361 = vadd.f32 %v141, %v360
    %v362 = vpop.f32.mrb[0].mxu0
    %v363 = vadd.f32 %v137, %v362
    %v364 = vpop.f32.mrb[0].mxu0
    %v365 = vadd.f32 %v141, %v364
    %366 = vmatprep.mubr.bf16.mxu0 0
    %367 = vmatmul.mubr.bf16.gmra.mrb[0].mxu0 %v98
    %v368 = vpop.f32.mrb[0].mxu0
    %v369 = vadd.f32 %v137, %v368
    %v370 = vpop.f32.mrb[0].mxu0
    %v371 = vadd.f32 %v141, %v370
    %v372 = vpop.f32.mrb[0].mxu0
    %v373 = vadd.f32 %v137, %v372
    %v374 = vpop.f32.mrb[0].mxu0
    %v375 = vadd.f32 %v141, %v374
    %376 = vmatprep.mubr.bf16.mxu0 0
    %377 = vmatmul.mubr.bf16.gmra.mrb[0].mxu0 %v99
    %v378 = vpop.f32.mrb[0].mxu0
    %v379 = vadd.f32 %v137, %v378
    %v380 = vpop.f32.mrb[0].mxu0
    %v381 = vadd.f32 %v141, %v380
    %v382 = vpop.f32.mrb[0].mxu0
    %v383 = vadd.f32 %v137, %v382
    %v384 = vpop.f32.mrb[0].mxu0
    %v385 = vadd.f32 %v141, %v384
    %386 = vdwg.mxu0
    %387 = vmatprep.subr.bf16.mxu0 %v253
    %388 = vmatpush1.bf16.msra.mxu0 %v252
    %389 = vmatprep.subr.bf16.mxu0 %v257
    %390 = vmatpush1.bf16.msra.mxu0 %v256
    %391 = vmatprep.subr.bf16.mxu0 %v261
    %392 = vmatpush1.bf16.msra.mxu0 %v260
    %393 = vmatprep.subr.bf16.mxu0 %v265
    %394 = vmatpush1.bf16.msra.mxu0 %v264
    %395 = vmatprep.subr.bf16.mxu0 %v269
    %396 = vmatpush1.bf16.msra.mxu0 %v268
    %397 = vmatprep.subr.bf16.mxu0 %v273
    %398 = vmatpush1.bf16.msra.mxu0 %v272
    %399 = vmatprep.subr.bf16.mxu0 %v277
    %400 = vmatpush1.bf16.msra.mxu0 %v276
    %401 = vmatprep.subr.bf16.mxu0 %v281
    %402 = vmatpush1.bf16.msra.mxu0 %v280
    %403 = vmatprep.subr.bf16.mxu0 0
    %404 = vmatpush1.bf16.msra.mxu0 0
    %405 = vmatprep.subr.bf16.mxu0 0
    %406 = vmatpush1.bf16.msra.mxu0 0
    %407 = vmatprep.subr.bf16.mxu0 0
    %408 = vmatpush1.bf16.msra.mxu0 0
    %409 = vmatprep.subr.bf16.mxu0 0
    %410 = vmatpush1.bf16.msra.mxu0 0
    %411 = vmatprep.subr.bf16.mxu0 0
    %412 = vmatpush1.bf16.msra.mxu0 0
    %413 = vmatprep.subr.bf16.mxu0 0
    %414 = vmatpush1.bf16.msra.mxu0 0
    %415 = vmatprep.subr.bf16.mxu0 0
    %416 = vmatpush1.bf16.msra.mxu0 0
    %417 = vmatprep.subr.bf16.mxu0 0
    %418 = vmatpush1.bf16.msra.mxu0 0
    %419 = vmatprep.mubr.bf16.mxu0 0
    %420 = vmatmul.mubr.bf16.gmra.mrb[0].mxu0 %v96
    %v421 = vpop.f32.mrb[0].mxu0
    %v422 = vadd.f32 %v145, %v421
    %v423 = vpop.f32.mrb[0].mxu0
    %v424 = vadd.f32 %v149, %v423
    %v425 = vpop.f32.mrb[0].mxu0
    %v426 = vadd.f32 %v145, %v425
    %v427 = vpop.f32.mrb[0].mxu0
    %v428 = vadd.f32 %v149, %v427
    %429 = vmatprep.mubr.bf16.mxu0 0
    %430 = vmatmul.mubr.bf16.gmra.mrb[0].mxu0 %v97
    %v431 = vpop.f32.mrb[0].mxu0
    %v432 = vadd.f32 %v145, %v431
    %v433 = vpop.f32.mrb[0].mxu0
    %v434 = vadd.f32 %v149, %v433
    %v435 = vpop.f32.mrb[0].mxu0
    %v436 = vadd.f32 %v145, %v435
    %v437 = vpop.f32.mrb[0].mxu0
    %v438 = vadd.f32 %v149, %v437
    %439 = vmatprep.mubr.bf16.mxu0 0
    %440 = vmatmul.mubr.bf16.gmra.mrb[0].mxu0 %v98
    %v441 = vpop.f32.mrb[0].mxu0
    %v442 = vadd.f32 %v145, %v441
    %v443 = vpop.f32.mrb[0].mxu0
    %v444 = vadd.f32 %v149, %v443
    %v445 = vpop.f32.mrb[0].mxu0
    %v446 = vadd.f32 %v145, %v445
    %v447 = vpop.f32.mrb[0].mxu0
    %v448 = vadd.f32 %v149, %v447
    %449 = vmatprep.mubr.bf16.mxu0 0
    %450 = vmatmul.mubr.bf16.gmra.mrb[0].mxu0 %v99
    %v451 = vpop.f32.mrb[0].mxu0
    %v452 = vadd.f32 %v145, %v451
    %v453 = vpop.f32.mrb[0].mxu0
    %v454 = vadd.f32 %v149, %v453
    %v455 = vpop.f32.mrb[0].mxu0
    %v456 = vadd.f32 %v145, %v455
    %v457 = vpop.f32.mrb[0].mxu0
    %v458 = vadd.f32 %v149, %v457
    %459 = vdwg.mxu0
    %v460 = vld [vmem:[#allocation4] sm:$0xff]
    %v461 = vld [vmem:[#allocation4 + $0x8] sm:$0xff]
    %v462 = vld [vmem:[#allocation4 + $0x10] sm:$0xff]
    %v463 = vld [vmem:[#allocation4 + $0x18] sm:$0xff]
    %v464 = vld [vmem:[#allocation4 + $0x20] sm:$0xff]
    %v465 = vld [vmem:[#allocation4 + $0x28] sm:$0xff]
    %v466 = vld [vmem:[#allocation4 + $0x30] sm:$0xff]
    %v467 = vld [vmem:[#allocation4 + $0x38] sm:$0xff]
    %v468 = vld [vmem:[#allocation4 + $0x40] sm:$0xff]
    %v469 = vld [vmem:[#allocation4 + $0x48] sm:$0xff]
    %v470 = vld [vmem:[#allocation4 + $0x50] sm:$0xff]
    %v471 = vld [vmem:[#allocation4 + $0x58] sm:$0xff]
    %v472 = vld [vmem:[#allocation4 + $0x60] sm:$0xff]
    %v473 = vld [vmem:[#allocation4 + $0x68] sm:$0xff]
    %v474 = vld [vmem:[#allocation4 + $0x70] sm:$0xff]
    %v475 = vld [vmem:[#allocation4 + $0x78] sm:$0xff]
    %v476 = vld [vmem:[#allocation4 + $0x80] sm:$0xff]
    %v477 = vld [vmem:[#allocation4 + $0x88] sm:$0xff]
    %v478 = vld [vmem:[#allocation4 + $0x90] sm:$0xff]
    %v479 = vld [vmem:[#allocation4 + $0x98] sm:$0xff]
    %v480 = vld [vmem:[#allocation4 + $0xa0] sm:$0xff]
    %v481 = vld [vmem:[#allocation4 + $0xa8] sm:$0xff]
    %v482 = vld [vmem:[#allocation4 + $0xb0] sm:$0xff]
    %v483 = vld [vmem:[#allocation4 + $0xb8] sm:$0xff]
    %v484 = vld [vmem:[#allocation4 + $0xc0] sm:$0xff]
    %v485 = vld [vmem:[#allocation4 + $0xc8] sm:$0xff]
    %v486 = vld [vmem:[#allocation4 + $0xd0] sm:$0xff]
    %v487 = vld [vmem:[#allocation4 + $0xd8] sm:$0xff]
    %v488 = vld [vmem:[#allocation4 + $0xe0] sm:$0xff]
    %v489 = vld [vmem:[#allocation4 + $0xe8] sm:$0xff]
    %v490 = vld [vmem:[#allocation4 + $0xf0] sm:$0xff]
    %v491 = vld [vmem:[#allocation4 + $0xf8] sm:$0xff]
    %v524 = vunpack.c.l.b16 %v460
    %v525 = vunpack.c.h.b16 %v460
    %v526 = vunpack.c.l.b16 %v461
    %v527 = vunpack.c.h.b16 %v461
    %v528 = vunpack.c.l.b16 %v462
    %v529 = vunpack.c.h.b16 %v462
    %v530 = vunpack.c.l.b16 %v463
    %v531 = vunpack.c.h.b16 %v463
    %v532 = vunpack.c.l.b16 %v464
    %v533 = vunpack.c.h.b16 %v464
    %v534 = vunpack.c.l.b16 %v465
    %v535 = vunpack.c.h.b16 %v465
    %v536 = vunpack.c.l.b16 %v466
    %v537 = vunpack.c.h.b16 %v466
    %v538 = vunpack.c.l.b16 %v467
    %v539 = vunpack.c.h.b16 %v467
    %v540 = vunpack.c.l.b16 %v468
    %v541 = vunpack.c.h.b16 %v468
    %v542 = vunpack.c.l.b16 %v469
    %v543 = vunpack.c.h.b16 %v469
    %v544 = vunpack.c.l.b16 %v470
    %v545 = vunpack.c.h.b16 %v470
    %v546 = vunpack.c.l.b16 %v471
    %v547 = vunpack.c.h.b16 %v471
    %v548 = vunpack.c.l.b16 %v472
    %v549 = vunpack.c.h.b16 %v472
    %v550 = vunpack.c.l.b16 %v473
    %v551 = vunpack.c.h.b16 %v473
    %v552 = vunpack.c.l.b16 %v474
    %v553 = vunpack.c.h.b16 %v474
    %v554 = vunpack.c.l.b16 %v475
    %v555 = vunpack.c.h.b16 %v475
    %v556 = vunpack.c.l.b16 %v476
    %v557 = vunpack.c.h.b16 %v476
    %v558 = vunpack.c.l.b16 %v477
    %v559 = vunpack.c.h.b16 %v477
    %v560 = vunpack.c.l.b16 %v478
    %v561 = vunpack.c.h.b16 %v478
    %v562 = vunpack.c.l.b16 %v479
    %v563 = vunpack.c.h.b16 %v479
    %v564 = vunpack.c.l.b16 %v480
    %v565 = vunpack.c.h.b16 %v480
    %v566 = vunpack.c.l.b16 %v481
    %v567 = vunpack.c.h.b16 %v481
    %v568 = vunpack.c.l.b16 %v482
    %v569 = vunpack.c.h.b16 %v482
    %v570 = vunpack.c.l.b16 %v483
    %v571 = vunpack.c.h.b16 %v483
    %v572 = vunpack.c.l.b16 %v484
    %v573 = vunpack.c.h.b16 %v484
    %v574 = vunpack.c.l.b16 %v485
    %v575 = vunpack.c.h.b16 %v485
    %v576 = vunpack.c.l.b16 %v486
    %v577 = vunpack.c.h.b16 %v486
    %v578 = vunpack.c.l.b16 %v487
    %v579 = vunpack.c.h.b16 %v487
    %v580 = vunpack.c.l.b16 %v488
    %v581 = vunpack.c.h.b16 %v488
    %v582 = vunpack.c.l.b16 %v489
    %v583 = vunpack.c.h.b16 %v489
    %v584 = vunpack.c.l.b16 %v490
    %v585 = vunpack.c.h.b16 %v490
    %v586 = vunpack.c.l.b16 %v491
    %v587 = vunpack.c.h.b16 %v491
    %v588 = vpack.c.b16 %v528, %v524
    %v589 = vpack.c.b16 %v529, %v525
    %v590 = vpack.c.b16 %v530, %v526
    %v591 = vpack.c.b16 %v531, %v527
    %v592 = vpack.c.b16 %v536, %v532
    %v593 = vpack.c.b16 %v537, %v533
    %v594 = vpack.c.b16 %v538, %v534
    %v595 = vpack.c.b16 %v539, %v535
    %v596 = vpack.c.b16 %v544, %v540
    %v597 = vpack.c.b16 %v545, %v541
    %v598 = vpack.c.b16 %v546, %v542
    %v599 = vpack.c.b16 %v547, %v543
    %v600 = vpack.c.b16 %v552, %v548
    %v601 = vpack.c.b16 %v553, %v549
    %v602 = vpack.c.b16 %v554, %v550
    %v603 = vpack.c.b16 %v555, %v551
    %v604 = vpack.c.b16 %v560, %v556
    %v605 = vpack.c.b16 %v561, %v557
    %v606 = vpack.c.b16 %v562, %v558
    %v607 = vpack.c.b16 %v563, %v559
    %v608 = vpack.c.b16 %v568, %v564
    %v609 = vpack.c.b16 %v569, %v565
    %v610 = vpack.c.b16 %v570, %v566
    %v611 = vpack.c.b16 %v571, %v567
    %v612 = vpack.c.b16 %v576, %v572
    %v613 = vpack.c.b16 %v577, %v573
    %v614 = vpack.c.b16 %v578, %v574
    %v615 = vpack.c.b16 %v579, %v575
    %v616 = vpack.c.b16 %v584, %v580
    %v617 = vpack.c.b16 %v585, %v581
    %v618 = vpack.c.b16 %v586, %v582
    %v619 = vpack.c.b16 %v587, %v583
    %652 = vmatprep.subr.bf16.mxu0 %v589
    %653 = vmatpush1.bf16.msra.mxu0 %v588
    %654 = vmatprep.subr.bf16.mxu0 %v593
    %655 = vmatpush1.bf16.msra.mxu0 %v592
    %656 = vmatprep.subr.bf16.mxu0 %v597
    %657 = vmatpush1.bf16.msra.mxu0 %v596
    %658 = vmatprep.subr.bf16.mxu0 %v601
    %659 = vmatpush1.bf16.msra.mxu0 %v600
    %660 = vmatprep.subr.bf16.mxu0 %v605
    %661 = vmatpush1.bf16.msra.mxu0 %v604
    %662 = vmatprep.subr.bf16.mxu0 %v609
    %663 = vmatpush1.bf16.msra.mxu0 %v608
    %664 = vmatprep.subr.bf16.mxu0 %v613
    %665 = vmatpush1.bf16.msra.mxu0 %v612
    %666 = vmatprep.subr.bf16.mxu0 %v617
    %667 = vmatpush1.bf16.msra.mxu0 %v616
    %668 = vmatprep.subr.bf16.mxu0 0
    %669 = vmatpush1.bf16.msra.mxu0 0
    %670 = vmatprep.subr.bf16.mxu0 0
    %671 = vmatpush1.bf16.msra.mxu0 0
    %672 = vmatprep.subr.bf16.mxu0 0
    %673 = vmatpush1.bf16.msra.mxu0 0
    %674 = vmatprep.subr.bf16.mxu0 0
    %675 = vmatpush1.bf16.msra.mxu0 0
    %676 = vmatprep.subr.bf16.mxu0 0
    %677 = vmatpush1.bf16.msra.mxu0 0
    %678 = vmatprep.subr.bf16.mxu0 0
    %679 = vmatpush1.bf16.msra.mxu0 0
    %680 = vmatprep.subr.bf16.mxu0 0
    %681 = vmatpush1.bf16.msra.mxu0 0
    %682 = vmatprep.subr.bf16.mxu0 0
    %683 = vmatpush1.bf16.msra.mxu0 0
    %684 = vmatprep.mubr.bf16.mxu0 0
    %685 = vmatmul.mubr.bf16.gmra.mrb[0].mxu0 0
    %v686 = vpop.f32.mrb[0].mxu0
    %v687 = vadd.f32 0.0, %v686
    %v688 = vpop.f32.mrb[0].mxu0
    %v689 = vadd.f32 0.0, %v688
    %v690 = vpop.f32.mrb[0].mxu0
    %v691 = vpop.f32.mrb[0].mxu0
    %692 = vdwg.mxu0
    %693 = vmatprep.subr.bf16.mxu0 %v591
    %694 = vmatpush1.bf16.msra.mxu0 %v590
    %695 = vmatprep.subr.bf16.mxu0 %v595
    %696 = vmatpush1.bf16.msra.mxu0 %v594
    %697 = vmatprep.subr.bf16.mxu0 %v599
    %698 = vmatpush1.bf16.msra.mxu0 %v598
    %699 = vmatprep.subr.bf16.mxu0 %v603
    %700 = vmatpush1.bf16.msra.mxu0 %v602
    %701 = vmatprep.subr.bf16.mxu0 %v607
    %702 = vmatpush1.bf16.msra.mxu0 %v606
    %703 = vmatprep.subr.bf16.mxu0 %v611
    %704 = vmatpush1.bf16.msra.mxu0 %v610
    %705 = vmatprep.subr.bf16.mxu0 %v615
    %706 = vmatpush1.bf16.msra.mxu0 %v614
    %707 = vmatprep.subr.bf16.mxu0 %v619
    %708 = vmatpush1.bf16.msra.mxu0 %v618
    %709 = vmatprep.subr.bf16.mxu0 0
    %710 = vmatpush1.bf16.msra.mxu0 0
    %711 = vmatprep.subr.bf16.mxu0 0
    %712 = vmatpush1.bf16.msra.mxu0 0
    %713 = vmatprep.subr.bf16.mxu0 0
    %714 = vmatpush1.bf16.msra.mxu0 0
    %715 = vmatprep.subr.bf16.mxu0 0
    %716 = vmatpush1.bf16.msra.mxu0 0
    %717 = vmatprep.subr.bf16.mxu0 0
    %718 = vmatpush1.bf16.msra.mxu0 0
    %719 = vmatprep.subr.bf16.mxu0 0
    %720 = vmatpush1.bf16.msra.mxu0 0
    %721 = vmatprep.subr.bf16.mxu0 0
    %722 = vmatpush1.bf16.msra.mxu0 0
    %723 = vmatprep.subr.bf16.mxu0 0
    %724 = vmatpush1.bf16.msra.mxu0 0
    %725 = vmatprep.mubr.bf16.mxu0 0
    %726 = vmatmul.mubr.bf16.gmra.mrb[0].mxu0 0
    %v727 = vpop.f32.mrb[0].mxu0
    %v728 = vadd.f32 0.0, %v727
    %v729 = vpop.f32.mrb[0].mxu0
    %v730 = vadd.f32 0.0, %v729
    %v731 = vpop.f32.mrb[0].mxu0
    %v732 = vpop.f32.mrb[0].mxu0
    %733 = vdwg.mxu0
    %v734 = vadd.f32 %v349, %v687
    %v735 = vadd.f32 %v351, %v689
    %v736 = vadd.f32 %v422, %v728
    %v737 = vadd.f32 %v424, %v730
    %v738 = vxor.u32 %v734, 2147483648
    %v739 = vxor.u32 %v735, 2147483648
    %v740 = vxor.u32 %v736, 2147483648
    %v741 = vmul.f32 %v738, 1.442695
    %v742 = vpow.pop %v741
    %v743 = vmul.f32 %v739, 1.442695
    %v744 = vpow.pop %v743
    %v745 = vmul.f32 %v740, 1.442695
    %v746 = vpow.pop %v745
    %v747 = vadd.f32 %v742, 1.0
    %v748 = vadd.f32 %v744, 1.0
    %v749 = vadd.f32 %v746, 1.0
    %v750 = vrcp.pop %v747
    %v751 = vmul.f32 1.0, %v750
    %v752 = vrcp.pop %v748
    %v753 = vmul.f32 1.0, %v752
    %v754 = vrcp.pop %v749
    %v755 = vmul.f32 1.0, %v754
    %v756 = vtanh.pop %v737
    %v757 = vmul.f32 %v753, 0.0
    %v758 = vmul.f32 %v751, %v756
    %v759 = vadd.f32 %v757, %v758
    %v760 = vtanh.pop %v759
    %v761 = vmul.f32 %v755, %v760
    %v762 = vld [vmem:[%s6] sm:$0xf]
    %v763 = vpack.c.bf16 %v761, %v761
    %v764 = vld [vmem:[#allocation6] sm:$0xff]
    %v765 = vld [vmem:[#allocation6 + $0x8] sm:$0xff]
    %v766 = vld [vmem:[#allocation6 + $0x10] sm:$0xff]
    %v767 = vld [vmem:[#allocation6 + $0x18] sm:$0xff]
    %v768 = vld [vmem:[#allocation6 + $0x20] sm:$0xff]
    %v769 = vld [vmem:[#allocation6 + $0x28] sm:$0xff]
    %v770 = vld [vmem:[#allocation6 + $0x30] sm:$0xff]
    %v771 = vld [vmem:[#allocation6 + $0x38] sm:$0xff]
    %v772 = vld [vmem:[#allocation6 + $0x40] sm:$0xff]
    %v773 = vld [vmem:[#allocation6 + $0x48] sm:$0xff]
    %v774 = vld [vmem:[#allocation6 + $0x50] sm:$0xff]
    %v775 = vld [vmem:[#allocation6 + $0x58] sm:$0xff]
    %v776 = vld [vmem:[#allocation6 + $0x60] sm:$0xff]
    %v777 = vld [vmem:[#allocation6 + $0x68] sm:$0xff]
    %v778 = vld [vmem:[#allocation6 + $0x70] sm:$0xff]
    %v779 = vld [vmem:[#allocation6 + $0x78] sm:$0xff]
    %v780 = vld [vmem:[#allocation6 + $0x80] sm:$0xff]
    %v781 = vld [vmem:[#allocation6 + $0x88] sm:$0xff]
    %v782 = vld [vmem:[#allocation6 + $0x90] sm:$0xff]
    %v783 = vld [vmem:[#allocation6 + $0x98] sm:$0xff]
    %v784 = vld [vmem:[#allocation6 + $0xa0] sm:$0xff]
    %v785 = vld [vmem:[#allocation6 + $0xa8] sm:$0xff]
    %v786 = vld [vmem:[#allocation6 + $0xb0] sm:$0xff]
    %v787 = vld [vmem:[#allocation6 + $0xb8] sm:$0xff]
    %v788 = vld [vmem:[#allocation6 + $0xc0] sm:$0xff]
    %v789 = vld [vmem:[#allocation6 + $0xc8] sm:$0xff]
    %v790 = vld [vmem:[#allocation6 + $0xd0] sm:$0xff]
    %v791 = vld [vmem:[#allocation6 + $0xd8] sm:$0xff]
    %v792 = vld [vmem:[#allocation6 + $0xe0] sm:$0xff]
    %v793 = vld [vmem:[#allocation6 + $0xe8] sm:$0xff]
    %v794 = vld [vmem:[#allocation6 + $0xf0] sm:$0xff]
    %v795 = vld [vmem:[#allocation6 + $0xf8] sm:$0xff]
    %v828 = vunpack.c.l.b16 %v764
    %v829 = vunpack.c.h.b16 %v764
    %v830 = vunpack.c.l.b16 %v765
    %v831 = vunpack.c.h.b16 %v765
    %v832 = vunpack.c.l.b16 %v766
    %v833 = vunpack.c.h.b16 %v766
    %v834 = vunpack.c.l.b16 %v767
    %v835 = vunpack.c.h.b16 %v767
    %v836 = vunpack.c.l.b16 %v768
    %v837 = vunpack.c.h.b16 %v768
    %v838 = vunpack.c.l.b16 %v769
    %v839 = vunpack.c.h.b16 %v769
    %v840 = vunpack.c.l.b16 %v770
    %v841 = vunpack.c.h.b16 %v770
    %v842 = vunpack.c.l.b16 %v771
    %v843 = vunpack.c.h.b16 %v771
    %v844 = vunpack.c.l.b16 %v772
    %v845 = vunpack.c.h.b16 %v772
    %v846 = vunpack.c.l.b16 %v773
    %v847 = vunpack.c.h.b16 %v773
    %v848 = vunpack.c.l.b16 %v774
    %v849 = vunpack.c.h.b16 %v774
    %v850 = vunpack.c.l.b16 %v775
    %v851 = vunpack.c.h.b16 %v775
    %v852 = vunpack.c.l.b16 %v776
    %v853 = vunpack.c.h.b16 %v776
    %v854 = vunpack.c.l.b16 %v777
    %v855 = vunpack.c.h.b16 %v777
    %v856 = vunpack.c.l.b16 %v778
    %v857 = vunpack.c.h.b16 %v778
    %v858 = vunpack.c.l.b16 %v779
    %v859 = vunpack.c.h.b16 %v779
    %v860 = vunpack.c.l.b16 %v780
    %v861 = vunpack.c.h.b16 %v780
    %v862 = vunpack.c.l.b16 %v781
    %v863 = vunpack.c.h.b16 %v781
    %v864 = vunpack.c.l.b16 %v782
    %v865 = vunpack.c.h.b16 %v782
    %v866 = vunpack.c.l.b16 %v783
    %v867 = vunpack.c.h.b16 %v783
    %v868 = vunpack.c.l.b16 %v784
    %v869 = vunpack.c.h.b16 %v784
    %v870 = vunpack.c.l.b16 %v785
    %v871 = vunpack.c.h.b16 %v785
    %v872 = vunpack.c.l.b16 %v786
    %v873 = vunpack.c.h.b16 %v786
    %v874 = vunpack.c.l.b16 %v787
    %v875 = vunpack.c.h.b16 %v787
    %v876 = vunpack.c.l.b16 %v788
    %v877 = vunpack.c.h.b16 %v788
    %v878 = vunpack.c.l.b16 %v789
    %v879 = vunpack.c.h.b16 %v789
    %v880 = vunpack.c.l.b16 %v790
    %v881 = vunpack.c.h.b16 %v790
    %v882 = vunpack.c.l.b16 %v791
    %v883 = vunpack.c.h.b16 %v791
    %v884 = vunpack.c.l.b16 %v792
    %v885 = vunpack.c.h.b16 %v792
    %v886 = vunpack.c.l.b16 %v793
    %v887 = vunpack.c.h.b16 %v793
    %v888 = vunpack.c.l.b16 %v794
    %v889 = vunpack.c.h.b16 %v794
    %v890 = vunpack.c.l.b16 %v795
    %v891 = vunpack.c.h.b16 %v795
    %v892 = vpack.c.b16 %v832, %v828
    %v893 = vpack.c.b16 %v833, %v829
    %v894 = vpack.c.b16 %v834, %v830
    %v895 = vpack.c.b16 %v835, %v831
    %v896 = vpack.c.b16 %v840, %v836
    %v897 = vpack.c.b16 %v841, %v837
    %v898 = vpack.c.b16 %v842, %v838
    %v899 = vpack.c.b16 %v843, %v839
    %v900 = vpack.c.b16 %v848, %v844
    %v901 = vpack.c.b16 %v849, %v845
    %v902 = vpack.c.b16 %v850, %v846
    %v903 = vpack.c.b16 %v851, %v847
    %v904 = vpack.c.b16 %v856, %v852
    %v905 = vpack.c.b16 %v857, %v853
    %v906 = vpack.c.b16 %v858, %v854
    %v907 = vpack.c.b16 %v859, %v855
    %v908 = vpack.c.b16 %v864, %v860
    %v909 = vpack.c.b16 %v865, %v861
    %v910 = vpack.c.b16 %v866, %v862
    %v911 = vpack.c.b16 %v867, %v863
    %v912 = vpack.c.b16 %v872, %v868
    %v913 = vpack.c.b16 %v873, %v869
    %v914 = vpack.c.b16 %v874, %v870
    %v915 = vpack.c.b16 %v875, %v871
    %v916 = vpack.c.b16 %v880, %v876
    %v917 = vpack.c.b16 %v881, %v877
    %v918 = vpack.c.b16 %v882, %v878
    %v919 = vpack.c.b16 %v883, %v879
    %v920 = vpack.c.b16 %v888, %v884
    %v921 = vpack.c.b16 %v889, %v885
    %v922 = vpack.c.b16 %v890, %v886
    %v923 = vpack.c.b16 %v891, %v887
    %956 = vmatprep.subr.bf16.mxu0 %v893
    %957 = vmatpush1.bf16.msra.mxu0 %v892
    %958 = vmatprep.subr.bf16.mxu0 %v897
    %959 = vmatpush1.bf16.msra.mxu0 %v896
    %960 = vmatprep.subr.bf16.mxu0 %v901
    %961 = vmatpush1.bf16.msra.mxu0 %v900
    %962 = vmatprep.subr.bf16.mxu0 %v905
    %963 = vmatpush1.bf16.msra.mxu0 %v904
    %964 = vmatprep.subr.bf16.mxu0 %v909
    %965 = vmatpush1.bf16.msra.mxu0 %v908
    %966 = vmatprep.subr.bf16.mxu0 %v913
    %967 = vmatpush1.bf16.msra.mxu0 %v912
    %968 = vmatprep.subr.bf16.mxu0 %v917
    %969 = vmatpush1.bf16.msra.mxu0 %v916
    %970 = vmatprep.subr.bf16.mxu0 %v921
    %971 = vmatpush1.bf16.msra.mxu0 %v920
    %972 = vmatprep.subr.bf16.mxu0 0
    %973 = vmatpush1.bf16.msra.mxu0 0
    %974 = vmatprep.subr.bf16.mxu0 0
    %975 = vmatpush1.bf16.msra.mxu0 0
    %976 = vmatprep.subr.bf16.mxu0 0
    %977 = vmatpush1.bf16.msra.mxu0 0
    %978 = vmatprep.subr.bf16.mxu0 0
    %979 = vmatpush1.bf16.msra.mxu0 0
    %980 = vmatprep.subr.bf16.mxu0 0
    %981 = vmatpush1.bf16.msra.mxu0 0
    %982 = vmatprep.subr.bf16.mxu0 0
    %983 = vmatpush1.bf16.msra.mxu0 0
    %984 = vmatprep.subr.bf16.mxu0 0
    %985 = vmatpush1.bf16.msra.mxu0 0
    %986 = vmatprep.subr.bf16.mxu0 0
    %987 = vmatpush1.bf16.msra.mxu0 0
    %988 = vmatprep.mubr.bf16.mxu0 0
    %989 = vmatmul.mubr.bf16.gmra.mrb[0].mxu0 %v763
    %v990 = vpop.f32.mrb[0].mxu0
    %v991 = vadd.f32 0.0, %v990
    %v992 = vpop.f32.mrb[0].mxu0
    %v993 = vadd.f32 0.0, %v992
    %v994 = vpop.f32.mrb[0].mxu0
    %v995 = vpop.f32.mrb[0].mxu0
    %996 = vdwg.mxu0
    %997 = vmatprep.subr.bf16.mxu0 %v895
    %998 = vmatpush1.bf16.msra.mxu0 %v894
    %999 = vmatprep.subr.bf16.mxu0 %v899
    %1000 = vmatpush1.bf16.msra.mxu0 %v898
    %1001 = vmatprep.subr.bf16.mxu0 %v903
    %1002 = vmatpush1.bf16.msra.mxu0 %v902
    %1003 = vmatprep.subr.bf16.mxu0 %v907
    %1004 = vmatpush1.bf16.msra.mxu0 %v906
    %1005 = vmatprep.subr.bf16.mxu0 %v911
    %1006 = vmatpush1.bf16.msra.mxu0 %v910
    %1007 = vmatprep.subr.bf16.mxu0 %v915
    %1008 = vmatpush1.bf16.msra.mxu0 %v914
    %1009 = vmatprep.subr.bf16.mxu0 %v919
    %1010 = vmatpush1.bf16.msra.mxu0 %v918
    %1011 = vmatprep.subr.bf16.mxu0 %v923
    %1012 = vmatpush1.bf16.msra.mxu0 %v922
    %1013 = vmatprep.subr.bf16.mxu0 0
    %1014 = vmatpush1.bf16.msra.mxu0 0
    %1015 = vmatprep.subr.bf16.mxu0 0
    %1016 = vmatpush1.bf16.msra.mxu0 0
    %1017 = vmatprep.subr.bf16.mxu0 0
    %1018 = vmatpush1.bf16.msra.mxu0 0
    %1019 = vmatprep.subr.bf16.mxu0 0
    %1020 = vmatpush1.bf16.msra.mxu0 0
    %1021 = vmatprep.subr.bf16.mxu0 0
    %1022 = vmatpush1.bf16.msra.mxu0 0
    %1023 = vmatprep.subr.bf16.mxu0 0
    %1024 = vmatpush1.bf16.msra.mxu0 0
    %1025 = vmatprep.subr.bf16.mxu0 0
    %1026 = vmatpush1.bf16.msra.mxu0 0
    %1027 = vmatprep.subr.bf16.mxu0 0
    %1028 = vmatpush1.bf16.msra.mxu0 0
    %1029 = vmatprep.mubr.bf16.mxu0 0
    %1030 = vmatmul.mubr.bf16.gmra.mrb[0].mxu0 %v763
    %v1031 = vpop.f32.mrb[0].mxu0
    %v1032 = vadd.f32 0.0, %v1031
    %v1033 = vpop.f32.mrb[0].mxu0
    %v1034 = vadd.f32 0.0, %v1033
    %v1035 = vpop.f32.mrb[0].mxu0
    %v1036 = vpop.f32.mrb[0].mxu0
    %1037 = vdwg.mxu0
    %v1039 = vlaneseq
    %v1040 = vshrl.u32 %v1039, 7
    %v1041 = vsub.s32 0, %v1040
    %v1042 = vrot.slane %v762, %v1041
    %v1043 = vlaneseq
    %v1044 = vshrl.u32 %v1043, 7
    %v1045 = vsub.s32 1, %v1044
    %v1046 = vrot.slane %v762, %v1045
    %v1047 = vlaneseq
    %v1048 = vshrl.u32 %v1047, 7
    %v1049 = vsub.s32 2, %v1048
    %v1050 = vrot.slane %v762, %v1049
    %v1051 = vlaneseq
    %v1052 = vshrl.u32 %v1051, 7
    %v1053 = vsub.s32 3, %v1052
    %v1054 = vrot.slane %v762, %v1053
    %v1059 = vadd.f32 %v1042, %v991
    %v1060 = vadd.f32 %v1046, %v993
    %v1061 = vadd.f32 %v1050, %v1032
    %v1062 = vadd.f32 %v1054, %v1034
    %v1063 = vld [vmem:[#allocation7] sm:$0xff]
    %v1064 = vld [vmem:[#allocation7 + $0x8] sm:$0xff]
    %v1065 = vld [vmem:[#allocation7 + $0x10] sm:$0xff]
    %v1066 = vld [vmem:[#allocation7 + $0x18] sm:$0xff]
    %v1067 = vld [vmem:[#allocation7 + $0x20] sm:$0xff]
    %v1068 = vld [vmem:[#allocation7 + $0x28] sm:$0xff]
    %v1069 = vld [vmem:[#allocation7 + $0x30] sm:$0xff]
    %v1070 = vld [vmem:[#allocation7 + $0x38] sm:$0xff]
    %v1071 = vld [vmem:[#allocation7 + $0x40] sm:$0xff]
    %v1072 = vld [vmem:[#allocation7 + $0x48] sm:$0xff]
    %v1073 = vld [vmem:[#allocation7 + $0x50] sm:$0xff]
    %v1074 = vld [vmem:[#allocation7 + $0x58] sm:$0xff]
    %v1075 = vld [vmem:[#allocation7 + $0x60] sm:$0xff]
    %v1076 = vld [vmem:[#allocation7 + $0x68] sm:$0xff]
    %v1077 = vld [vmem:[#allocation7 + $0x70] sm:$0xff]
    %v1078 = vld [vmem:[#allocation7 + $0x78] sm:$0xff]
    %v1079 = vld [vmem:[#allocation7 + $0x80] sm:$0xff]
    %v1080 = vld [vmem:[#allocation7 + $0x88] sm:$0xff]
    %v1081 = vld [vmem:[#allocation7 + $0x90] sm:$0xff]
    %v1082 = vld [vmem:[#allocation7 + $0x98] sm:$0xff]
    %v1083 = vld [vmem:[#allocation7 + $0xa0] sm:$0xff]
    %v1084 = vld [vmem:[#allocation7 + $0xa8] sm:$0xff]
    %v1085 = vld [vmem:[#allocation7 + $0xb0] sm:$0xff]
    %v1086 = vld [vmem:[#allocation7 + $0xb8] sm:$0xff]
    %v1087 = vld [vmem:[#allocation7 + $0xc0] sm:$0xff]
    %v1088 = vld [vmem:[#allocation7 + $0xc8] sm:$0xff]
    %v1089 = vld [vmem:[#allocation7 + $0xd0] sm:$0xff]
    %v1090 = vld [vmem:[#allocation7 + $0xd8] sm:$0xff]
    %v1091 = vld [vmem:[#allocation7 + $0xe0] sm:$0xff]
    %v1092 = vld [vmem:[#allocation7 + $0xe8] sm:$0xff]
    %v1093 = vld [vmem:[#allocation7 + $0xf0] sm:$0xff]
    %v1094 = vld [vmem:[#allocation7 + $0xf8] sm:$0xff]
    %v1127 = vunpack.c.l.b16 %v1063
    %v1128 = vunpack.c.h.b16 %v1063
    %v1129 = vunpack.c.l.b16 %v1064
    %v1130 = vunpack.c.h.b16 %v1064
    %v1131 = vunpack.c.l.b16 %v1065
    %v1132 = vunpack.c.h.b16 %v1065
    %v1133 = vunpack.c.l.b16 %v1066
    %v1134 = vunpack.c.h.b16 %v1066
    %v1135 = vunpack.c.l.b16 %v1067
    %v1136 = vunpack.c.h.b16 %v1067
    %v1137 = vunpack.c.l.b16 %v1068
    %v1138 = vunpack.c.h.b16 %v1068
    %v1139 = vunpack.c.l.b16 %v1069
    %v1140 = vunpack.c.h.b16 %v1069
    %v1141 = vunpack.c.l.b16 %v1070
    %v1142 = vunpack.c.h.b16 %v1070
    %v1143 = vunpack.c.l.b16 %v1071
    %v1144 = vunpack.c.h.b16 %v1071
    %v1145 = vunpack.c.l.b16 %v1072
    %v1146 = vunpack.c.h.b16 %v1072
    %v1147 = vunpack.c.l.b16 %v1073
    %v1148 = vunpack.c.h.b16 %v1073
    %v1149 = vunpack.c.l.b16 %v1074
    %v1150 = vunpack.c.h.b16 %v1074
    %v1151 = vunpack.c.l.b16 %v1075
    %v1152 = vunpack.c.h.b16 %v1075
    %v1153 = vunpack.c.l.b16 %v1076
    %v1154 = vunpack.c.h.b16 %v1076
    %v1155 = vunpack.c.l.b16 %v1077
    %v1156 = vunpack.c.h.b16 %v1077
    %v1157 = vunpack.c.l.b16 %v1078
    %v1158 = vunpack.c.h.b16 %v1078
    %v1159 = vunpack.c.l.b16 %v1079
    %v1160 = vunpack.c.h.b16 %v1079
    %v1161 = vunpack.c.l.b16 %v1080
    %v1162 = vunpack.c.h.b16 %v1080
    %v1163 = vunpack.c.l.b16 %v1081
    %v1164 = vunpack.c.h.b16 %v1081
    %v1165 = vunpack.c.l.b16 %v1082
    %v1166 = vunpack.c.h.b16 %v1082
    %v1167 = vunpack.c.l.b16 %v1083
    %v1168 = vunpack.c.h.b16 %v1083
    %v1169 = vunpack.c.l.b16 %v1084
    %v1170 = vunpack.c.h.b16 %v1084
    %v1171 = vunpack.c.l.b16 %v1085
    %v1172 = vunpack.c.h.b16 %v1085
    %v1173 = vunpack.c.l.b16 %v1086
    %v1174 = vunpack.c.h.b16 %v1086
    %v1175 = vunpack.c.l.b16 %v1087
    %v1176 = vunpack.c.h.b16 %v1087
    %v1177 = vunpack.c.l.b16 %v1088
    %v1178 = vunpack.c.h.b16 %v1088
    %v1179 = vunpack.c.l.b16 %v1089
    %v1180 = vunpack.c.h.b16 %v1089
    %v1181 = vunpack.c.l.b16 %v1090
    %v1182 = vunpack.c.h.b16 %v1090
    %v1183 = vunpack.c.l.b16 %v1091
    %v1184 = vunpack.c.h.b16 %v1091
    %v1185 = vunpack.c.l.b16 %v1092
    %v1186 = vunpack.c.h.b16 %v1092
    %v1187 = vunpack.c.l.b16 %v1093
    %v1188 = vunpack.c.h.b16 %v1093
    %v1189 = vunpack.c.l.b16 %v1094
    %v1190 = vunpack.c.h.b16 %v1094
    %v1191 = vpack.c.b16 %v1131, %v1127
    %v1192 = vpack.c.b16 %v1132, %v1128
    %v1193 = vpack.c.b16 %v1133, %v1129
    %v1194 = vpack.c.b16 %v1134, %v1130
    %v1195 = vpack.c.b16 %v1139, %v1135
    %v1196 = vpack.c.b16 %v1140, %v1136
    %v1197 = vpack.c.b16 %v1141, %v1137
    %v1198 = vpack.c.b16 %v1142, %v1138
    %v1199 = vpack.c.b16 %v1147, %v1143
    %v1200 = vpack.c.b16 %v1148, %v1144
    %v1201 = vpack.c.b16 %v1149, %v1145
    %v1202 = vpack.c.b16 %v1150, %v1146
    %v1203 = vpack.c.b16 %v1155, %v1151
    %v1204 = vpack.c.b16 %v1156, %v1152
    %v1205 = vpack.c.b16 %v1157, %v1153
    %v1206 = vpack.c.b16 %v1158, %v1154
    %v1207 = vpack.c.b16 %v1163, %v1159
    %v1208 = vpack.c.b16 %v1164, %v1160
    %v1209 = vpack.c.b16 %v1165, %v1161
    %v1210 = vpack.c.b16 %v1166, %v1162
    %v1211 = vpack.c.b16 %v1171, %v1167
    %v1212 = vpack.c.b16 %v1172, %v1168
    %v1213 = vpack.c.b16 %v1173, %v1169
    %v1214 = vpack.c.b16 %v1174, %v1170
    %v1215 = vpack.c.b16 %v1179, %v1175
    %v1216 = vpack.c.b16 %v1180, %v1176
    %v1217 = vpack.c.b16 %v1181, %v1177
    %v1218 = vpack.c.b16 %v1182, %v1178
    %v1219 = vpack.c.b16 %v1187, %v1183
    %v1220 = vpack.c.b16 %v1188, %v1184
    %v1221 = vpack.c.b16 %v1189, %v1185
    %v1222 = vpack.c.b16 %v1190, %v1186
    %1255 = vmatprep.subr.bf16.mxu0 %v1192
    %1256 = vmatpush1.bf16.msra.mxu0 %v1191
    %1257 = vmatprep.subr.bf16.mxu0 %v1196
    %1258 = vmatpush1.bf16.msra.mxu0 %v1195
    %1259 = vmatprep.subr.bf16.mxu0 %v1200
    %1260 = vmatpush1.bf16.msra.mxu0 %v1199
    %1261 = vmatprep.subr.bf16.mxu0 %v1204
    %1262 = vmatpush1.bf16.msra.mxu0 %v1203
    %1263 = vmatprep.subr.bf16.mxu0 %v1208
    %1264 = vmatpush1.bf16.msra.mxu0 %v1207
    %1265 = vmatprep.subr.bf16.mxu0 %v1212
    %1266 = vmatpush1.bf16.msra.mxu0 %v1211
    %1267 = vmatprep.subr.bf16.mxu0 %v1216
    %1268 = vmatpush1.bf16.msra.mxu0 %v1215
    %1269 = vmatprep.subr.bf16.mxu0 %v1220
    %1270 = vmatpush1.bf16.msra.mxu0 %v1219
    %1271 = vmatprep.subr.bf16.mxu0 0
    %1272 = vmatpush1.bf16.msra.mxu0 0
    %1273 = vmatprep.subr.bf16.mxu0 0
    %1274 = vmatpush1.bf16.msra.mxu0 0
    %1275 = vmatprep.subr.bf16.mxu0 0
    %1276 = vmatpush1.bf16.msra.mxu0 0
    %1277 = vmatprep.subr.bf16.mxu0 0
    %1278 = vmatpush1.bf16.msra.mxu0 0
    %1279 = vmatprep.subr.bf16.mxu0 0
    %1280 = vmatpush1.bf16.msra.mxu0 0
    %1281 = vmatprep.subr.bf16.mxu0 0
    %1282 = vmatpush1.bf16.msra.mxu0 0
    %1283 = vmatprep.subr.bf16.mxu0 0
    %1284 = vmatpush1.bf16.msra.mxu0 0
    %1285 = vmatprep.subr.bf16.mxu0 0
    %1286 = vmatpush1.bf16.msra.mxu0 0
    %1287 = vmatprep.mubr.bf16.mxu0 0
    %1288 = vmatmul.mubr.bf16.gmra.mrb[0].mxu0 0
    %v1289 = vpop.f32.mrb[0].mxu0
    %v1290 = vadd.f32 0.0, %v1289
    %v1291 = vpop.f32.mrb[0].mxu0
    %v1292 = vadd.f32 0.0, %v1291
    %v1293 = vpop.f32.mrb[0].mxu0
    %v1294 = vpop.f32.mrb[0].mxu0
    %1295 = vdwg.mxu0
    %1296 = vmatprep.subr.bf16.mxu0 %v1194
    %1297 = vmatpush1.bf16.msra.mxu0 %v1193
    %1298 = vmatprep.subr.bf16.mxu0 %v1198
    %1299 = vmatpush1.bf16.msra.mxu0 %v1197
    %1300 = vmatprep.subr.bf16.mxu0 %v1202
    %1301 = vmatpush1.bf16.msra.mxu0 %v1201
    %1302 = vmatprep.subr.bf16.mxu0 %v1206
    %1303 = vmatpush1.bf16.msra.mxu0 %v1205
    %1304 = vmatprep.subr.bf16.mxu0 %v1210
    %1305 = vmatpush1.bf16.msra.mxu0 %v1209
    %1306 = vmatprep.subr.bf16.mxu0 %v1214
    %1307 = vmatpush1.bf16.msra.mxu0 %v1213
    %1308 = vmatprep.subr.bf16.mxu0 %v1218
    %1309 = vmatpush1.bf16.msra.mxu0 %v1217
    %1310 = vmatprep.subr.bf16.mxu0 %v1222
    %1311 = vmatpush1.bf16.msra.mxu0 %v1221
    %1312 = vmatprep.subr.bf16.mxu0 0
    %1313 = vmatpush1.bf16.msra.mxu0 0
    %1314 = vmatprep.subr.bf16.mxu0 0
    %1315 = vmatpush1.bf16.msra.mxu0 0
    %1316 = vmatprep.subr.bf16.mxu0 0
    %1317 = vmatpush1.bf16.msra.mxu0 0
    %1318 = vmatprep.subr.bf16.mxu0 0
    %1319 = vmatpush1.bf16.msra.mxu0 0
    %1320 = vmatprep.subr.bf16.mxu0 0
    %1321 = vmatpush1.bf16.msra.mxu0 0
    %1322 = vmatprep.subr.bf16.mxu0 0
    %1323 = vmatpush1.bf16.msra.mxu0 0
    %1324 = vmatprep.subr.bf16.mxu0 0
    %1325 = vmatpush1.bf16.msra.mxu0 0
    %1326 = vmatprep.subr.bf16.mxu0 0
    %1327 = vmatpush1.bf16.msra.mxu0 0
    %1328 = vmatprep.mubr.bf16.mxu0 0
    %1329 = vmatmul.mubr.bf16.gmra.mrb[0].mxu0 0
    %v1330 = vpop.f32.mrb[0].mxu0
    %v1331 = vadd.f32 0.0, %v1330
    %v1332 = vpop.f32.mrb[0].mxu0
    %v1333 = vadd.f32 0.0, %v1332
    %v1334 = vpop.f32.mrb[0].mxu0
    %v1335 = vpop.f32.mrb[0].mxu0
    %1336 = vdwg.mxu0
    %v1337 = vadd.f32 %v1059, %v1290
    %v1338 = vadd.f32 %v1060, %v1292
    %v1339 = vadd.f32 %v1061, %v1331
    %v1340 = vadd.f32 %v1062, %v1333
    %v1341 = vxor.u32 %v1337, 2147483648
    %v1342 = vxor.u32 %v1338, 2147483648
    %v1343 = vxor.u32 %v1339, 2147483648
    %v1344 = vmul.f32 %v1341, 1.442695
    %v1345 = vpow.pop %v1344
    %v1346 = vmul.f32 %v1342, 1.442695
    %v1347 = vpow.pop %v1346
    %v1348 = vmul.f32 %v1343, 1.442695
    %v1349 = vpow.pop %v1348
    %v1350 = vadd.f32 %v1345, 1.0
    %v1351 = vadd.f32 %v1347, 1.0
    %v1352 = vadd.f32 %v1349, 1.0
    %v1353 = vrcp.pop %v1350
    %v1354 = vmul.f32 1.0, %v1353
    %v1355 = vrcp.pop %v1351
    %v1356 = vmul.f32 1.0, %v1355
    %v1357 = vrcp.pop %v1352
    %v1358 = vmul.f32 1.0, %v1357
    %v1359 = vtanh.pop %v1340
    %v1360 = vmul.f32 %v1356, 0.0
    %v1361 = vmul.f32 %v1354, %v1359
    %v1362 = vadd.f32 %v1360, %v1361
    %v1363 = vtanh.pop %v1362
    %v1364 = vmul.f32 %v1358, %v1363
    %1365 = vmatprep.subr.bf16.mxu0 %v589
    %1366 = vmatpush1.bf16.msra.mxu0 %v588
    %1367 = vmatprep.subr.bf16.mxu0 %v593
    %1368 = vmatpush1.bf16.msra.mxu0 %v592
    %1369 = vmatprep.subr.bf16.mxu0 %v597
    %1370 = vmatpush1.bf16.msra.mxu0 %v596
    %1371 = vmatprep.subr.bf16.mxu0 %v601
    %1372 = vmatpush1.bf16.msra.mxu0 %v600
    %1373 = vmatprep.subr.bf16.mxu0 %v605
    %1374 = vmatpush1.bf16.msra.mxu0 %v604
    %1375 = vmatprep.subr.bf16.mxu0 %v609
    %1376 = vmatpush1.bf16.msra.mxu0 %v608
    %1377 = vmatprep.subr.bf16.mxu0 %v613
    %1378 = vmatpush1.bf16.msra.mxu0 %v612
    %1379 = vmatprep.subr.bf16.mxu0 %v617
    %1380 = vmatpush1.bf16.msra.mxu0 %v616
    %1381 = vmatprep.subr.bf16.mxu0 0
    %1382 = vmatpush1.bf16.msra.mxu0 0
    %1383 = vmatprep.subr.bf16.mxu0 0
    %1384 = vmatpush1.bf16.msra.mxu0 0
    %1385 = vmatprep.subr.bf16.mxu0 0
    %1386 = vmatpush1.bf16.msra.mxu0 0
    %1387 = vmatprep.subr.bf16.mxu0 0
    %1388 = vmatpush1.bf16.msra.mxu0 0
    %1389 = vmatprep.subr.bf16.mxu0 0
    %1390 = vmatpush1.bf16.msra.mxu0 0
    %1391 = vmatprep.subr.bf16.mxu0 0
    %1392 = vmatpush1.bf16.msra.mxu0 0
    %1393 = vmatprep.subr.bf16.mxu0 0
    %1394 = vmatpush1.bf16.msra.mxu0 0
    %1395 = vmatprep.subr.bf16.mxu0 0
    %1396 = vmatpush1.bf16.msra.mxu0 0
    %1397 = vmatprep.mubr.bf16.mxu0 0
    %1398 = vmatmul.mubr.bf16.gmra.mrb[0].mxu0 %v763
    %v1399 = vpop.f32.mrb[0].mxu0
    %v1400 = vadd.f32 0.0, %v1399
    %v1401 = vpop.f32.mrb[0].mxu0
    %v1402 = vadd.f32 0.0, %v1401
    %v1403 = vpop.f32.mrb[0].mxu0
    %v1404 = vpop.f32.mrb[0].mxu0
    %1405 = vdwg.mxu0
    %1406 = vmatprep.subr.bf16.mxu0 %v591
    %1407 = vmatpush1.bf16.msra.mxu0 %v590
    %1408 = vmatprep.subr.bf16.mxu0 %v595
    %1409 = vmatpush1.bf16.msra.mxu0 %v594
    %1410 = vmatprep.subr.bf16.mxu0 %v599
    %1411 = vmatpush1.bf16.msra.mxu0 %v598
    %1412 = vmatprep.subr.bf16.mxu0 %v603
    %1413 = vmatpush1.bf16.msra.mxu0 %v602
    %1414 = vmatprep.subr.bf16.mxu0 %v607
    %1415 = vmatpush1.bf16.msra.mxu0 %v606
    %1416 = vmatprep.subr.bf16.mxu0 %v611
    %1417 = vmatpush1.bf16.msra.mxu0 %v610
    %1418 = vmatprep.subr.bf16.mxu0 %v615
    %1419 = vmatpush1.bf16.msra.mxu0 %v614
    %1420 = vmatprep.subr.bf16.mxu0 %v619
    %1421 = vmatpush1.bf16.msra.mxu0 %v618
    %1422 = vmatprep.subr.bf16.mxu0 0
    %1423 = vmatpush1.bf16.msra.mxu0 0
    %1424 = vmatprep.subr.bf16.mxu0 0
    %1425 = vmatpush1.bf16.msra.mxu0 0
    %1426 = vmatprep.subr.bf16.mxu0 0
    %1427 = vmatpush1.bf16.msra.mxu0 0
    %1428 = vmatprep.subr.bf16.mxu0 0
    %1429 = vmatpush1.bf16.msra.mxu0 0
    %1430 = vmatprep.subr.bf16.mxu0 0
    %1431 = vmatpush1.bf16.msra.mxu0 0
    %1432 = vmatprep.subr.bf16.mxu0 0
    %1433 = vmatpush1.bf16.msra.mxu0 0
    %1434 = vmatprep.subr.bf16.mxu0 0
    %1435 = vmatpush1.bf16.msra.mxu0 0
    %1436 = vmatprep.subr.bf16.mxu0 0
    %1437 = vmatpush1.bf16.msra.mxu0 0
    %1438 = vmatprep.mubr.bf16.mxu0 0
    %1439 = vmatmul.mubr.bf16.gmra.mrb[0].mxu0 %v763
    %v1440 = vpop.f32.mrb[0].mxu0
    %v1441 = vadd.f32 0.0, %v1440
    %v1442 = vpop.f32.mrb[0].mxu0
    %v1443 = vadd.f32 0.0, %v1442
    %v1444 = vpop.f32.mrb[0].mxu0
    %v1445 = vpop.f32.mrb[0].mxu0
    %1446 = vdwg.mxu0
    %v1447 = vadd.f32 %v353, %v1400
    %v1448 = vadd.f32 %v355, %v1402
    %v1449 = vadd.f32 %v426, %v1441
    %v1450 = vadd.f32 %v428, %v1443
    %v1451 = vxor.u32 %v1447, 2147483648
    %v1452 = vxor.u32 %v1448, 2147483648
    %v1453 = vxor.u32 %v1449, 2147483648
    %v1454 = vmul.f32 %v1451, 1.442695
    %v1455 = vpow.pop %v1454
    %v1456 = vmul.f32 %v1452, 1.442695
    %v1457 = vpow.pop %v1456
    %v1458 = vmul.f32 %v1453, 1.442695
    %v1459 = vpow.pop %v1458
    %v1460 = vadd.f32 %v1455, 1.0
    %v1461 = vadd.f32 %v1457, 1.0
    %v1462 = vadd.f32 %v1459, 1.0
    %v1463 = vrcp.pop %v1460
    %v1464 = vmul.f32 1.0, %v1463
    %v1465 = vrcp.pop %v1461
    %v1466 = vmul.f32 1.0, %v1465
    %v1467 = vrcp.pop %v1462
    %v1468 = vmul.f32 1.0, %v1467
    %v1469 = vtanh.pop %v1450
    %v1470 = vmul.f32 %v1466, %v759
    %v1471 = vmul.f32 %v1464, %v1469
    %v1472 = vadd.f32 %v1470, %v1471
    %v1473 = vtanh.pop %v1472
    %v1474 = vmul.f32 %v1468, %v1473
    %v1475 = vpack.c.bf16 %v1474, %v1474
    %1476 = vmatprep.subr.bf16.mxu0 %v893
    %1477 = vmatpush1.bf16.msra.mxu0 %v892
    %1478 = vmatprep.subr.bf16.mxu0 %v897
    %1479 = vmatpush1.bf16.msra.mxu0 %v896
    %1480 = vmatprep.subr.bf16.mxu0 %v901
    %1481 = vmatpush1.bf16.msra.mxu0 %v900
    %1482 = vmatprep.subr.bf16.mxu0 %v905
    %1483 = vmatpush1.bf16.msra.mxu0 %v904
    %1484 = vmatprep.subr.bf16.mxu0 %v909
    %1485 = vmatpush1.bf16.msra.mxu0 %v908
    %1486 = vmatprep.subr.bf16.mxu0 %v913
    %1487 = vmatpush1.bf16.msra.mxu0 %v912
    %1488 = vmatprep.subr.bf16.mxu0 %v917
    %1489 = vmatpush1.bf16.msra.mxu0 %v916
    %1490 = vmatprep.subr.bf16.mxu0 %v921
    %1491 = vmatpush1.bf16.msra.mxu0 %v920
    %1492 = vmatprep.subr.bf16.mxu0 0
    %1493 = vmatpush1.bf16.msra.mxu0 0
    %1494 = vmatprep.subr.bf16.mxu0 0
    %1495 = vmatpush1.bf16.msra.mxu0 0
    %1496 = vmatprep.subr.bf16.mxu0 0
    %1497 = vmatpush1.bf16.msra.mxu0 0
    %1498 = vmatprep.subr.bf16.mxu0 0
    %1499 = vmatpush1.bf16.msra.mxu0 0
    %1500 = vmatprep.subr.bf16.mxu0 0
    %1501 = vmatpush1.bf16.msra.mxu0 0
    %1502 = vmatprep.subr.bf16.mxu0 0
    %1503 = vmatpush1.bf16.msra.mxu0 0
    %1504 = vmatprep.subr.bf16.mxu0 0
    %1505 = vmatpush1.bf16.msra.mxu0 0
    %1506 = vmatprep.subr.bf16.mxu0 0
    %1507 = vmatpush1.bf16.msra.mxu0 0
    %1508 = vmatprep.mubr.bf16.mxu0 0
    %1509 = vmatmul.mubr.bf16.gmra.mrb[0].mxu0 %v1475
    %v1510 = vpop.f32.mrb[0].mxu0
    %v1511 = vadd.f32 0.0, %v1510
    %v1512 = vpop.f32.mrb[0].mxu0
    %v1513 = vadd.f32 0.0, %v1512
    %v1514 = vpop.f32.mrb[0].mxu0
    %v1515 = vpop.f32.mrb[0].mxu0
    %1516 = vdwg.mxu0
    %1517 = vmatprep.subr.bf16.mxu0 %v895
    %1518 = vmatpush1.bf16.msra.mxu0 %v894
    %1519 = vmatprep.subr.bf16.mxu0 %v899
    %1520 = vmatpush1.bf16.msra.mxu0 %v898
    %1521 = vmatprep.subr.bf16.mxu0 %v903
    %1522 = vmatpush1.bf16.msra.mxu0 %v902
    %1523 = vmatprep.subr.bf16.mxu0 %v907
    %1524 = vmatpush1.bf16.msra.mxu0 %v906
    %1525 = vmatprep.subr.bf16.mxu0 %v911
    %1526 = vmatpush1.bf16.msra.mxu0 %v910
    %1527 = vmatprep.subr.bf16.mxu0 %v915
    %1528 = vmatpush1.bf16.msra.mxu0 %v914
    %1529 = vmatprep.subr.bf16.mxu0 %v919
    %1530 = vmatpush1.bf16.msra.mxu0 %v918
    %1531 = vmatprep.subr.bf16.mxu0 %v923
    %1532 = vmatpush1.bf16.msra.mxu0 %v922
    %1533 = vmatprep.subr.bf16.mxu0 0
    %1534 = vmatpush1.bf16.msra.mxu0 0
    %1535 = vmatprep.subr.bf16.mxu0 0
    %1536 = vmatpush1.bf16.msra.mxu0 0
    %1537 = vmatprep.subr.bf16.mxu0 0
    %1538 = vmatpush1.bf16.msra.mxu0 0
    %1539 = vmatprep.subr.bf16.mxu0 0
    %1540 = vmatpush1.bf16.msra.mxu0 0
    %1541 = vmatprep.subr.bf16.mxu0 0
    %1542 = vmatpush1.bf16.msra.mxu0 0
    %1543 = vmatprep.subr.bf16.mxu0 0
    %1544 = vmatpush1.bf16.msra.mxu0 0
    %1545 = vmatprep.subr.bf16.mxu0 0
    %1546 = vmatpush1.bf16.msra.mxu0 0
    %1547 = vmatprep.subr.bf16.mxu0 0
    %1548 = vmatpush1.bf16.msra.mxu0 0
    %1549 = vmatprep.mubr.bf16.mxu0 0
    %1550 = vmatmul.mubr.bf16.gmra.mrb[0].mxu0 %v1475
    %v1551 = vpop.f32.mrb[0].mxu0
    %v1552 = vadd.f32 0.0, %v1551
    %v1553 = vpop.f32.mrb[0].mxu0
    %v1554 = vadd.f32 0.0, %v1553
    %v1555 = vpop.f32.mrb[0].mxu0
    %v1556 = vpop.f32.mrb[0].mxu0
    %1557 = vdwg.mxu0
    %v1558 = vadd.f32 %v1042, %v1511
    %v1559 = vadd.f32 %v1046, %v1513
    %v1560 = vadd.f32 %v1050, %v1552
    %v1561 = vadd.f32 %v1054, %v1554
    %v1562 = vpack.c.bf16 %v1364, %v1364
    %1563 = vmatprep.subr.bf16.mxu0 %v1192
    %1564 = vmatpush1.bf16.msra.mxu0 %v1191
    %1565 = vmatprep.subr.bf16.mxu0 %v1196
    %1566 = vmatpush1.bf16.msra.mxu0 %v1195
    %1567 = vmatprep.subr.bf16.mxu0 %v1200
    %1568 = vmatpush1.bf16.msra.mxu0 %v1199
    %1569 = vmatprep.subr.bf16.mxu0 %v1204
    %1570 = vmatpush1.bf16.msra.mxu0 %v1203
    %1571 = vmatprep.subr.bf16.mxu0 %v1208
    %1572 = vmatpush1.bf16.msra.mxu0 %v1207
    %1573 = vmatprep.subr.bf16.mxu0 %v1212
    %1574 = vmatpush1.bf16.msra.mxu0 %v1211
    %1575 = vmatprep.subr.bf16.mxu0 %v1216
    %1576 = vmatpush1.bf16.msra.mxu0 %v1215
    %1577 = vmatprep.subr.bf16.mxu0 %v1220
    %1578 = vmatpush1.bf16.msra.mxu0 %v1219
    %1579 = vmatprep.subr.bf16.mxu0 0
    %1580 = vmatpush1.bf16.msra.mxu0 0
    %1581 = vmatprep.subr.bf16.mxu0 0
    %1582 = vmatpush1.bf16.msra.mxu0 0
    %1583 = vmatprep.subr.bf16.mxu0 0
    %1584 = vmatpush1.bf16.msra.mxu0 0
    %1585 = vmatprep.subr.bf16.mxu0 0
    %1586 = vmatpush1.bf16.msra.mxu0 0
    %1587 = vmatprep.subr.bf16.mxu0 0
    %1588 = vmatpush1.bf16.msra.mxu0 0
    %1589 = vmatprep.subr.bf16.mxu0 0
    %1590 = vmatpush1.bf16.msra.mxu0 0
    %1591 = vmatprep.subr.bf16.mxu0 0
    %1592 = vmatpush1.bf16.msra.mxu0 0
    %1593 = vmatprep.subr.bf16.mxu0 0
    %1594 = vmatpush1.bf16.msra.mxu0 0
    %1595 = vmatprep.mubr.bf16.mxu0 0
    %1596 = vmatmul.mubr.bf16.gmra.mrb[0].mxu0 %v1562
    %v1597 = vpop.f32.mrb[0].mxu0
    %v1598 = vadd.f32 0.0, %v1597
    %v1599 = vpop.f32.mrb[0].mxu0
    %v1600 = vadd.f32 0.0, %v1599
    %v1601 = vpop.f32.mrb[0].mxu0
    %v1602 = vpop.f32.mrb[0].mxu0
    %1603 = vdwg.mxu0
    %1604 = vmatprep.subr.bf16.mxu0 %v1194
    %1605 = vmatpush1.bf16.msra.mxu0 %v1193
    %1606 = vmatprep.subr.bf16.mxu0 %v1198
    %1607 = vmatpush1.bf16.msra.mxu0 %v1197
    %1608 = vmatprep.subr.bf16.mxu0 %v1202
    %1609 = vmatpush1.bf16.msra.mxu0 %v1201
    %1610 = vmatprep.subr.bf16.mxu0 %v1206
    %1611 = vmatpush1.bf16.msra.mxu0 %v1205
    %1612 = vmatprep.subr.bf16.mxu0 %v1210
    %1613 = vmatpush1.bf16.msra.mxu0 %v1209
    %1614 = vmatprep.subr.bf16.mxu0 %v1214
    %1615 = vmatpush1.bf16.msra.mxu0 %v1213
    %1616 = vmatprep.subr.bf16.mxu0 %v1218
    %1617 = vmatpush1.bf16.msra.mxu0 %v1217
    %1618 = vmatprep.subr.bf16.mxu0 %v1222
    %1619 = vmatpush1.bf16.msra.mxu0 %v1221
    %1620 = vmatprep.subr.bf16.mxu0 0
    %1621 = vmatpush1.bf16.msra.mxu0 0
    %1622 = vmatprep.subr.bf16.mxu0 0
    %1623 = vmatpush1.bf16.msra.mxu0 0
    %1624 = vmatprep.subr.bf16.mxu0 0
    %1625 = vmatpush1.bf16.msra.mxu0 0
    %1626 = vmatprep.subr.bf16.mxu0 0
    %1627 = vmatpush1.bf16.msra.mxu0 0
    %1628 = vmatprep.subr.bf16.mxu0 0
    %1629 = vmatpush1.bf16.msra.mxu0 0
    %1630 = vmatprep.subr.bf16.mxu0 0
    %1631 = vmatpush1.bf16.msra.mxu0 0
    %1632 = vmatprep.subr.bf16.mxu0 0
    %1633 = vmatpush1.bf16.msra.mxu0 0
    %1634 = vmatprep.subr.bf16.mxu0 0
    %1635 = vmatpush1.bf16.msra.mxu0 0
    %1636 = vmatprep.mubr.bf16.mxu0 0
    %1637 = vmatmul.mubr.bf16.gmra.mrb[0].mxu0 %v1562
    %v1638 = vpop.f32.mrb[0].mxu0
    %v1639 = vadd.f32 0.0, %v1638
    %v1640 = vpop.f32.mrb[0].mxu0
    %v1641 = vadd.f32 0.0, %v1640
    %v1642 = vpop.f32.mrb[0].mxu0
    %v1643 = vpop.f32.mrb[0].mxu0
    %1644 = vdwg.mxu0
    %v1645 = vadd.f32 %v1558, %v1598
    %v1646 = vadd.f32 %v1559, %v1600
    %v1647 = vadd.f32 %v1560, %v1639
    %v1648 = vadd.f32 %v1561, %v1641
    %v1649 = vxor.u32 %v1645, 2147483648
    %v1650 = vxor.u32 %v1646, 2147483648
    %v1651 = vxor.u32 %v1647, 2147483648
    %v1652 = vmul.f32 %v1649, 1.442695
    %v1653 = vpow.pop %v1652
    %v1654 = vmul.f32 %v1650, 1.442695
    %v1655 = vpow.pop %v1654
    %v1656 = vmul.f32 %v1651, 1.442695
    %v1657 = vpow.pop %v1656
    %v1658 = vadd.f32 %v1653, 1.0
    %v1659 = vadd.f32 %v1655, 1.0
    %v1660 = vadd.f32 %v1657, 1.0
    %v1661 = vrcp.pop %v1658
    %v1662 = vmul.f32 1.0, %v1661
    %v1663 = vrcp.pop %v1659
    %v1664 = vmul.f32 1.0, %v1663
    %v1665 = vrcp.pop %v1660
    %v1666 = vmul.f32 1.0, %v1665
    %v1667 = vtanh.pop %v1648
    %v1668 = vmul.f32 %v1664, %v1362
    %v1669 = vmul.f32 %v1662, %v1667
    %v1670 = vadd.f32 %v1668, %v1669
    %v1671 = vtanh.pop %v1670
    %v1672 = vmul.f32 %v1666, %v1671
    %1673 = vmatprep.subr.bf16.mxu0 %v589
    %1674 = vmatpush1.bf16.msra.mxu0 %v588
    %1675 = vmatprep.subr.bf16.mxu0 %v593
    %1676 = vmatpush1.bf16.msra.mxu0 %v592
    %1677 = vmatprep.subr.bf16.mxu0 %v597
    %1678 = vmatpush1.bf16.msra.mxu0 %v596
    %1679 = vmatprep.subr.bf16.mxu0 %v601
    %1680 = vmatpush1.bf16.msra.mxu0 %v600
    %1681 = vmatprep.subr.bf16.mxu0 %v605
    %1682 = vmatpush1.bf16.msra.mxu0 %v604
    %1683 = vmatprep.subr.bf16.mxu0 %v609
    %1684 = vmatpush1.bf16.msra.mxu0 %v608
    %1685 = vmatprep.subr.bf16.mxu0 %v613
    %1686 = vmatpush1.bf16.msra.mxu0 %v612
    %1687 = vmatprep.subr.bf16.mxu0 %v617
    %1688 = vmatpush1.bf16.msra.mxu0 %v616
    %1689 = vmatprep.subr.bf16.mxu0 0
    %1690 = vmatpush1.bf16.msra.mxu0 0
    %1691 = vmatprep.subr.bf16.mxu0 0
    %1692 = vmatpush1.bf16.msra.mxu0 0
    %1693 = vmatprep.subr.bf16.mxu0 0
    %1694 = vmatpush1.bf16.msra.mxu0 0
    %1695 = vmatprep.subr.bf16.mxu0 0
    %1696 = vmatpush1.bf16.msra.mxu0 0
    %1697 = vmatprep.subr.bf16.mxu0 0
    %1698 = vmatpush1.bf16.msra.mxu0 0
    %1699 = vmatprep.subr.bf16.mxu0 0
    %1700 = vmatpush1.bf16.msra.mxu0 0
    %1701 = vmatprep.subr.bf16.mxu0 0
    %1702 = vmatpush1.bf16.msra.mxu0 0
    %1703 = vmatprep.subr.bf16.mxu0 0
    %1704 = vmatpush1.bf16.msra.mxu0 0
    %1705 = vmatprep.mubr.bf16.mxu0 0
    %1706 = vmatmul.mubr.bf16.gmra.mrb[0].mxu0 %v1475
    %v1707 = vpop.f32.mrb[0].mxu0
    %v1708 = vadd.f32 0.0, %v1707
    %v1709 = vpop.f32.mrb[0].mxu0
    %v1710 = vadd.f32 0.0, %v1709
    %v1711 = vpop.f32.mrb[0].mxu0
    %v1712 = vpop.f32.mrb[0].mxu0
    %1713 = vdwg.mxu0
    %1714 = vmatprep.subr.bf16.mxu0 %v591
    %1715 = vmatpush1.bf16.msra.mxu0 %v590
    %1716 = vmatprep.subr.bf16.mxu0 %v595
    %1717 = vmatpush1.bf16.msra.mxu0 %v594
    %1718 = vmatprep.subr.bf16.mxu0 %v599
    %1719 = vmatpush1.bf16.msra.mxu0 %v598
    %1720 = vmatprep.subr.bf16.mxu0 %v603
    %1721 = vmatpush1.bf16.msra.mxu0 %v602
    %1722 = vmatprep.subr.bf16.mxu0 %v607
    %1723 = vmatpush1.bf16.msra.mxu0 %v606
    %1724 = vmatprep.subr.bf16.mxu0 %v611
    %1725 = vmatpush1.bf16.msra.mxu0 %v610
    %1726 = vmatprep.subr.bf16.mxu0 %v615
    %1727 = vmatpush1.bf16.msra.mxu0 %v614
    %1728 = vmatprep.subr.bf16.mxu0 %v619
    %1729 = vmatpush1.bf16.msra.mxu0 %v618
    %1730 = vmatprep.subr.bf16.mxu0 0
    %1731 = vmatpush1.bf16.msra.mxu0 0
    %1732 = vmatprep.subr.bf16.mxu0 0
    %1733 = vmatpush1.bf16.msra.mxu0 0
    %1734 = vmatprep.subr.bf16.mxu0 0
    %1735 = vmatpush1.bf16.msra.mxu0 0
    %1736 = vmatprep.subr.bf16.mxu0 0
    %1737 = vmatpush1.bf16.msra.mxu0 0
    %1738 = vmatprep.subr.bf16.mxu0 0
    %1739 = vmatpush1.bf16.msra.mxu0 0
    %1740 = vmatprep.subr.bf16.mxu0 0
    %1741 = vmatpush1.bf16.msra.mxu0 0
    %1742 = vmatprep.subr.bf16.mxu0 0
    %1743 = vmatpush1.bf16.msra.mxu0 0
    %1744 = vmatprep.subr.bf16.mxu0 0
    %1745 = vmatpush1.bf16.msra.mxu0 0
    %1746 = vmatprep.mubr.bf16.mxu0 0
    %1747 = vmatmul.mubr.bf16.gmra.mrb[0].mxu0 %v1475
    %v1748 = vpop.f32.mrb[0].mxu0
    %v1749 = vadd.f32 0.0, %v1748
    %v1750 = vpop.f32.mrb[0].mxu0
    %v1751 = vadd.f32 0.0, %v1750
    %v1752 = vpop.f32.mrb[0].mxu0
    %v1753 = vpop.f32.mrb[0].mxu0
    %1754 = vdwg.mxu0
    %v1755 = vadd.f32 %v359, %v1708
    %v1756 = vadd.f32 %v361, %v1710
    %v1757 = vadd.f32 %v432, %v1749
    %v1758 = vadd.f32 %v434, %v1751
    %v1759 = vxor.u32 %v1755, 2147483648
    %v1760 = vxor.u32 %v1756, 2147483648
    %v1761 = vxor.u32 %v1757, 2147483648
    %v1762 = vmul.f32 %v1759, 1.442695
    %v1763 = vpow.pop %v1762
    %v1764 = vmul.f32 %v1760, 1.442695
    %v1765 = vpow.pop %v1764
    %v1766 = vmul.f32 %v1761, 1.442695
    %v1767 = vpow.pop %v1766
    %v1768 = vadd.f32 %v1763, 1.0
    %v1769 = vadd.f32 %v1765, 1.0
    %v1770 = vadd.f32 %v1767, 1.0
    %v1771 = vrcp.pop %v1768
    %v1772 = vmul.f32 1.0, %v1771
    %v1773 = vrcp.pop %v1769
    %v1774 = vmul.f32 1.0, %v1773
    %v1775 = vrcp.pop %v1770
    %v1776 = vmul.f32 1.0, %v1775
    %v1777 = vtanh.pop %v1758
    %v1778 = vmul.f32 %v1774, %v1472
    %v1779 = vmul.f32 %v1772, %v1777
    %v1780 = vadd.f32 %v1778, %v1779
    %v1781 = vtanh.pop %v1780
    %v1782 = vmul.f32 %v1776, %v1781
    %v1783 = vpack.c.bf16 %v1782, %v1782
    %1784 = vmatprep.subr.bf16.mxu0 %v893
    %1785 = vmatpush1.bf16.msra.mxu0 %v892
    %1786 = vmatprep.subr.bf16.mxu0 %v897
    %1787 = vmatpush1.bf16.msra.mxu0 %v896
    %1788 = vmatprep.subr.bf16.mxu0 %v901
    %1789 = vmatpush1.bf16.msra.mxu0 %v900
    %1790 = vmatprep.subr.bf16.mxu0 %v905
    %1791 = vmatpush1.bf16.msra.mxu0 %v904
    %1792 = vmatprep.subr.bf16.mxu0 %v909
    %1793 = vmatpush1.bf16.msra.mxu0 %v908
    %1794 = vmatprep.subr.bf16.mxu0 %v913
    %1795 = vmatpush1.bf16.msra.mxu0 %v912
    %1796 = vmatprep.subr.bf16.mxu0 %v917
    %1797 = vmatpush1.bf16.msra.mxu0 %v916
    %1798 = vmatprep.subr.bf16.mxu0 %v921
    %1799 = vmatpush1.bf16.msra.mxu0 %v920
    %1800 = vmatprep.subr.bf16.mxu0 0
    %1801 = vmatpush1.bf16.msra.mxu0 0
    %1802 = vmatprep.subr.bf16.mxu0 0
    %1803 = vmatpush1.bf16.msra.mxu0 0
    %1804 = vmatprep.subr.bf16.mxu0 0
    %1805 = vmatpush1.bf16.msra.mxu0 0
    %1806 = vmatprep.subr.bf16.mxu0 0
    %1807 = vmatpush1.bf16.msra.mxu0 0
    %1808 = vmatprep.subr.bf16.mxu0 0
    %1809 = vmatpush1.bf16.msra.mxu0 0
    %1810 = vmatprep.subr.bf16.mxu0 0
    %1811 = vmatpush1.bf16.msra.mxu0 0
    %1812 = vmatprep.subr.bf16.mxu0 0
    %1813 = vmatpush1.bf16.msra.mxu0 0
    %1814 = vmatprep.subr.bf16.mxu0 0
    %1815 = vmatpush1.bf16.msra.mxu0 0
    %1816 = vmatprep.mubr.bf16.mxu0 0
    %1817 = vmatmul.mubr.bf16.gmra.mrb[0].mxu0 %v1783
    %v1818 = vpop.f32.mrb[0].mxu0
    %v1819 = vadd.f32 0.0, %v1818
    %v1820 = vpop.f32.mrb[0].mxu0
    %v1821 = vadd.f32 0.0, %v1820
    %v1822 = vpop.f32.mrb[0].mxu0
    %v1823 = vpop.f32.mrb[0].mxu0
    %1824 = vdwg.mxu0
    %1825 = vmatprep.subr.bf16.mxu0 %v895
    %1826 = vmatpush1.bf16.msra.mxu0 %v894
    %1827 = vmatprep.subr.bf16.mxu0 %v899
    %1828 = vmatpush1.bf16.msra.mxu0 %v898
    %1829 = vmatprep.subr.bf16.mxu0 %v903
    %1830 = vmatpush1.bf16.msra.mxu0 %v902
    %1831 = vmatprep.subr.bf16.mxu0 %v907
    %1832 = vmatpush1.bf16.msra.mxu0 %v906
    %1833 = vmatprep.subr.bf16.mxu0 %v911
    %1834 = vmatpush1.bf16.msra.mxu0 %v910
    %1835 = vmatprep.subr.bf16.mxu0 %v915
    %1836 = vmatpush1.bf16.msra.mxu0 %v914
    %1837 = vmatprep.subr.bf16.mxu0 %v919
    %1838 = vmatpush1.bf16.msra.mxu0 %v918
    %1839 = vmatprep.subr.bf16.mxu0 %v923
    %1840 = vmatpush1.bf16.msra.mxu0 %v922
    %1841 = vmatprep.subr.bf16.mxu0 0
    %1842 = vmatpush1.bf16.msra.mxu0 0
    %1843 = vmatprep.subr.bf16.mxu0 0
    %1844 = vmatpush1.bf16.msra.mxu0 0
    %1845 = vmatprep.subr.bf16.mxu0 0
    %1846 = vmatpush1.bf16.msra.mxu0 0
    %1847 = vmatprep.subr.bf16.mxu0 0
    %1848 = vmatpush1.bf16.msra.mxu0 0
    %1849 = vmatprep.subr.bf16.mxu0 0
    %1850 = vmatpush1.bf16.msra.mxu0 0
    %1851 = vmatprep.subr.bf16.mxu0 0
    %1852 = vmatpush1.bf16.msra.mxu0 0
    %1853 = vmatprep.subr.bf16.mxu0 0
    %1854 = vmatpush1.bf16.msra.mxu0 0
    %1855 = vmatprep.subr.bf16.mxu0 0
    %1856 = vmatpush1.bf16.msra.mxu0 0
    %1857 = vmatprep.mubr.bf16.mxu0 0
    %1858 = vmatmul.mubr.bf16.gmra.mrb[0].mxu0 %v1783
    %v1859 = vpop.f32.mrb[0].mxu0
    %v1860 = vadd.f32 0.0, %v1859
    %v1861 = vpop.f32.mrb[0].mxu0
    %v1862 = vadd.f32 0.0, %v1861
    %v1863 = vpop.f32.mrb[0].mxu0
    %v1864 = vpop.f32.mrb[0].mxu0
    %1865 = vdwg.mxu0
    %v1866 = vadd.f32 %v1042, %v1819
    %v1867 = vadd.f32 %v1046, %v1821
    %v1868 = vadd.f32 %v1050, %v1860
    %v1869 = vadd.f32 %v1054, %v1862
    %v1870 = vpack.c.bf16 %v1672, %v1672
    %1871 = vmatprep.subr.bf16.mxu0 %v1192
    %1872 = vmatpush1.bf16.msra.mxu0 %v1191
    %1873 = vmatprep.subr.bf16.mxu0 %v1196
    %1874 = vmatpush1.bf16.msra.mxu0 %v1195
    %1875 = vmatprep.subr.bf16.mxu0 %v1200
    %1876 = vmatpush1.bf16.msra.mxu0 %v1199
    %1877 = vmatprep.subr.bf16.mxu0 %v1204
    %1878 = vmatpush1.bf16.msra.mxu0 %v1203
    %1879 = vmatprep.subr.bf16.mxu0 %v1208
    %1880 = vmatpush1.bf16.msra.mxu0 %v1207
    %1881 = vmatprep.subr.bf16.mxu0 %v1212
    %1882 = vmatpush1.bf16.msra.mxu0 %v1211
    %1883 = vmatprep.subr.bf16.mxu0 %v1216
    %1884 = vmatpush1.bf16.msra.mxu0 %v1215
    %1885 = vmatprep.subr.bf16.mxu0 %v1220
    %1886 = vmatpush1.bf16.msra.mxu0 %v1219
    %1887 = vmatprep.subr.bf16.mxu0 0
    %1888 = vmatpush1.bf16.msra.mxu0 0
    %1889 = vmatprep.subr.bf16.mxu0 0
    %1890 = vmatpush1.bf16.msra.mxu0 0
    %1891 = vmatprep.subr.bf16.mxu0 0
    %1892 = vmatpush1.bf16.msra.mxu0 0
    %1893 = vmatprep.subr.bf16.mxu0 0
    %1894 = vmatpush1.bf16.msra.mxu0 0
    %1895 = vmatprep.subr.bf16.mxu0 0
    %1896 = vmatpush1.bf16.msra.mxu0 0
    %1897 = vmatprep.subr.bf16.mxu0 0
    %1898 = vmatpush1.bf16.msra.mxu0 0
    %1899 = vmatprep.subr.bf16.mxu0 0
    %1900 = vmatpush1.bf16.msra.mxu0 0
    %1901 = vmatprep.subr.bf16.mxu0 0
    %1902 = vmatpush1.bf16.msra.mxu0 0
    %1903 = vmatprep.mubr.bf16.mxu0 0
    %1904 = vmatmul.mubr.bf16.gmra.mrb[0].mxu0 %v1870
    %v1905 = vpop.f32.mrb[0].mxu0
    %v1906 = vadd.f32 0.0, %v1905
    %v1907 = vpop.f32.mrb[0].mxu0
    %v1908 = vadd.f32 0.0, %v1907
    %v1909 = vpop.f32.mrb[0].mxu0
    %v1910 = vpop.f32.mrb[0].mxu0
    %1911 = vdwg.mxu0
    %1912 = vmatprep.subr.bf16.mxu0 %v1194
    %1913 = vmatpush1.bf16.msra.mxu0 %v1193
    %1914 = vmatprep.subr.bf16.mxu0 %v1198
    %1915 = vmatpush1.bf16.msra.mxu0 %v1197
    %1916 = vmatprep.subr.bf16.mxu0 %v1202
    %1917 = vmatpush1.bf16.msra.mxu0 %v1201
    %1918 = vmatprep.subr.bf16.mxu0 %v1206
    %1919 = vmatpush1.bf16.msra.mxu0 %v1205
    %1920 = vmatprep.subr.bf16.mxu0 %v1210
    %1921 = vmatpush1.bf16.msra.mxu0 %v1209
    %1922 = vmatprep.subr.bf16.mxu0 %v1214
    %1923 = vmatpush1.bf16.msra.mxu0 %v1213
    %1924 = vmatprep.subr.bf16.mxu0 %v1218
    %1925 = vmatpush1.bf16.msra.mxu0 %v1217
    %1926 = vmatprep.subr.bf16.mxu0 %v1222
    %1927 = vmatpush1.bf16.msra.mxu0 %v1221
    %1928 = vmatprep.subr.bf16.mxu0 0
    %1929 = vmatpush1.bf16.msra.mxu0 0
    %1930 = vmatprep.subr.bf16.mxu0 0
    %1931 = vmatpush1.bf16.msra.mxu0 0
    %1932 = vmatprep.subr.bf16.mxu0 0
    %1933 = vmatpush1.bf16.msra.mxu0 0
    %1934 = vmatprep.subr.bf16.mxu0 0
    %1935 = vmatpush1.bf16.msra.mxu0 0
    %1936 = vmatprep.subr.bf16.mxu0 0
    %1937 = vmatpush1.bf16.msra.mxu0 0
    %1938 = vmatprep.subr.bf16.mxu0 0
    %1939 = vmatpush1.bf16.msra.mxu0 0
    %1940 = vmatprep.subr.bf16.mxu0 0
    %1941 = vmatpush1.bf16.msra.mxu0 0
    %1942 = vmatprep.subr.bf16.mxu0 0
    %1943 = vmatpush1.bf16.msra.mxu0 0
    %1944 = vmatprep.mubr.bf16.mxu0 0
    %1945 = vmatmul.mubr.bf16.gmra.mrb[0].mxu0 %v1870
    %v1946 = vpop.f32.mrb[0].mxu0
    %v1947 = vadd.f32 0.0, %v1946
    %v1948 = vpop.f32.mrb[0].mxu0
    %v1949 = vadd.f32 0.0, %v1948
    %v1950 = vpop.f32.mrb[0].mxu0
    %v1951 = vpop.f32.mrb[0].mxu0
    %1952 = vdwg.mxu0
    %v1953 = vadd.f32 %v1866, %v1906
    %v1954 = vadd.f32 %v1867, %v1908
    %v1955 = vadd.f32 %v1868, %v1947
    %v1956 = vadd.f32 %v1869, %v1949
    %v1957 = vxor.u32 %v1953, 2147483648
    %v1958 = vxor.u32 %v1954, 2147483648
    %v1959 = vxor.u32 %v1955, 2147483648
    %v1960 = vmul.f32 %v1957, 1.442695
    %v1961 = vpow.pop %v1960
    %v1962 = vmul.f32 %v1958, 1.442695
    %v1963 = vpow.pop %v1962
    %v1964 = vmul.f32 %v1959, 1.442695
    %v1965 = vpow.pop %v1964
    %v1966 = vadd.f32 %v1961, 1.0
    %v1967 = vadd.f32 %v1963, 1.0
    %v1968 = vadd.f32 %v1965, 1.0
    %v1969 = vrcp.pop %v1966
    %v1970 = vmul.f32 1.0, %v1969
    %v1971 = vrcp.pop %v1967
    %v1972 = vmul.f32 1.0, %v1971
    %v1973 = vrcp.pop %v1968
    %v1974 = vmul.f32 1.0, %v1973
    %v1975 = vtanh.pop %v1956
    %v1976 = vmul.f32 %v1972, %v1670
    %v1977 = vmul.f32 %v1970, %v1975
    %v1978 = vadd.f32 %v1976, %v1977
    %v1979 = vtanh.pop %v1978
    %v1980 = vmul.f32 %v1974, %v1979
    %1981 = vmatprep.subr.bf16.mxu0 %v589
    %1982 = vmatpush1.bf16.msra.mxu0 %v588
    %1983 = vmatprep.subr.bf16.mxu0 %v593
    %1984 = vmatpush1.bf16.msra.mxu0 %v592
    %1985 = vmatprep.subr.bf16.mxu0 %v597
    %1986 = vmatpush1.bf16.msra.mxu0 %v596
    %1987 = vmatprep.subr.bf16.mxu0 %v601
    %1988 = vmatpush1.bf16.msra.mxu0 %v600
    %1989 = vmatprep.subr.bf16.mxu0 %v605
    %1990 = vmatpush1.bf16.msra.mxu0 %v604
    %1991 = vmatprep.subr.bf16.mxu0 %v609
    %1992 = vmatpush1.bf16.msra.mxu0 %v608
    %1993 = vmatprep.subr.bf16.mxu0 %v613
    %1994 = vmatpush1.bf16.msra.mxu0 %v612
    %1995 = vmatprep.subr.bf16.mxu0 %v617
    %1996 = vmatpush1.bf16.msra.mxu0 %v616
    %1997 = vmatprep.subr.bf16.mxu0 0
    %1998 = vmatpush1.bf16.msra.mxu0 0
    %1999 = vmatprep.subr.bf16.mxu0 0
    %2000 = vmatpush1.bf16.msra.mxu0 0
    %2001 = vmatprep.subr.bf16.mxu0 0
    %2002 = vmatpush1.bf16.msra.mxu0 0
    %2003 = vmatprep.subr.bf16.mxu0 0
    %2004 = vmatpush1.bf16.msra.mxu0 0
    %2005 = vmatprep.subr.bf16.mxu0 0
    %2006 = vmatpush1.bf16.msra.mxu0 0
    %2007 = vmatprep.subr.bf16.mxu0 0
    %2008 = vmatpush1.bf16.msra.mxu0 0
    %2009 = vmatprep.subr.bf16.mxu0 0
    %2010 = vmatpush1.bf16.msra.mxu0 0
    %2011 = vmatprep.subr.bf16.mxu0 0
    %2012 = vmatpush1.bf16.msra.mxu0 0
    %2013 = vmatprep.mubr.bf16.mxu0 0
    %2014 = vmatmul.mubr.bf16.gmra.mrb[0].mxu0 %v1783
    %v2015 = vpop.f32.mrb[0].mxu0
    %v2016 = vadd.f32 0.0, %v2015
    %v2017 = vpop.f32.mrb[0].mxu0
    %v2018 = vadd.f32 0.0, %v2017
    %v2019 = vpop.f32.mrb[0].mxu0
    %v2020 = vpop.f32.mrb[0].mxu0
    %2021 = vdwg.mxu0
    %2022 = vmatprep.subr.bf16.mxu0 %v591
    %2023 = vmatpush1.bf16.msra.mxu0 %v590
    %2024 = vmatprep.subr.bf16.mxu0 %v595
    %2025 = vmatpush1.bf16.msra.mxu0 %v594
    %2026 = vmatprep.subr.bf16.mxu0 %v599
    %2027 = vmatpush1.bf16.msra.mxu0 %v598
    %2028 = vmatprep.subr.bf16.mxu0 %v603
    %2029 = vmatpush1.bf16.msra.mxu0 %v602
    %2030 = vmatprep.subr.bf16.mxu0 %v607
    %2031 = vmatpush1.bf16.msra.mxu0 %v606
    %2032 = vmatprep.subr.bf16.mxu0 %v611
    %2033 = vmatpush1.bf16.msra.mxu0 %v610
    %2034 = vmatprep.subr.bf16.mxu0 %v615
    %2035 = vmatpush1.bf16.msra.mxu0 %v614
    %2036 = vmatprep.subr.bf16.mxu0 %v619
    %2037 = vmatpush1.bf16.msra.mxu0 %v618
    %2038 = vmatprep.subr.bf16.mxu0 0
    %2039 = vmatpush1.bf16.msra.mxu0 0
    %2040 = vmatprep.subr.bf16.mxu0 0
    %2041 = vmatpush1.bf16.msra.mxu0 0
    %2042 = vmatprep.subr.bf16.mxu0 0
    %2043 = vmatpush1.bf16.msra.mxu0 0
    %2044 = vmatprep.subr.bf16.mxu0 0
    %2045 = vmatpush1.bf16.msra.mxu0 0
    %2046 = vmatprep.subr.bf16.mxu0 0
    %2047 = vmatpush1.bf16.msra.mxu0 0
    %2048 = vmatprep.subr.bf16.mxu0 0
    %2049 = vmatpush1.bf16.msra.mxu0 0
    %2050 = vmatprep.subr.bf16.mxu0 0
    %2051 = vmatpush1.bf16.msra.mxu0 0
    %2052 = vmatprep.subr.bf16.mxu0 0
    %2053 = vmatpush1.bf16.msra.mxu0 0
    %2054 = vmatprep.mubr.bf16.mxu0 0
    %2055 = vmatmul.mubr.bf16.gmra.mrb[0].mxu0 %v1783
    %v2056 = vpop.f32.mrb[0].mxu0
    %v2057 = vadd.f32 0.0, %v2056
    %v2058 = vpop.f32.mrb[0].mxu0
    %v2059 = vadd.f32 0.0, %v2058
    %v2060 = vpop.f32.mrb[0].mxu0
    %v2061 = vpop.f32.mrb[0].mxu0
    %2062 = vdwg.mxu0
    %v2063 = vadd.f32 %v363, %v2016
    %v2064 = vadd.f32 %v365, %v2018
    %v2065 = vadd.f32 %v436, %v2057
    %v2066 = vadd.f32 %v438, %v2059
    %v2067 = vxor.u32 %v2063, 2147483648
    %v2068 = vxor.u32 %v2064, 2147483648
    %v2069 = vxor.u32 %v2065, 2147483648
    %v2070 = vmul.f32 %v2067, 1.442695
    %v2071 = vpow.pop %v2070
    %v2072 = vmul.f32 %v2068, 1.442695
    %v2073 = vpow.pop %v2072
    %v2074 = vmul.f32 %v2069, 1.442695
    %v2075 = vpow.pop %v2074
    %v2076 = vadd.f32 %v2071, 1.0
    %v2077 = vadd.f32 %v2073, 1.0
    %v2078 = vadd.f32 %v2075, 1.0
    %v2079 = vrcp.pop %v2076
    %v2080 = vmul.f32 1.0, %v2079
    %v2081 = vrcp.pop %v2077
    %v2082 = vmul.f32 1.0, %v2081
    %v2083 = vrcp.pop %v2078
    %v2084 = vmul.f32 1.0, %v2083
    %v2085 = vtanh.pop %v2066
    %v2086 = vmul.f32 %v2082, %v1780
    %v2087 = vmul.f32 %v2080, %v2085
    %v2088 = vadd.f32 %v2086, %v2087
    %v2089 = vtanh.pop %v2088
    %v2090 = vmul.f32 %v2084, %v2089
    %v2091 = vpack.c.bf16 %v2090, %v2090
    %2092 = vmatprep.subr.bf16.mxu0 %v893
    %2093 = vmatpush1.bf16.msra.mxu0 %v892
    %2094 = vmatprep.subr.bf16.mxu0 %v897
    %2095 = vmatpush1.bf16.msra.mxu0 %v896
    %2096 = vmatprep.subr.bf16.mxu0 %v901
    %2097 = vmatpush1.bf16.msra.mxu0 %v900
    %2098 = vmatprep.subr.bf16.mxu0 %v905
    %2099 = vmatpush1.bf16.msra.mxu0 %v904
    %2100 = vmatprep.subr.bf16.mxu0 %v909
    %2101 = vmatpush1.bf16.msra.mxu0 %v908
    %2102 = vmatprep.subr.bf16.mxu0 %v913
    %2103 = vmatpush1.bf16.msra.mxu0 %v912
    %2104 = vmatprep.subr.bf16.mxu0 %v917
    %2105 = vmatpush1.bf16.msra.mxu0 %v916
    %2106 = vmatprep.subr.bf16.mxu0 %v921
    %2107 = vmatpush1.bf16.msra.mxu0 %v920
    %2108 = vmatprep.subr.bf16.mxu0 0
    %2109 = vmatpush1.bf16.msra.mxu0 0
    %2110 = vmatprep.subr.bf16.mxu0 0
    %2111 = vmatpush1.bf16.msra.mxu0 0
    %2112 = vmatprep.subr.bf16.mxu0 0
    %2113 = vmatpush1.bf16.msra.mxu0 0
    %2114 = vmatprep.subr.bf16.mxu0 0
    %2115 = vmatpush1.bf16.msra.mxu0 0
    %2116 = vmatprep.subr.bf16.mxu0 0
    %2117 = vmatpush1.bf16.msra.mxu0 0
    %2118 = vmatprep.subr.bf16.mxu0 0
    %2119 = vmatpush1.bf16.msra.mxu0 0
    %2120 = vmatprep.subr.bf16.mxu0 0
    %2121 = vmatpush1.bf16.msra.mxu0 0
    %2122 = vmatprep.subr.bf16.mxu0 0
    %2123 = vmatpush1.bf16.msra.mxu0 0
    %2124 = vmatprep.mubr.bf16.mxu0 0
    %2125 = vmatmul.mubr.bf16.gmra.mrb[0].mxu0 %v2091
    %v2126 = vpop.f32.mrb[0].mxu0
    %v2127 = vadd.f32 0.0, %v2126
    %v2128 = vpop.f32.mrb[0].mxu0
    %v2129 = vadd.f32 0.0, %v2128
    %v2130 = vpop.f32.mrb[0].mxu0
    %v2131 = vpop.f32.mrb[0].mxu0
    %2132 = vdwg.mxu0
    %2133 = vmatprep.subr.bf16.mxu0 %v895
    %2134 = vmatpush1.bf16.msra.mxu0 %v894
    %2135 = vmatprep.subr.bf16.mxu0 %v899
    %2136 = vmatpush1.bf16.msra.mxu0 %v898
    %2137 = vmatprep.subr.bf16.mxu0 %v903
    %2138 = vmatpush1.bf16.msra.mxu0 %v902
    %2139 = vmatprep.subr.bf16.mxu0 %v907
    %2140 = vmatpush1.bf16.msra.mxu0 %v906
    %2141 = vmatprep.subr.bf16.mxu0 %v911
    %2142 = vmatpush1.bf16.msra.mxu0 %v910
    %2143 = vmatprep.subr.bf16.mxu0 %v915
    %2144 = vmatpush1.bf16.msra.mxu0 %v914
    %2145 = vmatprep.subr.bf16.mxu0 %v919
    %2146 = vmatpush1.bf16.msra.mxu0 %v918
    %2147 = vmatprep.subr.bf16.mxu0 %v923
    %2148 = vmatpush1.bf16.msra.mxu0 %v922
    %2149 = vmatprep.subr.bf16.mxu0 0
    %2150 = vmatpush1.bf16.msra.mxu0 0
    %2151 = vmatprep.subr.bf16.mxu0 0
    %2152 = vmatpush1.bf16.msra.mxu0 0
    %2153 = vmatprep.subr.bf16.mxu0 0
    %2154 = vmatpush1.bf16.msra.mxu0 0
    %2155 = vmatprep.subr.bf16.mxu0 0
    %2156 = vmatpush1.bf16.msra.mxu0 0
    %2157 = vmatprep.subr.bf16.mxu0 0
    %2158 = vmatpush1.bf16.msra.mxu0 0
    %2159 = vmatprep.subr.bf16.mxu0 0
    %2160 = vmatpush1.bf16.msra.mxu0 0
    %2161 = vmatprep.subr.bf16.mxu0 0
    %2162 = vmatpush1.bf16.msra.mxu0 0
    %2163 = vmatprep.subr.bf16.mxu0 0
    %2164 = vmatpush1.bf16.msra.mxu0 0
    %2165 = vmatprep.mubr.bf16.mxu0 0
    %2166 = vmatmul.mubr.bf16.gmra.mrb[0].mxu0 %v2091
    %v2167 = vpop.f32.mrb[0].mxu0
    %v2168 = vadd.f32 0.0, %v2167
    %v2169 = vpop.f32.mrb[0].mxu0
    %v2170 = vadd.f32 0.0, %v2169
    %v2171 = vpop.f32.mrb[0].mxu0
    %v2172 = vpop.f32.mrb[0].mxu0
    %2173 = vdwg.mxu0
    %v2174 = vadd.f32 %v1042, %v2127
    %v2175 = vadd.f32 %v1046, %v2129
    %v2176 = vadd.f32 %v1050, %v2168
    %v2177 = vadd.f32 %v1054, %v2170
    %v2178 = vpack.c.bf16 %v1980, %v1980
    %2179 = vmatprep.subr.bf16.mxu0 %v1192
    %2180 = vmatpush1.bf16.msra.mxu0 %v1191
    %2181 = vmatprep.subr.bf16.mxu0 %v1196
    %2182 = vmatpush1.bf16.msra.mxu0 %v1195
    %2183 = vmatprep.subr.bf16.mxu0 %v1200
    %2184 = vmatpush1.bf16.msra.mxu0 %v1199
    %2185 = vmatprep.subr.bf16.mxu0 %v1204
    %2186 = vmatpush1.bf16.msra.mxu0 %v1203
    %2187 = vmatprep.subr.bf16.mxu0 %v1208
    %2188 = vmatpush1.bf16.msra.mxu0 %v1207
    %2189 = vmatprep.subr.bf16.mxu0 %v1212
    %2190 = vmatpush1.bf16.msra.mxu0 %v1211
    %2191 = vmatprep.subr.bf16.mxu0 %v1216
    %2192 = vmatpush1.bf16.msra.mxu0 %v1215
    %2193 = vmatprep.subr.bf16.mxu0 %v1220
    %2194 = vmatpush1.bf16.msra.mxu0 %v1219
    %2195 = vmatprep.subr.bf16.mxu0 0
    %2196 = vmatpush1.bf16.msra.mxu0 0
    %2197 = vmatprep.subr.bf16.mxu0 0
    %2198 = vmatpush1.bf16.msra.mxu0 0
    %2199 = vmatprep.subr.bf16.mxu0 0
    %2200 = vmatpush1.bf16.msra.mxu0 0
    %2201 = vmatprep.subr.bf16.mxu0 0
    %2202 = vmatpush1.bf16.msra.mxu0 0
    %2203 = vmatprep.subr.bf16.mxu0 0
    %2204 = vmatpush1.bf16.msra.mxu0 0
    %2205 = vmatprep.subr.bf16.mxu0 0
    %2206 = vmatpush1.bf16.msra.mxu0 0
    %2207 = vmatprep.subr.bf16.mxu0 0
    %2208 = vmatpush1.bf16.msra.mxu0 0
    %2209 = vmatprep.subr.bf16.mxu0 0
    %2210 = vmatpush1.bf16.msra.mxu0 0
    %2211 = vmatprep.mubr.bf16.mxu0 0
    %2212 = vmatmul.mubr.bf16.gmra.mrb[0].mxu0 %v2178
    %v2213 = vpop.f32.mrb[0].mxu0
    %v2214 = vadd.f32 0.0, %v2213
    %v2215 = vpop.f32.mrb[0].mxu0
    %v2216 = vadd.f32 0.0, %v2215
    %v2217 = vpop.f32.mrb[0].mxu0
    %v2218 = vpop.f32.mrb[0].mxu0
    %2219 = vdwg.mxu0
    %2220 = vmatprep.subr.bf16.mxu0 %v1194
    %2221 = vmatpush1.bf16.msra.mxu0 %v1193
    %2222 = vmatprep.subr.bf16.mxu0 %v1198
    %2223 = vmatpush1.bf16.msra.mxu0 %v1197
    %2224 = vmatprep.subr.bf16.mxu0 %v1202
    %2225 = vmatpush1.bf16.msra.mxu0 %v1201
    %2226 = vmatprep.subr.bf16.mxu0 %v1206
    %2227 = vmatpush1.bf16.msra.mxu0 %v1205
    %2228 = vmatprep.subr.bf16.mxu0 %v1210
    %2229 = vmatpush1.bf16.msra.mxu0 %v1209
    %2230 = vmatprep.subr.bf16.mxu0 %v1214
    %2231 = vmatpush1.bf16.msra.mxu0 %v1213
    %2232 = vmatprep.subr.bf16.mxu0 %v1218
    %2233 = vmatpush1.bf16.msra.mxu0 %v1217
    %2234 = vmatprep.subr.bf16.mxu0 %v1222
    %2235 = vmatpush1.bf16.msra.mxu0 %v1221
    %2236 = vmatprep.subr.bf16.mxu0 0
    %2237 = vmatpush1.bf16.msra.mxu0 0
    %2238 = vmatprep.subr.bf16.mxu0 0
    %2239 = vmatpush1.bf16.msra.mxu0 0
    %2240 = vmatprep.subr.bf16.mxu0 0
    %2241 = vmatpush1.bf16.msra.mxu0 0
    %2242 = vmatprep.subr.bf16.mxu0 0
    %2243 = vmatpush1.bf16.msra.mxu0 0
    %2244 = vmatprep.subr.bf16.mxu0 0
    %2245 = vmatpush1.bf16.msra.mxu0 0
    %2246 = vmatprep.subr.bf16.mxu0 0
    %2247 = vmatpush1.bf16.msra.mxu0 0
    %2248 = vmatprep.subr.bf16.mxu0 0
    %2249 = vmatpush1.bf16.msra.mxu0 0
    %2250 = vmatprep.subr.bf16.mxu0 0
    %2251 = vmatpush1.bf16.msra.mxu0 0
    %2252 = vmatprep.mubr.bf16.mxu0 0
    %2253 = vmatmul.mubr.bf16.gmra.mrb[0].mxu0 %v2178
    %v2254 = vpop.f32.mrb[0].mxu0
    %v2255 = vadd.f32 0.0, %v2254
    %v2256 = vpop.f32.mrb[0].mxu0
    %v2257 = vadd.f32 0.0, %v2256
    %v2258 = vpop.f32.mrb[0].mxu0
    %v2259 = vpop.f32.mrb[0].mxu0
    %2260 = vdwg.mxu0
    %v2261 = vadd.f32 %v2174, %v2214
    %v2262 = vadd.f32 %v2175, %v2216
    %v2263 = vadd.f32 %v2176, %v2255
    %v2264 = vadd.f32 %v2177, %v2257
    %v2265 = vxor.u32 %v2261, 2147483648
    %v2266 = vxor.u32 %v2262, 2147483648
    %v2267 = vxor.u32 %v2263, 2147483648
    %v2268 = vmul.f32 %v2265, 1.442695
    %v2269 = vpow.pop %v2268
    %v2270 = vmul.f32 %v2266, 1.442695
    %v2271 = vpow.pop %v2270
    %v2272 = vmul.f32 %v2267, 1.442695
    %v2273 = vpow.pop %v2272
    %v2274 = vadd.f32 %v2269, 1.0
    %v2275 = vadd.f32 %v2271, 1.0
    %v2276 = vadd.f32 %v2273, 1.0
    %v2277 = vrcp.pop %v2274
    %v2278 = vmul.f32 1.0, %v2277
    %v2279 = vrcp.pop %v2275
    %v2280 = vmul.f32 1.0, %v2279
    %v2281 = vrcp.pop %v2276
    %v2282 = vmul.f32 1.0, %v2281
    %v2283 = vtanh.pop %v2264
    %v2284 = vmul.f32 %v2280, %v1978
    %v2285 = vmul.f32 %v2278, %v2283
    %v2286 = vadd.f32 %v2284, %v2285
    %v2287 = vtanh.pop %v2286
    %v2288 = vmul.f32 %v2282, %v2287
    %2289 = vmatprep.subr.bf16.mxu0 %v589
    %2290 = vmatpush1.bf16.msra.mxu0 %v588
    %2291 = vmatprep.subr.bf16.mxu0 %v593
    %2292 = vmatpush1.bf16.msra.mxu0 %v592
    %2293 = vmatprep.subr.bf16.mxu0 %v597
    %2294 = vmatpush1.bf16.msra.mxu0 %v596
    %2295 = vmatprep.subr.bf16.mxu0 %v601
    %2296 = vmatpush1.bf16.msra.mxu0 %v600
    %2297 = vmatprep.subr.bf16.mxu0 %v605
    %2298 = vmatpush1.bf16.msra.mxu0 %v604
    %2299 = vmatprep.subr.bf16.mxu0 %v609
    %2300 = vmatpush1.bf16.msra.mxu0 %v608
    %2301 = vmatprep.subr.bf16.mxu0 %v613
    %2302 = vmatpush1.bf16.msra.mxu0 %v612
    %2303 = vmatprep.subr.bf16.mxu0 %v617
    %2304 = vmatpush1.bf16.msra.mxu0 %v616
    %2305 = vmatprep.subr.bf16.mxu0 0
    %2306 = vmatpush1.bf16.msra.mxu0 0
    %2307 = vmatprep.subr.bf16.mxu0 0
    %2308 = vmatpush1.bf16.msra.mxu0 0
    %2309 = vmatprep.subr.bf16.mxu0 0
    %2310 = vmatpush1.bf16.msra.mxu0 0
    %2311 = vmatprep.subr.bf16.mxu0 0
    %2312 = vmatpush1.bf16.msra.mxu0 0
    %2313 = vmatprep.subr.bf16.mxu0 0
    %2314 = vmatpush1.bf16.msra.mxu0 0
    %2315 = vmatprep.subr.bf16.mxu0 0
    %2316 = vmatpush1.bf16.msra.mxu0 0
    %2317 = vmatprep.subr.bf16.mxu0 0
    %2318 = vmatpush1.bf16.msra.mxu0 0
    %2319 = vmatprep.subr.bf16.mxu0 0
    %2320 = vmatpush1.bf16.msra.mxu0 0
    %2321 = vmatprep.mubr.bf16.mxu0 0
    %2322 = vmatmul.mubr.bf16.gmra.mrb[0].mxu0 %v2091
    %v2323 = vpop.f32.mrb[0].mxu0
    %v2324 = vadd.f32 0.0, %v2323
    %v2325 = vpop.f32.mrb[0].mxu0
    %v2326 = vadd.f32 0.0, %v2325
    %v2327 = vpop.f32.mrb[0].mxu0
    %v2328 = vpop.f32.mrb[0].mxu0
    %2329 = vdwg.mxu0
    %2330 = vmatprep.subr.bf16.mxu0 %v591
    %2331 = vmatpush1.bf16.msra.mxu0 %v590
    %2332 = vmatprep.subr.bf16.mxu0 %v595
    %2333 = vmatpush1.bf16.msra.mxu0 %v594
    %2334 = vmatprep.subr.bf16.mxu0 %v599
    %2335 = vmatpush1.bf16.msra.mxu0 %v598
    %2336 = vmatprep.subr.bf16.mxu0 %v603
    %2337 = vmatpush1.bf16.msra.mxu0 %v602
    %2338 = vmatprep.subr.bf16.mxu0 %v607
    %2339 = vmatpush1.bf16.msra.mxu0 %v606
    %2340 = vmatprep.subr.bf16.mxu0 %v611
    %2341 = vmatpush1.bf16.msra.mxu0 %v610
    %2342 = vmatprep.subr.bf16.mxu0 %v615
    %2343 = vmatpush1.bf16.msra.mxu0 %v614
    %2344 = vmatprep.subr.bf16.mxu0 %v619
    %2345 = vmatpush1.bf16.msra.mxu0 %v618
    %2346 = vmatprep.subr.bf16.mxu0 0
    %2347 = vmatpush1.bf16.msra.mxu0 0
    %2348 = vmatprep.subr.bf16.mxu0 0
    %2349 = vmatpush1.bf16.msra.mxu0 0
    %2350 = vmatprep.subr.bf16.mxu0 0
    %2351 = vmatpush1.bf16.msra.mxu0 0
    %2352 = vmatprep.subr.bf16.mxu0 0
    %2353 = vmatpush1.bf16.msra.mxu0 0
    %2354 = vmatprep.subr.bf16.mxu0 0
    %2355 = vmatpush1.bf16.msra.mxu0 0
    %2356 = vmatprep.subr.bf16.mxu0 0
    %2357 = vmatpush1.bf16.msra.mxu0 0
    %2358 = vmatprep.subr.bf16.mxu0 0
    %2359 = vmatpush1.bf16.msra.mxu0 0
    %2360 = vmatprep.subr.bf16.mxu0 0
    %2361 = vmatpush1.bf16.msra.mxu0 0
    %2362 = vmatprep.mubr.bf16.mxu0 0
    %2363 = vmatmul.mubr.bf16.gmra.mrb[0].mxu0 %v2091
    %v2364 = vpop.f32.mrb[0].mxu0
    %v2365 = vadd.f32 0.0, %v2364
    %v2366 = vpop.f32.mrb[0].mxu0
    %v2367 = vadd.f32 0.0, %v2366
    %v2368 = vpop.f32.mrb[0].mxu0
    %v2369 = vpop.f32.mrb[0].mxu0
    %2370 = vdwg.mxu0
    %v2371 = vadd.f32 %v369, %v2324
    %v2372 = vadd.f32 %v371, %v2326
    %v2373 = vadd.f32 %v442, %v2365
    %v2374 = vadd.f32 %v444, %v2367
    %v2375 = vxor.u32 %v2371, 2147483648
    %v2376 = vxor.u32 %v2372, 2147483648
    %v2377 = vxor.u32 %v2373, 2147483648
    %v2378 = vmul.f32 %v2375, 1.442695
    %v2379 = vpow.pop %v2378
    %v2380 = vmul.f32 %v2376, 1.442695
    %v2381 = vpow.pop %v2380
    %v2382 = vmul.f32 %v2377, 1.442695
    %v2383 = vpow.pop %v2382
    %v2384 = vadd.f32 %v2379, 1.0
    %v2385 = vadd.f32 %v2381, 1.0
    %v2386 = vadd.f32 %v2383, 1.0
    %v2387 = vrcp.pop %v2384
    %v2388 = vmul.f32 1.0, %v2387
    %v2389 = vrcp.pop %v2385
    %v2390 = vmul.f32 1.0, %v2389
    %v2391 = vrcp.pop %v2386
    %v2392 = vmul.f32 1.0, %v2391
    %v2393 = vtanh.pop %v2374
    %v2394 = vmul.f32 %v2390, %v2088
    %v2395 = vmul.f32 %v2388, %v2393
    %v2396 = vadd.f32 %v2394, %v2395
    %v2397 = vtanh.pop %v2396
    %v2398 = vmul.f32 %v2392, %v2397
    %v2399 = vpack.c.bf16 %v2398, %v2398
    %2400 = vmatprep.subr.bf16.mxu0 %v893
    %2401 = vmatpush1.bf16.msra.mxu0 %v892
    %2402 = vmatprep.subr.bf16.mxu0 %v897
    %2403 = vmatpush1.bf16.msra.mxu0 %v896
    %2404 = vmatprep.subr.bf16.mxu0 %v901
    %2405 = vmatpush1.bf16.msra.mxu0 %v900
    %2406 = vmatprep.subr.bf16.mxu0 %v905
    %2407 = vmatpush1.bf16.msra.mxu0 %v904
    %2408 = vmatprep.subr.bf16.mxu0 %v909
    %2409 = vmatpush1.bf16.msra.mxu0 %v908
    %2410 = vmatprep.subr.bf16.mxu0 %v913
    %2411 = vmatpush1.bf16.msra.mxu0 %v912
    %2412 = vmatprep.subr.bf16.mxu0 %v917
    %2413 = vmatpush1.bf16.msra.mxu0 %v916
    %2414 = vmatprep.subr.bf16.mxu0 %v921
    %2415 = vmatpush1.bf16.msra.mxu0 %v920
    %2416 = vmatprep.subr.bf16.mxu0 0
    %2417 = vmatpush1.bf16.msra.mxu0 0
    %2418 = vmatprep.subr.bf16.mxu0 0
    %2419 = vmatpush1.bf16.msra.mxu0 0
    %2420 = vmatprep.subr.bf16.mxu0 0
    %2421 = vmatpush1.bf16.msra.mxu0 0
    %2422 = vmatprep.subr.bf16.mxu0 0
    %2423 = vmatpush1.bf16.msra.mxu0 0
    %2424 = vmatprep.subr.bf16.mxu0 0
    %2425 = vmatpush1.bf16.msra.mxu0 0
    %2426 = vmatprep.subr.bf16.mxu0 0
    %2427 = vmatpush1.bf16.msra.mxu0 0
    %2428 = vmatprep.subr.bf16.mxu0 0
    %2429 = vmatpush1.bf16.msra.mxu0 0
    %2430 = vmatprep.subr.bf16.mxu0 0
    %2431 = vmatpush1.bf16.msra.mxu0 0
    %2432 = vmatprep.mubr.bf16.mxu0 0
    %2433 = vmatmul.mubr.bf16.gmra.mrb[0].mxu0 %v2399
    %v2434 = vpop.f32.mrb[0].mxu0
    %v2435 = vadd.f32 0.0, %v2434
    %v2436 = vpop.f32.mrb[0].mxu0
    %v2437 = vadd.f32 0.0, %v2436
    %v2438 = vpop.f32.mrb[0].mxu0
    %v2439 = vpop.f32.mrb[0].mxu0
    %2440 = vdwg.mxu0
    %2441 = vmatprep.subr.bf16.mxu0 %v895
    %2442 = vmatpush1.bf16.msra.mxu0 %v894
    %2443 = vmatprep.subr.bf16.mxu0 %v899
    %2444 = vmatpush1.bf16.msra.mxu0 %v898
    %2445 = vmatprep.subr.bf16.mxu0 %v903
    %2446 = vmatpush1.bf16.msra.mxu0 %v902
    %2447 = vmatprep.subr.bf16.mxu0 %v907
    %2448 = vmatpush1.bf16.msra.mxu0 %v906
    %2449 = vmatprep.subr.bf16.mxu0 %v911
    %2450 = vmatpush1.bf16.msra.mxu0 %v910
    %2451 = vmatprep.subr.bf16.mxu0 %v915
    %2452 = vmatpush1.bf16.msra.mxu0 %v914
    %2453 = vmatprep.subr.bf16.mxu0 %v919
    %2454 = vmatpush1.bf16.msra.mxu0 %v918
    %2455 = vmatprep.subr.bf16.mxu0 %v923
    %2456 = vmatpush1.bf16.msra.mxu0 %v922
    %2457 = vmatprep.subr.bf16.mxu0 0
    %2458 = vmatpush1.bf16.msra.mxu0 0
    %2459 = vmatprep.subr.bf16.mxu0 0
    %2460 = vmatpush1.bf16.msra.mxu0 0
    %2461 = vmatprep.subr.bf16.mxu0 0
    %2462 = vmatpush1.bf16.msra.mxu0 0
    %2463 = vmatprep.subr.bf16.mxu0 0
    %2464 = vmatpush1.bf16.msra.mxu0 0
    %2465 = vmatprep.subr.bf16.mxu0 0
    %2466 = vmatpush1.bf16.msra.mxu0 0
    %2467 = vmatprep.subr.bf16.mxu0 0
    %2468 = vmatpush1.bf16.msra.mxu0 0
    %2469 = vmatprep.subr.bf16.mxu0 0
    %2470 = vmatpush1.bf16.msra.mxu0 0
    %2471 = vmatprep.subr.bf16.mxu0 0
    %2472 = vmatpush1.bf16.msra.mxu0 0
    %2473 = vmatprep.mubr.bf16.mxu0 0
    %2474 = vmatmul.mubr.bf16.gmra.mrb[0].mxu0 %v2399
    %v2475 = vpop.f32.mrb[0].mxu0
    %v2476 = vadd.f32 0.0, %v2475
    %v2477 = vpop.f32.mrb[0].mxu0
    %v2478 = vadd.f32 0.0, %v2477
    %v2479 = vpop.f32.mrb[0].mxu0
    %v2480 = vpop.f32.mrb[0].mxu0
    %2481 = vdwg.mxu0
    %v2482 = vadd.f32 %v1042, %v2435
    %v2483 = vadd.f32 %v1046, %v2437
    %v2484 = vadd.f32 %v1050, %v2476
    %v2485 = vadd.f32 %v1054, %v2478
    %v2486 = vpack.c.bf16 %v2288, %v2288
    %2487 = vmatprep.subr.bf16.mxu0 %v1192
    %2488 = vmatpush1.bf16.msra.mxu0 %v1191
    %2489 = vmatprep.subr.bf16.mxu0 %v1196
    %2490 = vmatpush1.bf16.msra.mxu0 %v1195
    %2491 = vmatprep.subr.bf16.mxu0 %v1200
    %2492 = vmatpush1.bf16.msra.mxu0 %v1199
    %2493 = vmatprep.subr.bf16.mxu0 %v1204
    %2494 = vmatpush1.bf16.msra.mxu0 %v1203
    %2495 = vmatprep.subr.bf16.mxu0 %v1208
    %2496 = vmatpush1.bf16.msra.mxu0 %v1207
    %2497 = vmatprep.subr.bf16.mxu0 %v1212
    %2498 = vmatpush1.bf16.msra.mxu0 %v1211
    %2499 = vmatprep.subr.bf16.mxu0 %v1216
    %2500 = vmatpush1.bf16.msra.mxu0 %v1215
    %2501 = vmatprep.subr.bf16.mxu0 %v1220
    %2502 = vmatpush1.bf16.msra.mxu0 %v1219
    %2503 = vmatprep.subr.bf16.mxu0 0
    %2504 = vmatpush1.bf16.msra.mxu0 0
    %2505 = vmatprep.subr.bf16.mxu0 0
    %2506 = vmatpush1.bf16.msra.mxu0 0
    %2507 = vmatprep.subr.bf16.mxu0 0
    %2508 = vmatpush1.bf16.msra.mxu0 0
    %2509 = vmatprep.subr.bf16.mxu0 0
    %2510 = vmatpush1.bf16.msra.mxu0 0
    %2511 = vmatprep.subr.bf16.mxu0 0
    %2512 = vmatpush1.bf16.msra.mxu0 0
    %2513 = vmatprep.subr.bf16.mxu0 0
    %2514 = vmatpush1.bf16.msra.mxu0 0
    %2515 = vmatprep.subr.bf16.mxu0 0
    %2516 = vmatpush1.bf16.msra.mxu0 0
    %2517 = vmatprep.subr.bf16.mxu0 0
    %2518 = vmatpush1.bf16.msra.mxu0 0
    %2519 = vmatprep.mubr.bf16.mxu0 0
    %2520 = vmatmul.mubr.bf16.gmra.mrb[0].mxu0 %v2486
    %v2521 = vpop.f32.mrb[0].mxu0
    %v2522 = vadd.f32 0.0, %v2521
    %v2523 = vpop.f32.mrb[0].mxu0
    %v2524 = vadd.f32 0.0, %v2523
    %v2525 = vpop.f32.mrb[0].mxu0
    %v2526 = vpop.f32.mrb[0].mxu0
    %2527 = vdwg.mxu0
    %2528 = vmatprep.subr.bf16.mxu0 %v1194
    %2529 = vmatpush1.bf16.msra.mxu0 %v1193
    %2530 = vmatprep.subr.bf16.mxu0 %v1198
    %2531 = vmatpush1.bf16.msra.mxu0 %v1197
    %2532 = vmatprep.subr.bf16.mxu0 %v1202
    %2533 = vmatpush1.bf16.msra.mxu0 %v1201
    %2534 = vmatprep.subr.bf16.mxu0 %v1206
    %2535 = vmatpush1.bf16.msra.mxu0 %v1205
    %2536 = vmatprep.subr.bf16.mxu0 %v1210
    %2537 = vmatpush1.bf16.msra.mxu0 %v1209
    %2538 = vmatprep.subr.bf16.mxu0 %v1214
    %2539 = vmatpush1.bf16.msra.mxu0 %v1213
    %2540 = vmatprep.subr.bf16.mxu0 %v1218
    %2541 = vmatpush1.bf16.msra.mxu0 %v1217
    %2542 = vmatprep.subr.bf16.mxu0 %v1222
    %2543 = vmatpush1.bf16.msra.mxu0 %v1221
    %2544 = vmatprep.subr.bf16.mxu0 0
    %2545 = vmatpush1.bf16.msra.mxu0 0
    %2546 = vmatprep.subr.bf16.mxu0 0
    %2547 = vmatpush1.bf16.msra.mxu0 0
    %2548 = vmatprep.subr.bf16.mxu0 0
    %2549 = vmatpush1.bf16.msra.mxu0 0
    %2550 = vmatprep.subr.bf16.mxu0 0
    %2551 = vmatpush1.bf16.msra.mxu0 0
    %2552 = vmatprep.subr.bf16.mxu0 0
    %2553 = vmatpush1.bf16.msra.mxu0 0
    %2554 = vmatprep.subr.bf16.mxu0 0
    %2555 = vmatpush1.bf16.msra.mxu0 0
    %2556 = vmatprep.subr.bf16.mxu0 0
    %2557 = vmatpush1.bf16.msra.mxu0 0
    %2558 = vmatprep.subr.bf16.mxu0 0
    %2559 = vmatpush1.bf16.msra.mxu0 0
    %2560 = vmatprep.mubr.bf16.mxu0 0
    %2561 = vmatmul.mubr.bf16.gmra.mrb[0].mxu0 %v2486
    %v2562 = vpop.f32.mrb[0].mxu0
    %v2563 = vadd.f32 0.0, %v2562
    %v2564 = vpop.f32.mrb[0].mxu0
    %v2565 = vadd.f32 0.0, %v2564
    %v2566 = vpop.f32.mrb[0].mxu0
    %v2567 = vpop.f32.mrb[0].mxu0
    %2568 = vdwg.mxu0
    %v2569 = vadd.f32 %v2482, %v2522
    %v2570 = vadd.f32 %v2483, %v2524
    %v2571 = vadd.f32 %v2484, %v2563
    %v2572 = vadd.f32 %v2485, %v2565
    %v2573 = vxor.u32 %v2569, 2147483648
    %v2574 = vxor.u32 %v2570, 2147483648
    %v2575 = vxor.u32 %v2571, 2147483648
    %v2576 = vmul.f32 %v2573, 1.442695
    %v2577 = vpow.pop %v2576
    %v2578 = vmul.f32 %v2574, 1.442695
    %v2579 = vpow.pop %v2578
    %v2580 = vmul.f32 %v2575, 1.442695
    %v2581 = vpow.pop %v2580
    %v2582 = vadd.f32 %v2577, 1.0
    %v2583 = vadd.f32 %v2579, 1.0
    %v2584 = vadd.f32 %v2581, 1.0
    %v2585 = vrcp.pop %v2582
    %v2586 = vmul.f32 1.0, %v2585
    %v2587 = vrcp.pop %v2583
    %v2588 = vmul.f32 1.0, %v2587
    %v2589 = vrcp.pop %v2584
    %v2590 = vmul.f32 1.0, %v2589
    %v2591 = vtanh.pop %v2572
    %v2592 = vmul.f32 %v2588, %v2286
    %v2593 = vmul.f32 %v2586, %v2591
    %v2594 = vadd.f32 %v2592, %v2593
    %v2595 = vtanh.pop %v2594
    %v2596 = vmul.f32 %v2590, %v2595
    %v2597 = vmax.f32 %v2596, 0.0
    %v2598 = vpack.c.bf16 %v2597, %v2597
    %v2599 = vld [vmem:[%s7] sm:$0xf]
    %v2600 = vld [vmem:[%s7 + $0x4] sm:$0xf]
    %v2601 = vld [vmem:[%s7 + $0x8] sm:$0xf]
    %v2602 = vld [vmem:[%s7 + $0xc] sm:$0xf]
    %v2603 = vld [vmem:[%s7 + $0x10] sm:$0xf]
    %v2604 = vld [vmem:[%s7 + $0x14] sm:$0xf]
    %v2605 = vld [vmem:[%s7 + $0x18] sm:$0xf]
    %v2606 = vld [vmem:[%s7 + $0x1c] sm:$0xf]
    %v2607 = vld [vmem:[%s7 + $0x20] sm:$0xf]
    %v2608 = vld [vmem:[%s7 + $0x24] sm:$0xf]
    %v2609 = vld [vmem:[%s7 + $0x28] sm:$0xf]
    %v2610 = vld [vmem:[%s7 + $0x2c] sm:$0xf]
    %v2611 = vld [vmem:[%s7 + $0x30] sm:$0xf]
    %v2612 = vld [vmem:[%s7 + $0x34] sm:$0xf]
    %v2613 = vld [vmem:[%s7 + $0x38] sm:$0xf]
    %v2614 = vld [vmem:[%s7 + $0x3c] sm:$0xf]
    %v2615 = vld [vmem:[%s8] sm:$0x1]
    %v2617 = vlaneseq
    %v2618 = vshrl.u32 %v2617, 7
    %v2619 = vsub.s32 0, %v2618
    %v2620 = vrot.slane %v2615, %v2619
    %v2638 = vunpack.c.l.b16 %v2599
    %v2639 = vunpack.c.l.b16 %v2600
    %v2640 = vunpack.c.l.b16 %v2601
    %v2641 = vunpack.c.l.b16 %v2602
    %v2642 = vunpack.c.l.b16 %v2603
    %v2643 = vunpack.c.l.b16 %v2604
    %v2644 = vunpack.c.l.b16 %v2605
    %v2645 = vunpack.c.l.b16 %v2606
    %v2646 = vunpack.c.l.b16 %v2607
    %v2647 = vunpack.c.l.b16 %v2608
    %v2648 = vunpack.c.l.b16 %v2609
    %v2649 = vunpack.c.l.b16 %v2610
    %v2650 = vunpack.c.l.b16 %v2611
    %v2651 = vunpack.c.l.b16 %v2612
    %v2652 = vunpack.c.l.b16 %v2613
    %v2653 = vunpack.c.l.b16 %v2614
    %v2654 = vpack.c.b16 %v2639, %v2638
    %v2655 = vpack.c.b16 %v2641, %v2640
    %v2656 = vpack.c.b16 %v2643, %v2642
    %v2657 = vpack.c.b16 %v2645, %v2644
    %v2658 = vpack.c.b16 %v2647, %v2646
    %v2659 = vpack.c.b16 %v2649, %v2648
    %v2660 = vpack.c.b16 %v2651, %v2650
    %v2661 = vpack.c.b16 %v2653, %v2652
    %2670 = vmatprep.subr.bf16.mxu0 0
    %2671 = vmatpush1.bf16.msra.mxu0 %v2654
    %2672 = vmatprep.subr.bf16.mxu0 0
    %2673 = vmatpush1.bf16.msra.mxu0 %v2655
    %2674 = vmatprep.subr.bf16.mxu0 0
    %2675 = vmatpush1.bf16.msra.mxu0 %v2656
    %2676 = vmatprep.subr.bf16.mxu0 0
    %2677 = vmatpush1.bf16.msra.mxu0 %v2657
    %2678 = vmatprep.subr.bf16.mxu0 0
    %2679 = vmatpush1.bf16.msra.mxu0 %v2658
    %2680 = vmatprep.subr.bf16.mxu0 0
    %2681 = vmatpush1.bf16.msra.mxu0 %v2659
    %2682 = vmatprep.subr.bf16.mxu0 0
    %2683 = vmatpush1.bf16.msra.mxu0 %v2660
    %2684 = vmatprep.subr.bf16.mxu0 0
    %2685 = vmatpush1.bf16.msra.mxu0 %v2661
    %2686 = vmatprep.subr.bf16.mxu0 0
    %2687 = vmatpush1.bf16.msra.mxu0 0
    %2688 = vmatprep.subr.bf16.mxu0 0
    %2689 = vmatpush1.bf16.msra.mxu0 0
    %2690 = vmatprep.subr.bf16.mxu0 0
    %2691 = vmatpush1.bf16.msra.mxu0 0
    %2692 = vmatprep.subr.bf16.mxu0 0
    %2693 = vmatpush1.bf16.msra.mxu0 0
    %2694 = vmatprep.subr.bf16.mxu0 0
    %2695 = vmatpush1.bf16.msra.mxu0 0
    %2696 = vmatprep.subr.bf16.mxu0 0
    %2697 = vmatpush1.bf16.msra.mxu0 0
    %2698 = vmatprep.subr.bf16.mxu0 0
    %2699 = vmatpush1.bf16.msra.mxu0 0
    %2700 = vmatprep.subr.bf16.mxu0 0
    %2701 = vmatpush1.bf16.msra.mxu0 0
    %2702 = vmatprep.mubr.bf16.mxu0 0
    %2703 = vmatmul.mubr.bf16.gmra.mrb[0].mxu0 %v2598
    %v2704 = vpop.f32.mrb[0].mxu0
    %v2705 = vadd.f32 %v2620, %v2704
    %v2706 = vpop.f32.mrb[0].mxu0
    %v2707 = vpop.f32.mrb[0].mxu0
    %v2708 = vpop.f32.mrb[0].mxu0
    %2709 = vdwg.mxu0
    %2710 = vst [vmem:[%s9] sm:$0xff] %v2705
    %v2711 = vld [vmem:[#allocation4] sm:$0xff]
    %v2712 = vld [vmem:[#allocation4 + $0x8] sm:$0xff]
    %v2713 = vld [vmem:[#allocation4 + $0x10] sm:$0xff]
    %v2714 = vld [vmem:[#allocation4 + $0x18] sm:$0xff]
    %v2715 = vld [vmem:[#allocation4 + $0x20] sm:$0xff]
    %v2716 = vld [vmem:[#allocation4 + $0x28] sm:$0xff]
    %v2717 = vld [vmem:[#allocation4 + $0x30] sm:$0xff]
    %v2718 = vld [vmem:[#allocation4 + $0x38] sm:$0xff]
    %v2719 = vld [vmem:[#allocation4 + $0x40] sm:$0xff]
    %v2720 = vld [vmem:[#allocation4 + $0x48] sm:$0xff]
    %v2721 = vld [vmem:[#allocation4 + $0x50] sm:$0xff]
    %v2722 = vld [vmem:[#allocation4 + $0x58] sm:$0xff]
    %v2723 = vld [vmem:[#allocation4 + $0x60] sm:$0xff]
    %v2724 = vld [vmem:[#allocation4 + $0x68] sm:$0xff]
    %v2725 = vld [vmem:[#allocation4 + $0x70] sm:$0xff]
    %v2726 = vld [vmem:[#allocation4 + $0x78] sm:$0xff]
    %v2727 = vld [vmem:[#allocation4 + $0x80] sm:$0xff]
    %v2728 = vld [vmem:[#allocation4 + $0x88] sm:$0xff]
    %v2729 = vld [vmem:[#allocation4 + $0x90] sm:$0xff]
    %v2730 = vld [vmem:[#allocation4 + $0x98] sm:$0xff]
    %v2731 = vld [vmem:[#allocation4 + $0xa0] sm:$0xff]
    %v2732 = vld [vmem:[#allocation4 + $0xa8] sm:$0xff]
    %v2733 = vld [vmem:[#allocation4 + $0xb0] sm:$0xff]
    %v2734 = vld [vmem:[#allocation4 + $0xb8] sm:$0xff]
    %v2735 = vld [vmem:[#allocation4 + $0xc0] sm:$0xff]
    %v2736 = vld [vmem:[#allocation4 + $0xc8] sm:$0xff]
    %v2737 = vld [vmem:[#allocation4 + $0xd0] sm:$0xff]
    %v2738 = vld [vmem:[#allocation4 + $0xd8] sm:$0xff]
    %v2739 = vld [vmem:[#allocation4 + $0xe0] sm:$0xff]
    %v2740 = vld [vmem:[#allocation4 + $0xe8] sm:$0xff]
    %v2741 = vld [vmem:[#allocation4 + $0xf0] sm:$0xff]
    %v2742 = vld [vmem:[#allocation4 + $0xf8] sm:$0xff]
    %v2775 = vunpack.c.l.b16 %v2711
    %v2776 = vunpack.c.h.b16 %v2711
    %v2777 = vunpack.c.l.b16 %v2712
    %v2778 = vunpack.c.h.b16 %v2712
    %v2779 = vunpack.c.l.b16 %v2713
    %v2780 = vunpack.c.h.b16 %v2713
    %v2781 = vunpack.c.l.b16 %v2714
    %v2782 = vunpack.c.h.b16 %v2714
    %v2783 = vunpack.c.l.b16 %v2715
    %v2784 = vunpack.c.h.b16 %v2715
    %v2785 = vunpack.c.l.b16 %v2716
    %v2786 = vunpack.c.h.b16 %v2716
    %v2787 = vunpack.c.l.b16 %v2717
    %v2788 = vunpack.c.h.b16 %v2717
    %v2789 = vunpack.c.l.b16 %v2718
    %v2790 = vunpack.c.h.b16 %v2718
    %v2791 = vunpack.c.l.b16 %v2719
    %v2792 = vunpack.c.h.b16 %v2719
    %v2793 = vunpack.c.l.b16 %v2720
    %v2794 = vunpack.c.h.b16 %v2720
    %v2795 = vunpack.c.l.b16 %v2721
    %v2796 = vunpack.c.h.b16 %v2721
    %v2797 = vunpack.c.l.b16 %v2722
    %v2798 = vunpack.c.h.b16 %v2722
    %v2799 = vunpack.c.l.b16 %v2723
    %v2800 = vunpack.c.h.b16 %v2723
    %v2801 = vunpack.c.l.b16 %v2724
    %v2802 = vunpack.c.h.b16 %v2724
    %v2803 = vunpack.c.l.b16 %v2725
    %v2804 = vunpack.c.h.b16 %v2725
    %v2805 = vunpack.c.l.b16 %v2726
    %v2806 = vunpack.c.h.b16 %v2726
    %v2807 = vunpack.c.l.b16 %v2727
    %v2808 = vunpack.c.h.b16 %v2727
    %v2809 = vunpack.c.l.b16 %v2728
    %v2810 = vunpack.c.h.b16 %v2728
    %v2811 = vunpack.c.l.b16 %v2729
    %v2812 = vunpack.c.h.b16 %v2729
    %v2813 = vunpack.c.l.b16 %v2730
    %v2814 = vunpack.c.h.b16 %v2730
    %v2815 = vunpack.c.l.b16 %v2731
    %v2816 = vunpack.c.h.b16 %v2731
    %v2817 = vunpack.c.l.b16 %v2732
    %v2818 = vunpack.c.h.b16 %v2732
    %v2819 = vunpack.c.l.b16 %v2733
    %v2820 = vunpack.c.h.b16 %v2733
    %v2821 = vunpack.c.l.b16 %v2734
    %v2822 = vunpack.c.h.b16 %v2734
    %v2823 = vunpack.c.l.b16 %v2735
    %v2824 = vunpack.c.h.b16 %v2735
    %v2825 = vunpack.c.l.b16 %v2736
    %v2826 = vunpack.c.h.b16 %v2736
    %v2827 = vunpack.c.l.b16 %v2737
    %v2828 = vunpack.c.h.b16 %v2737
    %v2829 = vunpack.c.l.b16 %v2738
    %v2830 = vunpack.c.h.b16 %v2738
    %v2831 = vunpack.c.l.b16 %v2739
    %v2832 = vunpack.c.h.b16 %v2739
    %v2833 = vunpack.c.l.b16 %v2740
    %v2834 = vunpack.c.h.b16 %v2740
    %v2835 = vunpack.c.l.b16 %v2741
    %v2836 = vunpack.c.h.b16 %v2741
    %v2837 = vunpack.c.l.b16 %v2742
    %v2838 = vunpack.c.h.b16 %v2742
    %v2839 = vpack.c.b16 %v2779, %v2775
    %v2840 = vpack.c.b16 %v2780, %v2776
    %v2841 = vpack.c.b16 %v2781, %v2777
    %v2842 = vpack.c.b16 %v2782, %v2778
    %v2843 = vpack.c.b16 %v2787, %v2783
    %v2844 = vpack.c.b16 %v2788, %v2784
    %v2845 = vpack.c.b16 %v2789, %v2785
    %v2846 = vpack.c.b16 %v2790, %v2786
    %v2847 = vpack.c.b16 %v2795, %v2791
    %v2848 = vpack.c.b16 %v2796, %v2792
    %v2849 = vpack.c.b16 %v2797, %v2793
    %v2850 = vpack.c.b16 %v2798, %v2794
    %v2851 = vpack.c.b16 %v2803, %v2799
    %v2852 = vpack.c.b16 %v2804, %v2800
    %v2853 = vpack.c.b16 %v2805, %v2801
    %v2854 = vpack.c.b16 %v2806, %v2802
    %v2855 = vpack.c.b16 %v2811, %v2807
    %v2856 = vpack.c.b16 %v2812, %v2808
    %v2857 = vpack.c.b16 %v2813, %v2809
    %v2858 = vpack.c.b16 %v2814, %v2810
    %v2859 = vpack.c.b16 %v2819, %v2815
    %v2860 = vpack.c.b16 %v2820, %v2816
    %v2861 = vpack.c.b16 %v2821, %v2817
    %v2862 = vpack.c.b16 %v2822, %v2818
    %v2863 = vpack.c.b16 %v2827, %v2823
    %v2864 = vpack.c.b16 %v2828, %v2824
    %v2865 = vpack.c.b16 %v2829, %v2825
    %v2866 = vpack.c.b16 %v2830, %v2826
    %v2867 = vpack.c.b16 %v2835, %v2831
    %v2868 = vpack.c.b16 %v2836, %v2832
    %v2869 = vpack.c.b16 %v2837, %v2833
    %v2870 = vpack.c.b16 %v2838, %v2834
    %2903 = vmatprep.subr.bf16.mxu0 %v2840
    %2904 = vmatpush1.bf16.msra.mxu0 %v2839
    %2905 = vmatprep.subr.bf16.mxu0 %v2844
    %2906 = vmatpush1.bf16.msra.mxu0 %v2843
    %2907 = vmatprep.subr.bf16.mxu0 %v2848
    %2908 = vmatpush1.bf16.msra.mxu0 %v2847
    %2909 = vmatprep.subr.bf16.mxu0 %v2852
    %2910 = vmatpush1.bf16.msra.mxu0 %v2851
    %2911 = vmatprep.subr.bf16.mxu0 %v2856
    %2912 = vmatpush1.bf16.msra.mxu0 %v2855
    %2913 = vmatprep.subr.bf16.mxu0 %v2860
    %2914 = vmatpush1.bf16.msra.mxu0 %v2859
    %2915 = vmatprep.subr.bf16.mxu0 %v2864
    %2916 = vmatpush1.bf16.msra.mxu0 %v2863
    %2917 = vmatprep.subr.bf16.mxu0 %v2868
    %2918 = vmatpush1.bf16.msra.mxu0 %v2867
    %2919 = vmatprep.subr.bf16.mxu0 0
    %2920 = vmatpush1.bf16.msra.mxu0 0
    %2921 = vmatprep.subr.bf16.mxu0 0
    %2922 = vmatpush1.bf16.msra.mxu0 0
    %2923 = vmatprep.subr.bf16.mxu0 0
    %2924 = vmatpush1.bf16.msra.mxu0 0
    %2925 = vmatprep.subr.bf16.mxu0 0
    %2926 = vmatpush1.bf16.msra.mxu0 0
    %2927 = vmatprep.subr.bf16.mxu0 0
    %2928 = vmatpush1.bf16.msra.mxu0 0
    %2929 = vmatprep.subr.bf16.mxu0 0
    %2930 = vmatpush1.bf16.msra.mxu0 0
    %2931 = vmatprep.subr.bf16.mxu0 0
    %2932 = vmatpush1.bf16.msra.mxu0 0
    %2933 = vmatprep.subr.bf16.mxu0 0
    %2934 = vmatpush1.bf16.msra.mxu0 0
    %2935 = vmatprep.mubr.bf16.mxu0 0
    %2936 = vmatmul.mubr.bf16.gmra.mrb[0].mxu0 %v2399
    %v2937 = vpop.f32.mrb[0].mxu0
    %v2938 = vadd.f32 0.0, %v2937
    %v2939 = vpop.f32.mrb[0].mxu0
    %v2940 = vadd.f32 0.0, %v2939
    %v2941 = vpop.f32.mrb[0].mxu0
    %v2942 = vpop.f32.mrb[0].mxu0
    %2943 = vdwg.mxu0
    %2944 = vmatprep.subr.bf16.mxu0 %v2842
    %2945 = vmatpush1.bf16.msra.mxu0 %v2841
    %2946 = vmatprep.subr.bf16.mxu0 %v2846
    %2947 = vmatpush1.bf16.msra.mxu0 %v2845
    %2948 = vmatprep.subr.bf16.mxu0 %v2850
    %2949 = vmatpush1.bf16.msra.mxu0 %v2849
    %2950 = vmatprep.subr.bf16.mxu0 %v2854
    %2951 = vmatpush1.bf16.msra.mxu0 %v2853
    %2952 = vmatprep.subr.bf16.mxu0 %v2858
    %2953 = vmatpush1.bf16.msra.mxu0 %v2857
    %2954 = vmatprep.subr.bf16.mxu0 %v2862
    %2955 = vmatpush1.bf16.msra.mxu0 %v2861
    %2956 = vmatprep.subr.bf16.mxu0 %v2866
    %2957 = vmatpush1.bf16.msra.mxu0 %v2865
    %2958 = vmatprep.subr.bf16.mxu0 %v2870
    %2959 = vmatpush1.bf16.msra.mxu0 %v2869
    %2960 = vmatprep.subr.bf16.mxu0 0
    %2961 = vmatpush1.bf16.msra.mxu0 0
    %2962 = vmatprep.subr.bf16.mxu0 0
    %2963 = vmatpush1.bf16.msra.mxu0 0
    %2964 = vmatprep.subr.bf16.mxu0 0
    %2965 = vmatpush1.bf16.msra.mxu0 0
    %2966 = vmatprep.subr.bf16.mxu0 0
    %2967 = vmatpush1.bf16.msra.mxu0 0
    %2968 = vmatprep.subr.bf16.mxu0 0
    %2969 = vmatpush1.bf16.msra.mxu0 0
    %2970 = vmatprep.subr.bf16.mxu0 0
    %2971 = vmatpush1.bf16.msra.mxu0 0
    %2972 = vmatprep.subr.bf16.mxu0 0
    %2973 = vmatpush1.bf16.msra.mxu0 0
    %2974 = vmatprep.subr.bf16.mxu0 0
    %2975 = vmatpush1.bf16.msra.mxu0 0
    %2976 = vmatprep.mubr.bf16.mxu0 0
    %2977 = vmatmul.mubr.bf16.gmra.mrb[0].mxu0 %v2399
    %v2978 = vpop.f32.mrb[0].mxu0
    %v2979 = vadd.f32 0.0, %v2978
    %v2980 = vpop.f32.mrb[0].mxu0
    %v2981 = vadd.f32 0.0, %v2980
    %v2982 = vpop.f32.mrb[0].mxu0
    %v2983 = vpop.f32.mrb[0].mxu0
    %2984 = vdwg.mxu0
    %v2985 = vadd.f32 %v373, %v2938
    %v2986 = vadd.f32 %v375, %v2940
    %v2987 = vadd.f32 %v446, %v2979
    %v2988 = vadd.f32 %v448, %v2981
    %v2989 = vxor.u32 %v2985, 2147483648
    %v2990 = vxor.u32 %v2986, 2147483648
    %v2991 = vxor.u32 %v2987, 2147483648
    %v2992 = vmul.f32 %v2989, 1.442695
    %v2993 = vpow.pop %v2992
    %v2994 = vmul.f32 %v2990, 1.442695
    %v2995 = vpow.pop %v2994
    %v2996 = vmul.f32 %v2991, 1.442695
    %v2997 = vpow.pop %v2996
    %v2998 = vadd.f32 %v2993, 1.0
    %v2999 = vadd.f32 %v2995, 1.0
    %v3000 = vadd.f32 %v2997, 1.0
    %v3001 = vrcp.pop %v2998
    %v3002 = vmul.f32 1.0, %v3001
    %v3003 = vrcp.pop %v2999
    %v3004 = vmul.f32 1.0, %v3003
    %v3005 = vrcp.pop %v3000
    %v3006 = vmul.f32 1.0, %v3005
    %v3007 = vtanh.pop %v2988
    %v3008 = vmul.f32 %v3004, %v2396
    %v3009 = vmul.f32 %v3002, %v3007
    %v3010 = vadd.f32 %v3008, %v3009
    %v3011 = vtanh.pop %v3010
    %v3012 = vmul.f32 %v3006, %v3011
    %v3013 = vld [vmem:[%s6] sm:$0xf]
    %v3014 = vpack.c.bf16 %v3012, %v3012
    %v3015 = vld [vmem:[#allocation6] sm:$0xff]
    %v3016 = vld [vmem:[#allocation6 + $0x8] sm:$0xff]
    %v3017 = vld [vmem:[#allocation6 + $0x10] sm:$0xff]
    %v3018 = vld [vmem:[#allocation6 + $0x18] sm:$0xff]
    %v3019 = vld [vmem:[#allocation6 + $0x20] sm:$0xff]
    %v3020 = vld [vmem:[#allocation6 + $0x28] sm:$0xff]
    %v3021 = vld [vmem:[#allocation6 + $0x30] sm:$0xff]
    %v3022 = vld [vmem:[#allocation6 + $0x38] sm:$0xff]
    %v3023 = vld [vmem:[#allocation6 + $0x40] sm:$0xff]
    %v3024 = vld [vmem:[#allocation6 + $0x48] sm:$0xff]
    %v3025 = vld [vmem:[#allocation6 + $0x50] sm:$0xff]
    %v3026 = vld [vmem:[#allocation6 + $0x58] sm:$0xff]
    %v3027 = vld [vmem:[#allocation6 + $0x60] sm:$0xff]
    %v3028 = vld [vmem:[#allocation6 + $0x68] sm:$0xff]
    %v3029 = vld [vmem:[#allocation6 + $0x70] sm:$0xff]
    %v3030 = vld [vmem:[#allocation6 + $0x78] sm:$0xff]
    %v3031 = vld [vmem:[#allocation6 + $0x80] sm:$0xff]
    %v3032 = vld [vmem:[#allocation6 + $0x88] sm:$0xff]
    %v3033 = vld [vmem:[#allocation6 + $0x90] sm:$0xff]
    %v3034 = vld [vmem:[#allocation6 + $0x98] sm:$0xff]
    %v3035 = vld [vmem:[#allocation6 + $0xa0] sm:$0xff]
    %v3036 = vld [vmem:[#allocation6 + $0xa8] sm:$0xff]
    %v3037 = vld [vmem:[#allocation6 + $0xb0] sm:$0xff]
    %v3038 = vld [vmem:[#allocation6 + $0xb8] sm:$0xff]
    %v3039 = vld [vmem:[#allocation6 + $0xc0] sm:$0xff]
    %v3040 = vld [vmem:[#allocation6 + $0xc8] sm:$0xff]
    %v3041 = vld [vmem:[#allocation6 + $0xd0] sm:$0xff]
    %v3042 = vld [vmem:[#allocation6 + $0xd8] sm:$0xff]
    %v3043 = vld [vmem:[#allocation6 + $0xe0] sm:$0xff]
    %v3044 = vld [vmem:[#allocation6 + $0xe8] sm:$0xff]
    %v3045 = vld [vmem:[#allocation6 + $0xf0] sm:$0xff]
    %v3046 = vld [vmem:[#allocation6 + $0xf8] sm:$0xff]
    %v3079 = vunpack.c.l.b16 %v3015
    %v3080 = vunpack.c.h.b16 %v3015
    %v3081 = vunpack.c.l.b16 %v3016
    %v3082 = vunpack.c.h.b16 %v3016
    %v3083 = vunpack.c.l.b16 %v3017
    %v3084 = vunpack.c.h.b16 %v3017
    %v3085 = vunpack.c.l.b16 %v3018
    %v3086 = vunpack.c.h.b16 %v3018
    %v3087 = vunpack.c.l.b16 %v3019
    %v3088 = vunpack.c.h.b16 %v3019
    %v3089 = vunpack.c.l.b16 %v3020
    %v3090 = vunpack.c.h.b16 %v3020
    %v3091 = vunpack.c.l.b16 %v3021
    %v3092 = vunpack.c.h.b16 %v3021
    %v3093 = vunpack.c.l.b16 %v3022
    %v3094 = vunpack.c.h.b16 %v3022
    %v3095 = vunpack.c.l.b16 %v3023
    %v3096 = vunpack.c.h.b16 %v3023
    %v3097 = vunpack.c.l.b16 %v3024
    %v3098 = vunpack.c.h.b16 %v3024
    %v3099 = vunpack.c.l.b16 %v3025
    %v3100 = vunpack.c.h.b16 %v3025
    %v3101 = vunpack.c.l.b16 %v3026
    %v3102 = vunpack.c.h.b16 %v3026
    %v3103 = vunpack.c.l.b16 %v3027
    %v3104 = vunpack.c.h.b16 %v3027
    %v3105 = vunpack.c.l.b16 %v3028
    %v3106 = vunpack.c.h.b16 %v3028
    %v3107 = vunpack.c.l.b16 %v3029
    %v3108 = vunpack.c.h.b16 %v3029
    %v3109 = vunpack.c.l.b16 %v3030
    %v3110 = vunpack.c.h.b16 %v3030
    %v3111 = vunpack.c.l.b16 %v3031
    %v3112 = vunpack.c.h.b16 %v3031
    %v3113 = vunpack.c.l.b16 %v3032
    %v3114 = vunpack.c.h.b16 %v3032
    %v3115 = vunpack.c.l.b16 %v3033
    %v3116 = vunpack.c.h.b16 %v3033
    %v3117 = vunpack.c.l.b16 %v3034
    %v3118 = vunpack.c.h.b16 %v3034
    %v3119 = vunpack.c.l.b16 %v3035
    %v3120 = vunpack.c.h.b16 %v3035
    %v3121 = vunpack.c.l.b16 %v3036
    %v3122 = vunpack.c.h.b16 %v3036
    %v3123 = vunpack.c.l.b16 %v3037
    %v3124 = vunpack.c.h.b16 %v3037
    %v3125 = vunpack.c.l.b16 %v3038
    %v3126 = vunpack.c.h.b16 %v3038
    %v3127 = vunpack.c.l.b16 %v3039
    %v3128 = vunpack.c.h.b16 %v3039
    %v3129 = vunpack.c.l.b16 %v3040
    %v3130 = vunpack.c.h.b16 %v3040
    %v3131 = vunpack.c.l.b16 %v3041
    %v3132 = vunpack.c.h.b16 %v3041
    %v3133 = vunpack.c.l.b16 %v3042
    %v3134 = vunpack.c.h.b16 %v3042
    %v3135 = vunpack.c.l.b16 %v3043
    %v3136 = vunpack.c.h.b16 %v3043
    %v3137 = vunpack.c.l.b16 %v3044
    %v3138 = vunpack.c.h.b16 %v3044
    %v3139 = vunpack.c.l.b16 %v3045
    %v3140 = vunpack.c.h.b16 %v3045
    %v3141 = vunpack.c.l.b16 %v3046
    %v3142 = vunpack.c.h.b16 %v3046
    %v3143 = vpack.c.b16 %v3083, %v3079
    %v3144 = vpack.c.b16 %v3084, %v3080
    %v3145 = vpack.c.b16 %v3085, %v3081
    %v3146 = vpack.c.b16 %v3086, %v3082
    %v3147 = vpack.c.b16 %v3091, %v3087
    %v3148 = vpack.c.b16 %v3092, %v3088
    %v3149 = vpack.c.b16 %v3093, %v3089
    %v3150 = vpack.c.b16 %v3094, %v3090
    %v3151 = vpack.c.b16 %v3099, %v3095
    %v3152 = vpack.c.b16 %v3100, %v3096
    %v3153 = vpack.c.b16 %v3101, %v3097
    %v3154 = vpack.c.b16 %v3102, %v3098
    %v3155 = vpack.c.b16 %v3107, %v3103
    %v3156 = vpack.c.b16 %v3108, %v3104
    %v3157 = vpack.c.b16 %v3109, %v3105
    %v3158 = vpack.c.b16 %v3110, %v3106
    %v3159 = vpack.c.b16 %v3115, %v3111
    %v3160 = vpack.c.b16 %v3116, %v3112
    %v3161 = vpack.c.b16 %v3117, %v3113
    %v3162 = vpack.c.b16 %v3118, %v3114
    %v3163 = vpack.c.b16 %v3123, %v3119
    %v3164 = vpack.c.b16 %v3124, %v3120
    %v3165 = vpack.c.b16 %v3125, %v3121
    %v3166 = vpack.c.b16 %v3126, %v3122
    %v3167 = vpack.c.b16 %v3131, %v3127
    %v3168 = vpack.c.b16 %v3132, %v3128
    %v3169 = vpack.c.b16 %v3133, %v3129
    %v3170 = vpack.c.b16 %v3134, %v3130
    %v3171 = vpack.c.b16 %v3139, %v3135
    %v3172 = vpack.c.b16 %v3140, %v3136
    %v3173 = vpack.c.b16 %v3141, %v3137
    %v3174 = vpack.c.b16 %v3142, %v3138
    %3207 = vmatprep.subr.bf16.mxu0 %v3144
    %3208 = vmatpush1.bf16.msra.mxu0 %v3143
    %3209 = vmatprep.subr.bf16.mxu0 %v3148
    %3210 = vmatpush1.bf16.msra.mxu0 %v3147
    %3211 = vmatprep.subr.bf16.mxu0 %v3152
    %3212 = vmatpush1.bf16.msra.mxu0 %v3151
    %3213 = vmatprep.subr.bf16.mxu0 %v3156
    %3214 = vmatpush1.bf16.msra.mxu0 %v3155
    %3215 = vmatprep.subr.bf16.mxu0 %v3160
    %3216 = vmatpush1.bf16.msra.mxu0 %v3159
    %3217 = vmatprep.subr.bf16.mxu0 %v3164
    %3218 = vmatpush1.bf16.msra.mxu0 %v3163
    %3219 = vmatprep.subr.bf16.mxu0 %v3168
    %3220 = vmatpush1.bf16.msra.mxu0 %v3167
    %3221 = vmatprep.subr.bf16.mxu0 %v3172
    %3222 = vmatpush1.bf16.msra.mxu0 %v3171
    %3223 = vmatprep.subr.bf16.mxu0 0
    %3224 = vmatpush1.bf16.msra.mxu0 0
    %3225 = vmatprep.subr.bf16.mxu0 0
    %3226 = vmatpush1.bf16.msra.mxu0 0
    %3227 = vmatprep.subr.bf16.mxu0 0
    %3228 = vmatpush1.bf16.msra.mxu0 0
    %3229 = vmatprep.subr.bf16.mxu0 0
    %3230 = vmatpush1.bf16.msra.mxu0 0
    %3231 = vmatprep.subr.bf16.mxu0 0
    %3232 = vmatpush1.bf16.msra.mxu0 0
    %3233 = vmatprep.subr.bf16.mxu0 0
    %3234 = vmatpush1.bf16.msra.mxu0 0
    %3235 = vmatprep.subr.bf16.mxu0 0
    %3236 = vmatpush1.bf16.msra.mxu0 0
    %3237 = vmatprep.subr.bf16.mxu0 0
    %3238 = vmatpush1.bf16.msra.mxu0 0
    %3239 = vmatprep.mubr.bf16.mxu0 0
    %3240 = vmatmul.mubr.bf16.gmra.mrb[0].mxu0 %v3014
    %v3241 = vpop.f32.mrb[0].mxu0
    %v3242 = vadd.f32 0.0, %v3241
    %v3243 = vpop.f32.mrb[0].mxu0
    %v3244 = vadd.f32 0.0, %v3243
    %v3245 = vpop.f32.mrb[0].mxu0
    %v3246 = vpop.f32.mrb[0].mxu0
    %3247 = vdwg.mxu0
    %3248 = vmatprep.subr.bf16.mxu0 %v3146
    %3249 = vmatpush1.bf16.msra.mxu0 %v3145
    %3250 = vmatprep.subr.bf16.mxu0 %v3150
    %3251 = vmatpush1.bf16.msra.mxu0 %v3149
    %3252 = vmatprep.subr.bf16.mxu0 %v3154
    %3253 = vmatpush1.bf16.msra.mxu0 %v3153
    %3254 = vmatprep.subr.bf16.mxu0 %v3158
    %3255 = vmatpush1.bf16.msra.mxu0 %v3157
    %3256 = vmatprep.subr.bf16.mxu0 %v3162
    %3257 = vmatpush1.bf16.msra.mxu0 %v3161
    %3258 = vmatprep.subr.bf16.mxu0 %v3166
    %3259 = vmatpush1.bf16.msra.mxu0 %v3165
    %3260 = vmatprep.subr.bf16.mxu0 %v3170
    %3261 = vmatpush1.bf16.msra.mxu0 %v3169
    %3262 = vmatprep.subr.bf16.mxu0 %v3174
    %3263 = vmatpush1.bf16.msra.mxu0 %v3173
    %3264 = vmatprep.subr.bf16.mxu0 0
    %3265 = vmatpush1.bf16.msra.mxu0 0
    %3266 = vmatprep.subr.bf16.mxu0 0
    %3267 = vmatpush1.bf16.msra.mxu0 0
    %3268 = vmatprep.subr.bf16.mxu0 0
    %3269 = vmatpush1.bf16.msra.mxu0 0
    %3270 = vmatprep.subr.bf16.mxu0 0
    %3271 = vmatpush1.bf16.msra.mxu0 0
    %3272 = vmatprep.subr.bf16.mxu0 0
    %3273 = vmatpush1.bf16.msra.mxu0 0
    %3274 = vmatprep.subr.bf16.mxu0 0
    %3275 = vmatpush1.bf16.msra.mxu0 0
    %3276 = vmatprep.subr.bf16.mxu0 0
    %3277 = vmatpush1.bf16.msra.mxu0 0
    %3278 = vmatprep.subr.bf16.mxu0 0
    %3279 = vmatpush1.bf16.msra.mxu0 0
    %3280 = vmatprep.mubr.bf16.mxu0 0
    %3281 = vmatmul.mubr.bf16.gmra.mrb[0].mxu0 %v3014
    %v3282 = vpop.f32.mrb[0].mxu0
    %v3283 = vadd.f32 0.0, %v3282
    %v3284 = vpop.f32.mrb[0].mxu0
    %v3285 = vadd.f32 0.0, %v3284
    %v3286 = vpop.f32.mrb[0].mxu0
    %v3287 = vpop.f32.mrb[0].mxu0
    %3288 = vdwg.mxu0
    %v3290 = vlaneseq
    %v3291 = vshrl.u32 %v3290, 7
    %v3292 = vsub.s32 0, %v3291
    %v3293 = vrot.slane %v3013, %v3292
    %v3294 = vlaneseq
    %v3295 = vshrl.u32 %v3294, 7
    %v3296 = vsub.s32 1, %v3295
    %v3297 = vrot.slane %v3013, %v3296
    %v3298 = vlaneseq
    %v3299 = vshrl.u32 %v3298, 7
    %v3300 = vsub.s32 2, %v3299
    %v3301 = vrot.slane %v3013, %v3300
    %v3302 = vlaneseq
    %v3303 = vshrl.u32 %v3302, 7
    %v3304 = vsub.s32 3, %v3303
    %v3305 = vrot.slane %v3013, %v3304
    %v3310 = vadd.f32 %v3293, %v3242
    %v3311 = vadd.f32 %v3297, %v3244
    %v3312 = vadd.f32 %v3301, %v3283
    %v3313 = vadd.f32 %v3305, %v3285
    %v3314 = vpack.c.bf16 %v2596, %v2596
    %v3315 = vld [vmem:[#allocation7] sm:$0xff]
    %v3316 = vld [vmem:[#allocation7 + $0x8] sm:$0xff]
    %v3317 = vld [vmem:[#allocation7 + $0x10] sm:$0xff]
    %v3318 = vld [vmem:[#allocation7 + $0x18] sm:$0xff]
    %v3319 = vld [vmem:[#allocation7 + $0x20] sm:$0xff]
    %v3320 = vld [vmem:[#allocation7 + $0x28] sm:$0xff]
    %v3321 = vld [vmem:[#allocation7 + $0x30] sm:$0xff]
    %v3322 = vld [vmem:[#allocation7 + $0x38] sm:$0xff]
    %v3323 = vld [vmem:[#allocation7 + $0x40] sm:$0xff]
    %v3324 = vld [vmem:[#allocation7 + $0x48] sm:$0xff]
    %v3325 = vld [vmem:[#allocation7 + $0x50] sm:$0xff]
    %v3326 = vld [vmem:[#allocation7 + $0x58] sm:$0xff]
    %v3327 = vld [vmem:[#allocation7 + $0x60] sm:$0xff]
    %v3328 = vld [vmem:[#allocation7 + $0x68] sm:$0xff]
    %v3329 = vld [vmem:[#allocation7 + $0x70] sm:$0xff]
    %v3330 = vld [vmem:[#allocation7 + $0x78] sm:$0xff]
    %v3331 = vld [vmem:[#allocation7 + $0x80] sm:$0xff]
    %v3332 = vld [vmem:[#allocation7 + $0x88] sm:$0xff]
    %v3333 = vld [vmem:[#allocation7 + $0x90] sm:$0xff]
    %v3334 = vld [vmem:[#allocation7 + $0x98] sm:$0xff]
    %v3335 = vld [vmem:[#allocation7 + $0xa0] sm:$0xff]
    %v3336 = vld [vmem:[#allocation7 + $0xa8] sm:$0xff]
    %v3337 = vld [vmem:[#allocation7 + $0xb0] sm:$0xff]
    %v3338 = vld [vmem:[#allocation7 + $0xb8] sm:$0xff]
    %v3339 = vld [vmem:[#allocation7 + $0xc0] sm:$0xff]
    %v3340 = vld [vmem:[#allocation7 + $0xc8] sm:$0xff]
    %v3341 = vld [vmem:[#allocation7 + $0xd0] sm:$0xff]
    %v3342 = vld [vmem:[#allocation7 + $0xd8] sm:$0xff]
    %v3343 = vld [vmem:[#allocation7 + $0xe0] sm:$0xff]
    %v3344 = vld [vmem:[#allocation7 + $0xe8] sm:$0xff]
    %v3345 = vld [vmem:[#allocation7 + $0xf0] sm:$0xff]
    %v3346 = vld [vmem:[#allocation7 + $0xf8] sm:$0xff]
    %v3379 = vunpack.c.l.b16 %v3315
    %v3380 = vunpack.c.h.b16 %v3315
    %v3381 = vunpack.c.l.b16 %v3316
    %v3382 = vunpack.c.h.b16 %v3316
    %v3383 = vunpack.c.l.b16 %v3317
    %v3384 = vunpack.c.h.b16 %v3317
    %v3385 = vunpack.c.l.b16 %v3318
    %v3386 = vunpack.c.h.b16 %v3318
    %v3387 = vunpack.c.l.b16 %v3319
    %v3388 = vunpack.c.h.b16 %v3319
    %v3389 = vunpack.c.l.b16 %v3320
    %v3390 = vunpack.c.h.b16 %v3320
    %v3391 = vunpack.c.l.b16 %v3321
    %v3392 = vunpack.c.h.b16 %v3321
    %v3393 = vunpack.c.l.b16 %v3322
    %v3394 = vunpack.c.h.b16 %v3322
    %v3395 = vunpack.c.l.b16 %v3323
    %v3396 = vunpack.c.h.b16 %v3323
    %v3397 = vunpack.c.l.b16 %v3324
    %v3398 = vunpack.c.h.b16 %v3324
    %v3399 = vunpack.c.l.b16 %v3325
    %v3400 = vunpack.c.h.b16 %v3325
    %v3401 = vunpack.c.l.b16 %v3326
    %v3402 = vunpack.c.h.b16 %v3326
    %v3403 = vunpack.c.l.b16 %v3327
    %v3404 = vunpack.c.h.b16 %v3327
    %v3405 = vunpack.c.l.b16 %v3328
    %v3406 = vunpack.c.h.b16 %v3328
    %v3407 = vunpack.c.l.b16 %v3329
    %v3408 = vunpack.c.h.b16 %v3329
    %v3409 = vunpack.c.l.b16 %v3330
    %v3410 = vunpack.c.h.b16 %v3330
    %v3411 = vunpack.c.l.b16 %v3331
    %v3412 = vunpack.c.h.b16 %v3331
    %v3413 = vunpack.c.l.b16 %v3332
    %v3414 = vunpack.c.h.b16 %v3332
    %v3415 = vunpack.c.l.b16 %v3333
    %v3416 = vunpack.c.h.b16 %v3333
    %v3417 = vunpack.c.l.b16 %v3334
    %v3418 = vunpack.c.h.b16 %v3334
    %v3419 = vunpack.c.l.b16 %v3335
    %v3420 = vunpack.c.h.b16 %v3335
    %v3421 = vunpack.c.l.b16 %v3336
    %v3422 = vunpack.c.h.b16 %v3336
    %v3423 = vunpack.c.l.b16 %v3337
    %v3424 = vunpack.c.h.b16 %v3337
    %v3425 = vunpack.c.l.b16 %v3338
    %v3426 = vunpack.c.h.b16 %v3338
    %v3427 = vunpack.c.l.b16 %v3339
    %v3428 = vunpack.c.h.b16 %v3339
    %v3429 = vunpack.c.l.b16 %v3340
    %v3430 = vunpack.c.h.b16 %v3340
    %v3431 = vunpack.c.l.b16 %v3341
    %v3432 = vunpack.c.h.b16 %v3341
    %v3433 = vunpack.c.l.b16 %v3342
    %v3434 = vunpack.c.h.b16 %v3342
    %v3435 = vunpack.c.l.b16 %v3343
    %v3436 = vunpack.c.h.b16 %v3343
    %v3437 = vunpack.c.l.b16 %v3344
    %v3438 = vunpack.c.h.b16 %v3344
    %v3439 = vunpack.c.l.b16 %v3345
    %v3440 = vunpack.c.h.b16 %v3345
    %v3441 = vunpack.c.l.b16 %v3346
    %v3442 = vunpack.c.h.b16 %v3346
    %v3443 = vpack.c.b16 %v3383, %v3379
    %v3444 = vpack.c.b16 %v3384, %v3380
    %v3445 = vpack.c.b16 %v3385, %v3381
    %v3446 = vpack.c.b16 %v3386, %v3382
    %v3447 = vpack.c.b16 %v3391, %v3387
    %v3448 = vpack.c.b16 %v3392, %v3388
    %v3449 = vpack.c.b16 %v3393, %v3389
    %v3450 = vpack.c.b16 %v3394, %v3390
    %v3451 = vpack.c.b16 %v3399, %v3395
    %v3452 = vpack.c.b16 %v3400, %v3396
    %v3453 = vpack.c.b16 %v3401, %v3397
    %v3454 = vpack.c.b16 %v3402, %v3398
    %v3455 = vpack.c.b16 %v3407, %v3403
    %v3456 = vpack.c.b16 %v3408, %v3404
    %v3457 = vpack.c.b16 %v3409, %v3405
    %v3458 = vpack.c.b16 %v3410, %v3406
    %v3459 = vpack.c.b16 %v3415, %v3411
    %v3460 = vpack.c.b16 %v3416, %v3412
    %v3461 = vpack.c.b16 %v3417, %v3413
    %v3462 = vpack.c.b16 %v3418, %v3414
    %v3463 = vpack.c.b16 %v3423, %v3419
    %v3464 = vpack.c.b16 %v3424, %v3420
    %v3465 = vpack.c.b16 %v3425, %v3421
    %v3466 = vpack.c.b16 %v3426, %v3422
    %v3467 = vpack.c.b16 %v3431, %v3427
    %v3468 = vpack.c.b16 %v3432, %v3428
    %v3469 = vpack.c.b16 %v3433, %v3429
    %v3470 = vpack.c.b16 %v3434, %v3430
    %v3471 = vpack.c.b16 %v3439, %v3435
    %v3472 = vpack.c.b16 %v3440, %v3436
    %v3473 = vpack.c.b16 %v3441, %v3437
    %v3474 = vpack.c.b16 %v3442, %v3438
    %3507 = vmatprep.subr.bf16.mxu0 %v3444
    %3508 = vmatpush1.bf16.msra.mxu0 %v3443
    %3509 = vmatprep.subr.bf16.mxu0 %v3448
    %3510 = vmatpush1.bf16.msra.mxu0 %v3447
    %3511 = vmatprep.subr.bf16.mxu0 %v3452
    %3512 = vmatpush1.bf16.msra.mxu0 %v3451
    %3513 = vmatprep.subr.bf16.mxu0 %v3456
    %3514 = vmatpush1.bf16.msra.mxu0 %v3455
    %3515 = vmatprep.subr.bf16.mxu0 %v3460
    %3516 = vmatpush1.bf16.msra.mxu0 %v3459
    %3517 = vmatprep.subr.bf16.mxu0 %v3464
    %3518 = vmatpush1.bf16.msra.mxu0 %v3463
    %3519 = vmatprep.subr.bf16.mxu0 %v3468
    %3520 = vmatpush1.bf16.msra.mxu0 %v3467
    %3521 = vmatprep.subr.bf16.mxu0 %v3472
    %3522 = vmatpush1.bf16.msra.mxu0 %v3471
    %3523 = vmatprep.subr.bf16.mxu0 0
    %3524 = vmatpush1.bf16.msra.mxu0 0
    %3525 = vmatprep.subr.bf16.mxu0 0
    %3526 = vmatpush1.bf16.msra.mxu0 0
    %3527 = vmatprep.subr.bf16.mxu0 0
    %3528 = vmatpush1.bf16.msra.mxu0 0
    %3529 = vmatprep.subr.bf16.mxu0 0
    %3530 = vmatpush1.bf16.msra.mxu0 0
    %3531 = vmatprep.subr.bf16.mxu0 0
    %3532 = vmatpush1.bf16.msra.mxu0 0
    %3533 = vmatprep.subr.bf16.mxu0 0
    %3534 = vmatpush1.bf16.msra.mxu0 0
    %3535 = vmatprep.subr.bf16.mxu0 0
    %3536 = vmatpush1.bf16.msra.mxu0 0
    %3537 = vmatprep.subr.bf16.mxu0 0
    %3538 = vmatpush1.bf16.msra.mxu0 0
    %3539 = vmatprep.mubr.bf16.mxu0 0
    %3540 = vmatmul.mubr.bf16.gmra.mrb[0].mxu0 %v3314
    %v3541 = vpop.f32.mrb[0].mxu0
    %v3542 = vadd.f32 0.0, %v3541
    %v3543 = vpop.f32.mrb[0].mxu0
    %v3544 = vadd.f32 0.0, %v3543
    %v3545 = vpop.f32.mrb[0].mxu0
    %v3546 = vpop.f32.mrb[0].mxu0
    %3547 = vdwg.mxu0
    %3548 = vmatprep.subr.bf16.mxu0 %v3446
    %3549 = vmatpush1.bf16.msra.mxu0 %v3445
    %3550 = vmatprep.subr.bf16.mxu0 %v3450
    %3551 = vmatpush1.bf16.msra.mxu0 %v3449
    %3552 = vmatprep.subr.bf16.mxu0 %v3454
    %3553 = vmatpush1.bf16.msra.mxu0 %v3453
    %3554 = vmatprep.subr.bf16.mxu0 %v3458
    %3555 = vmatpush1.bf16.msra.mxu0 %v3457
    %3556 = vmatprep.subr.bf16.mxu0 %v3462
    %3557 = vmatpush1.bf16.msra.mxu0 %v3461
    %3558 = vmatprep.subr.bf16.mxu0 %v3466
    %3559 = vmatpush1.bf16.msra.mxu0 %v3465
    %3560 = vmatprep.subr.bf16.mxu0 %v3470
    %3561 = vmatpush1.bf16.msra.mxu0 %v3469
    %3562 = vmatprep.subr.bf16.mxu0 %v3474
    %3563 = vmatpush1.bf16.msra.mxu0 %v3473
    %3564 = vmatprep.subr.bf16.mxu0 0
    %3565 = vmatpush1.bf16.msra.mxu0 0
    %3566 = vmatprep.subr.bf16.mxu0 0
    %3567 = vmatpush1.bf16.msra.mxu0 0
    %3568 = vmatprep.subr.bf16.mxu0 0
    %3569 = vmatpush1.bf16.msra.mxu0 0
    %3570 = vmatprep.subr.bf16.mxu0 0
    %3571 = vmatpush1.bf16.msra.mxu0 0
    %3572 = vmatprep.subr.bf16.mxu0 0
    %3573 = vmatpush1.bf16.msra.mxu0 0
    %3574 = vmatprep.subr.bf16.mxu0 0
    %3575 = vmatpush1.bf16.msra.mxu0 0
    %3576 = vmatprep.subr.bf16.mxu0 0
    %3577 = vmatpush1.bf16.msra.mxu0 0
    %3578 = vmatprep.subr.bf16.mxu0 0
    %3579 = vmatpush1.bf16.msra.mxu0 0
    %3580 = vmatprep.mubr.bf16.mxu0 0
    %3581 = vmatmul.mubr.bf16.gmra.mrb[0].mxu0 %v3314
    %v3582 = vpop.f32.mrb[0].mxu0
    %v3583 = vadd.f32 0.0, %v3582
    %v3584 = vpop.f32.mrb[0].mxu0
    %v3585 = vadd.f32 0.0, %v3584
    %v3586 = vpop.f32.mrb[0].mxu0
    %v3587 = vpop.f32.mrb[0].mxu0
    %3588 = vdwg.mxu0
    %v3589 = vadd.f32 %v3310, %v3542
    %v3590 = vadd.f32 %v3311, %v3544
    %v3591 = vadd.f32 %v3312, %v3583
    %v3592 = vadd.f32 %v3313, %v3585
    %v3593 = vxor.u32 %v3589, 2147483648
    %v3594 = vxor.u32 %v3590, 2147483648
    %v3595 = vxor.u32 %v3591, 2147483648
    %v3596 = vmul.f32 %v3593, 1.442695
    %v3597 = vpow.pop %v3596
    %v3598 = vmul.f32 %v3594, 1.442695
    %v3599 = vpow.pop %v3598
    %v3600 = vmul.f32 %v3595, 1.442695
    %v3601 = vpow.pop %v3600
    %v3602 = vadd.f32 %v3597, 1.0
    %v3603 = vadd.f32 %v3599, 1.0
    %v3604 = vadd.f32 %v3601, 1.0
    %v3605 = vrcp.pop %v3602
    %v3606 = vmul.f32 1.0, %v3605
    %v3607 = vrcp.pop %v3603
    %v3608 = vmul.f32 1.0, %v3607
    %v3609 = vrcp.pop %v3604
    %v3610 = vmul.f32 1.0, %v3609
    %v3611 = vtanh.pop %v3592
    %v3612 = vmul.f32 %v3608, %v2594
    %v3613 = vmul.f32 %v3606, %v3611
    %v3614 = vadd.f32 %v3612, %v3613
    %v3615 = vtanh.pop %v3614
    %v3616 = vmul.f32 %v3610, %v3615
    %v3617 = vmax.f32 %v3616, 0.0
    %v3618 = vpack.c.bf16 %v3617, %v3617
    %v3619 = vld [vmem:[%s7] sm:$0xf]
    %v3620 = vld [vmem:[%s7 + $0x4] sm:$0xf]
    %v3621 = vld [vmem:[%s7 + $0x8] sm:$0xf]
    %v3622 = vld [vmem:[%s7 + $0xc] sm:$0xf]
    %v3623 = vld [vmem:[%s7 + $0x10] sm:$0xf]
    %v3624 = vld [vmem:[%s7 + $0x14] sm:$0xf]
    %v3625 = vld [vmem:[%s7 + $0x18] sm:$0xf]
    %v3626 = vld [vmem:[%s7 + $0x1c] sm:$0xf]
    %v3627 = vld [vmem:[%s7 + $0x20] sm:$0xf]
    %v3628 = vld [vmem:[%s7 + $0x24] sm:$0xf]
    %v3629 = vld [vmem:[%s7 + $0x28] sm:$0xf]
    %v3630 = vld [vmem:[%s7 + $0x2c] sm:$0xf]
    %v3631 = vld [vmem:[%s7 + $0x30] sm:$0xf]
    %v3632 = vld [vmem:[%s7 + $0x34] sm:$0xf]
    %v3633 = vld [vmem:[%s7 + $0x38] sm:$0xf]
    %v3634 = vld [vmem:[%s7 + $0x3c] sm:$0xf]
    %v3635 = vld [vmem:[%s8] sm:$0x1]
    %v3637 = vlaneseq
    %v3638 = vshrl.u32 %v3637, 7
    %v3639 = vsub.s32 0, %v3638
    %v3640 = vrot.slane %v3635, %v3639
    %v3658 = vunpack.c.l.b16 %v3619
    %v3659 = vunpack.c.l.b16 %v3620
    %v3660 = vunpack.c.l.b16 %v3621
    %v3661 = vunpack.c.l.b16 %v3622
    %v3662 = vunpack.c.l.b16 %v3623
    %v3663 = vunpack.c.l.b16 %v3624
    %v3664 = vunpack.c.l.b16 %v3625
    %v3665 = vunpack.c.l.b16 %v3626
    %v3666 = vunpack.c.l.b16 %v3627
    %v3667 = vunpack.c.l.b16 %v3628
    %v3668 = vunpack.c.l.b16 %v3629
    %v3669 = vunpack.c.l.b16 %v3630
    %v3670 = vunpack.c.l.b16 %v3631
    %v3671 = vunpack.c.l.b16 %v3632
    %v3672 = vunpack.c.l.b16 %v3633
    %v3673 = vunpack.c.l.b16 %v3634
    %v3674 = vpack.c.b16 %v3659, %v3658
    %v3675 = vpack.c.b16 %v3661, %v3660
    %v3676 = vpack.c.b16 %v3663, %v3662
    %v3677 = vpack.c.b16 %v3665, %v3664
    %v3678 = vpack.c.b16 %v3667, %v3666
    %v3679 = vpack.c.b16 %v3669, %v3668
    %v3680 = vpack.c.b16 %v3671, %v3670
    %v3681 = vpack.c.b16 %v3673, %v3672
    %3690 = vmatprep.subr.bf16.mxu0 0
    %3691 = vmatpush1.bf16.msra.mxu0 %v3674
    %3692 = vmatprep.subr.bf16.mxu0 0
    %3693 = vmatpush1.bf16.msra.mxu0 %v3675
    %3694 = vmatprep.subr.bf16.mxu0 0
    %3695 = vmatpush1.bf16.msra.mxu0 %v3676
    %3696 = vmatprep.subr.bf16.mxu0 0
    %3697 = vmatpush1.bf16.msra.mxu0 %v3677
    %3698 = vmatprep.subr.bf16.mxu0 0
    %3699 = vmatpush1.bf16.msra.mxu0 %v3678
    %3700 = vmatprep.subr.bf16.mxu0 0
    %3701 = vmatpush1.bf16.msra.mxu0 %v3679
    %3702 = vmatprep.subr.bf16.mxu0 0
    %3703 = vmatpush1.bf16.msra.mxu0 %v3680
    %3704 = vmatprep.subr.bf16.mxu0 0
    %3705 = vmatpush1.bf16.msra.mxu0 %v3681
    %3706 = vmatprep.subr.bf16.mxu0 0
    %3707 = vmatpush1.bf16.msra.mxu0 0
    %3708 = vmatprep.subr.bf16.mxu0 0
    %3709 = vmatpush1.bf16.msra.mxu0 0
    %3710 = vmatprep.subr.bf16.mxu0 0
    %3711 = vmatpush1.bf16.msra.mxu0 0
    %3712 = vmatprep.subr.bf16.mxu0 0
    %3713 = vmatpush1.bf16.msra.mxu0 0
    %3714 = vmatprep.subr.bf16.mxu0 0
    %3715 = vmatpush1.bf16.msra.mxu0 0
    %3716 = vmatprep.subr.bf16.mxu0 0
    %3717 = vmatpush1.bf16.msra.mxu0 0
    %3718 = vmatprep.subr.bf16.mxu0 0
    %3719 = vmatpush1.bf16.msra.mxu0 0
    %3720 = vmatprep.subr.bf16.mxu0 0
    %3721 = vmatpush1.bf16.msra.mxu0 0
    %3722 = vmatprep.mubr.bf16.mxu0 0
    %3723 = vmatmul.mubr.bf16.gmra.mrb[0].mxu0 %v3618
    %v3724 = vpop.f32.mrb[0].mxu0
    %v3725 = vadd.f32 %v3640, %v3724
    %v3726 = vpop.f32.mrb[0].mxu0
    %v3727 = vpop.f32.mrb[0].mxu0
    %v3728 = vpop.f32.mrb[0].mxu0
    %3729 = vdwg.mxu0
    %3730 = vst [vmem:[%s9 + $0x8] sm:$0xff] %v3725
    %v3731 = vld [vmem:[#allocation4] sm:$0xff]
    %v3732 = vld [vmem:[#allocation4 + $0x8] sm:$0xff]
    %v3733 = vld [vmem:[#allocation4 + $0x10] sm:$0xff]
    %v3734 = vld [vmem:[#allocation4 + $0x18] sm:$0xff]
    %v3735 = vld [vmem:[#allocation4 + $0x20] sm:$0xff]
    %v3736 = vld [vmem:[#allocation4 + $0x28] sm:$0xff]
    %v3737 = vld [vmem:[#allocation4 + $0x30] sm:$0xff]
    %v3738 = vld [vmem:[#allocation4 + $0x38] sm:$0xff]
    %v3739 = vld [vmem:[#allocation4 + $0x40] sm:$0xff]
    %v3740 = vld [vmem:[#allocation4 + $0x48] sm:$0xff]
    %v3741 = vld [vmem:[#allocation4 + $0x50] sm:$0xff]
    %v3742 = vld [vmem:[#allocation4 + $0x58] sm:$0xff]
    %v3743 = vld [vmem:[#allocation4 + $0x60] sm:$0xff]
    %v3744 = vld [vmem:[#allocation4 + $0x68] sm:$0xff]
    %v3745 = vld [vmem:[#allocation4 + $0x70] sm:$0xff]
    %v3746 = vld [vmem:[#allocation4 + $0x78] sm:$0xff]
    %v3747 = vld [vmem:[#allocation4 + $0x80] sm:$0xff]
    %v3748 = vld [vmem:[#allocation4 + $0x88] sm:$0xff]
    %v3749 = vld [vmem:[#allocation4 + $0x90] sm:$0xff]
    %v3750 = vld [vmem:[#allocation4 + $0x98] sm:$0xff]
    %v3751 = vld [vmem:[#allocation4 + $0xa0] sm:$0xff]
    %v3752 = vld [vmem:[#allocation4 + $0xa8] sm:$0xff]
    %v3753 = vld [vmem:[#allocation4 + $0xb0] sm:$0xff]
    %v3754 = vld [vmem:[#allocation4 + $0xb8] sm:$0xff]
    %v3755 = vld [vmem:[#allocation4 + $0xc0] sm:$0xff]
    %v3756 = vld [vmem:[#allocation4 + $0xc8] sm:$0xff]
    %v3757 = vld [vmem:[#allocation4 + $0xd0] sm:$0xff]
    %v3758 = vld [vmem:[#allocation4 + $0xd8] sm:$0xff]
    %v3759 = vld [vmem:[#allocation4 + $0xe0] sm:$0xff]
    %v3760 = vld [vmem:[#allocation4 + $0xe8] sm:$0xff]
    %v3761 = vld [vmem:[#allocation4 + $0xf0] sm:$0xff]
    %v3762 = vld [vmem:[#allocation4 + $0xf8] sm:$0xff]
    %v3795 = vunpack.c.l.b16 %v3731
    %v3796 = vunpack.c.h.b16 %v3731
    %v3797 = vunpack.c.l.b16 %v3732
    %v3798 = vunpack.c.h.b16 %v3732
    %v3799 = vunpack.c.l.b16 %v3733
    %v3800 = vunpack.c.h.b16 %v3733
    %v3801 = vunpack.c.l.b16 %v3734
    %v3802 = vunpack.c.h.b16 %v3734
    %v3803 = vunpack.c.l.b16 %v3735
    %v3804 = vunpack.c.h.b16 %v3735
    %v3805 = vunpack.c.l.b16 %v3736
    %v3806 = vunpack.c.h.b16 %v3736
    %v3807 = vunpack.c.l.b16 %v3737
    %v3808 = vunpack.c.h.b16 %v3737
    %v3809 = vunpack.c.l.b16 %v3738
    %v3810 = vunpack.c.h.b16 %v3738
    %v3811 = vunpack.c.l.b16 %v3739
    %v3812 = vunpack.c.h.b16 %v3739
    %v3813 = vunpack.c.l.b16 %v3740
    %v3814 = vunpack.c.h.b16 %v3740
    %v3815 = vunpack.c.l.b16 %v3741
    %v3816 = vunpack.c.h.b16 %v3741
    %v3817 = vunpack.c.l.b16 %v3742
    %v3818 = vunpack.c.h.b16 %v3742
    %v3819 = vunpack.c.l.b16 %v3743
    %v3820 = vunpack.c.h.b16 %v3743
    %v3821 = vunpack.c.l.b16 %v3744
    %v3822 = vunpack.c.h.b16 %v3744
    %v3823 = vunpack.c.l.b16 %v3745
    %v3824 = vunpack.c.h.b16 %v3745
    %v3825 = vunpack.c.l.b16 %v3746
    %v3826 = vunpack.c.h.b16 %v3746
    %v3827 = vunpack.c.l.b16 %v3747
    %v3828 = vunpack.c.h.b16 %v3747
    %v3829 = vunpack.c.l.b16 %v3748
    %v3830 = vunpack.c.h.b16 %v3748
    %v3831 = vunpack.c.l.b16 %v3749
    %v3832 = vunpack.c.h.b16 %v3749
    %v3833 = vunpack.c.l.b16 %v3750
    %v3834 = vunpack.c.h.b16 %v3750
    %v3835 = vunpack.c.l.b16 %v3751
    %v3836 = vunpack.c.h.b16 %v3751
    %v3837 = vunpack.c.l.b16 %v3752
    %v3838 = vunpack.c.h.b16 %v3752
    %v3839 = vunpack.c.l.b16 %v3753
    %v3840 = vunpack.c.h.b16 %v3753
    %v3841 = vunpack.c.l.b16 %v3754
    %v3842 = vunpack.c.h.b16 %v3754
    %v3843 = vunpack.c.l.b16 %v3755
    %v3844 = vunpack.c.h.b16 %v3755
    %v3845 = vunpack.c.l.b16 %v3756
    %v3846 = vunpack.c.h.b16 %v3756
    %v3847 = vunpack.c.l.b16 %v3757
    %v3848 = vunpack.c.h.b16 %v3757
    %v3849 = vunpack.c.l.b16 %v3758
    %v3850 = vunpack.c.h.b16 %v3758
    %v3851 = vunpack.c.l.b16 %v3759
    %v3852 = vunpack.c.h.b16 %v3759
    %v3853 = vunpack.c.l.b16 %v3760
    %v3854 = vunpack.c.h.b16 %v3760
    %v3855 = vunpack.c.l.b16 %v3761
    %v3856 = vunpack.c.h.b16 %v3761
    %v3857 = vunpack.c.l.b16 %v3762
    %v3858 = vunpack.c.h.b16 %v3762
    %v3859 = vpack.c.b16 %v3799, %v3795
    %v3860 = vpack.c.b16 %v3800, %v3796
    %v3861 = vpack.c.b16 %v3801, %v3797
    %v3862 = vpack.c.b16 %v3802, %v3798
    %v3863 = vpack.c.b16 %v3807, %v3803
    %v3864 = vpack.c.b16 %v3808, %v3804
    %v3865 = vpack.c.b16 %v3809, %v3805
    %v3866 = vpack.c.b16 %v3810, %v3806
    %v3867 = vpack.c.b16 %v3815, %v3811
    %v3868 = vpack.c.b16 %v3816, %v3812
    %v3869 = vpack.c.b16 %v3817, %v3813
    %v3870 = vpack.c.b16 %v3818, %v3814
    %v3871 = vpack.c.b16 %v3823, %v3819
    %v3872 = vpack.c.b16 %v3824, %v3820
    %v3873 = vpack.c.b16 %v3825, %v3821
    %v3874 = vpack.c.b16 %v3826, %v3822
    %v3875 = vpack.c.b16 %v3831, %v3827
    %v3876 = vpack.c.b16 %v3832, %v3828
    %v3877 = vpack.c.b16 %v3833, %v3829
    %v3878 = vpack.c.b16 %v3834, %v3830
    %v3879 = vpack.c.b16 %v3839, %v3835
    %v3880 = vpack.c.b16 %v3840, %v3836
    %v3881 = vpack.c.b16 %v3841, %v3837
    %v3882 = vpack.c.b16 %v3842, %v3838
    %v3883 = vpack.c.b16 %v3847, %v3843
    %v3884 = vpack.c.b16 %v3848, %v3844
    %v3885 = vpack.c.b16 %v3849, %v3845
    %v3886 = vpack.c.b16 %v3850, %v3846
    %v3887 = vpack.c.b16 %v3855, %v3851
    %v3888 = vpack.c.b16 %v3856, %v3852
    %v3889 = vpack.c.b16 %v3857, %v3853
    %v3890 = vpack.c.b16 %v3858, %v3854
    %3923 = vmatprep.subr.bf16.mxu0 %v3860
    %3924 = vmatpush1.bf16.msra.mxu0 %v3859
    %3925 = vmatprep.subr.bf16.mxu0 %v3864
    %3926 = vmatpush1.bf16.msra.mxu0 %v3863
    %3927 = vmatprep.subr.bf16.mxu0 %v3868
    %3928 = vmatpush1.bf16.msra.mxu0 %v3867
    %3929 = vmatprep.subr.bf16.mxu0 %v3872
    %3930 = vmatpush1.bf16.msra.mxu0 %v3871
    %3931 = vmatprep.subr.bf16.mxu0 %v3876
    %3932 = vmatpush1.bf16.msra.mxu0 %v3875
    %3933 = vmatprep.subr.bf16.mxu0 %v3880
    %3934 = vmatpush1.bf16.msra.mxu0 %v3879
    %3935 = vmatprep.subr.bf16.mxu0 %v3884
    %3936 = vmatpush1.bf16.msra.mxu0 %v3883
    %3937 = vmatprep.subr.bf16.mxu0 %v3888
    %3938 = vmatpush1.bf16.msra.mxu0 %v3887
    %3939 = vmatprep.subr.bf16.mxu0 0
    %3940 = vmatpush1.bf16.msra.mxu0 0
    %3941 = vmatprep.subr.bf16.mxu0 0
    %3942 = vmatpush1.bf16.msra.mxu0 0
    %3943 = vmatprep.subr.bf16.mxu0 0
    %3944 = vmatpush1.bf16.msra.mxu0 0
    %3945 = vmatprep.subr.bf16.mxu0 0
    %3946 = vmatpush1.bf16.msra.mxu0 0
    %3947 = vmatprep.subr.bf16.mxu0 0
    %3948 = vmatpush1.bf16.msra.mxu0 0
    %3949 = vmatprep.subr.bf16.mxu0 0
    %3950 = vmatpush1.bf16.msra.mxu0 0
    %3951 = vmatprep.subr.bf16.mxu0 0
    %3952 = vmatpush1.bf16.msra.mxu0 0
    %3953 = vmatprep.subr.bf16.mxu0 0
    %3954 = vmatpush1.bf16.msra.mxu0 0
    %3955 = vmatprep.mubr.bf16.mxu0 0
    %3956 = vmatmul.mubr.bf16.gmra.mrb[0].mxu0 %v3014
    %v3957 = vpop.f32.mrb[0].mxu0
    %v3958 = vadd.f32 0.0, %v3957
    %v3959 = vpop.f32.mrb[0].mxu0
    %v3960 = vadd.f32 0.0, %v3959
    %v3961 = vpop.f32.mrb[0].mxu0
    %v3962 = vpop.f32.mrb[0].mxu0
    %3963 = vdwg.mxu0
    %3964 = vmatprep.subr.bf16.mxu0 %v3862
    %3965 = vmatpush1.bf16.msra.mxu0 %v3861
    %3966 = vmatprep.subr.bf16.mxu0 %v3866
    %3967 = vmatpush1.bf16.msra.mxu0 %v3865
    %3968 = vmatprep.subr.bf16.mxu0 %v3870
    %3969 = vmatpush1.bf16.msra.mxu0 %v3869
    %3970 = vmatprep.subr.bf16.mxu0 %v3874
    %3971 = vmatpush1.bf16.msra.mxu0 %v3873
    %3972 = vmatprep.subr.bf16.mxu0 %v3878
    %3973 = vmatpush1.bf16.msra.mxu0 %v3877
    %3974 = vmatprep.subr.bf16.mxu0 %v3882
    %3975 = vmatpush1.bf16.msra.mxu0 %v3881
    %3976 = vmatprep.subr.bf16.mxu0 %v3886
    %3977 = vmatpush1.bf16.msra.mxu0 %v3885
    %3978 = vmatprep.subr.bf16.mxu0 %v3890
    %3979 = vmatpush1.bf16.msra.mxu0 %v3889
    %3980 = vmatprep.subr.bf16.mxu0 0
    %3981 = vmatpush1.bf16.msra.mxu0 0
    %3982 = vmatprep.subr.bf16.mxu0 0
    %3983 = vmatpush1.bf16.msra.mxu0 0
    %3984 = vmatprep.subr.bf16.mxu0 0
    %3985 = vmatpush1.bf16.msra.mxu0 0
    %3986 = vmatprep.subr.bf16.mxu0 0
    %3987 = vmatpush1.bf16.msra.mxu0 0
    %3988 = vmatprep.subr.bf16.mxu0 0
    %3989 = vmatpush1.bf16.msra.mxu0 0
    %3990 = vmatprep.subr.bf16.mxu0 0
    %3991 = vmatpush1.bf16.msra.mxu0 0
    %3992 = vmatprep.subr.bf16.mxu0 0
    %3993 = vmatpush1.bf16.msra.mxu0 0
    %3994 = vmatprep.subr.bf16.mxu0 0
    %3995 = vmatpush1.bf16.msra.mxu0 0
    %3996 = vmatprep.mubr.bf16.mxu0 0
    %3997 = vmatmul.mubr.bf16.gmra.mrb[0].mxu0 %v3014
    %v3998 = vpop.f32.mrb[0].mxu0
    %v3999 = vadd.f32 0.0, %v3998
    %v4000 = vpop.f32.mrb[0].mxu0
    %v4001 = vadd.f32 0.0, %v4000
    %v4002 = vpop.f32.mrb[0].mxu0
    %v4003 = vpop.f32.mrb[0].mxu0
    %4004 = vdwg.mxu0
    %v4005 = vadd.f32 %v379, %v3958
    %v4006 = vadd.f32 %v381, %v3960
    %v4007 = vadd.f32 %v452, %v3999
    %v4008 = vadd.f32 %v454, %v4001
    %v4009 = vxor.u32 %v4005, 2147483648
    %v4010 = vxor.u32 %v4006, 2147483648
    %v4011 = vxor.u32 %v4007, 2147483648
    %v4012 = vmul.f32 %v4009, 1.442695
    %v4013 = vpow.pop %v4012
    %v4014 = vmul.f32 %v4010, 1.442695
    %v4015 = vpow.pop %v4014
    %v4016 = vmul.f32 %v4011, 1.442695
    %v4017 = vpow.pop %v4016
    %v4018 = vadd.f32 %v4013, 1.0
    %v4019 = vadd.f32 %v4015, 1.0
    %v4020 = vadd.f32 %v4017, 1.0
    %v4021 = vrcp.pop %v4018
    %v4022 = vmul.f32 1.0, %v4021
    %v4023 = vrcp.pop %v4019
    %v4024 = vmul.f32 1.0, %v4023
    %v4025 = vrcp.pop %v4020
    %v4026 = vmul.f32 1.0, %v4025
    %v4027 = vtanh.pop %v4008
    %v4028 = vmul.f32 %v4024, %v3010
    %v4029 = vmul.f32 %v4022, %v4027
    %v4030 = vadd.f32 %v4028, %v4029
    %v4031 = vtanh.pop %v4030
    %v4032 = vmul.f32 %v4026, %v4031
    %v4033 = vld [vmem:[%s6] sm:$0xf]
    %v4034 = vpack.c.bf16 %v4032, %v4032
    %v4035 = vld [vmem:[#allocation6] sm:$0xff]
    %v4036 = vld [vmem:[#allocation6 + $0x8] sm:$0xff]
    %v4037 = vld [vmem:[#allocation6 + $0x10] sm:$0xff]
    %v4038 = vld [vmem:[#allocation6 + $0x18] sm:$0xff]
    %v4039 = vld [vmem:[#allocation6 + $0x20] sm:$0xff]
    %v4040 = vld [vmem:[#allocation6 + $0x28] sm:$0xff]
    %v4041 = vld [vmem:[#allocation6 + $0x30] sm:$0xff]
    %v4042 = vld [vmem:[#allocation6 + $0x38] sm:$0xff]
    %v4043 = vld [vmem:[#allocation6 + $0x40] sm:$0xff]
    %v4044 = vld [vmem:[#allocation6 + $0x48] sm:$0xff]
    %v4045 = vld [vmem:[#allocation6 + $0x50] sm:$0xff]
    %v4046 = vld [vmem:[#allocation6 + $0x58] sm:$0xff]
    %v4047 = vld [vmem:[#allocation6 + $0x60] sm:$0xff]
    %v4048 = vld [vmem:[#allocation6 + $0x68] sm:$0xff]
    %v4049 = vld [vmem:[#allocation6 + $0x70] sm:$0xff]
    %v4050 = vld [vmem:[#allocation6 + $0x78] sm:$0xff]
    %v4051 = vld [vmem:[#allocation6 + $0x80] sm:$0xff]
    %v4052 = vld [vmem:[#allocation6 + $0x88] sm:$0xff]
    %v4053 = vld [vmem:[#allocation6 + $0x90] sm:$0xff]
    %v4054 = vld [vmem:[#allocation6 + $0x98] sm:$0xff]
    %v4055 = vld [vmem:[#allocation6 + $0xa0] sm:$0xff]
    %v4056 = vld [vmem:[#allocation6 + $0xa8] sm:$0xff]
    %v4057 = vld [vmem:[#allocation6 + $0xb0] sm:$0xff]
    %v4058 = vld [vmem:[#allocation6 + $0xb8] sm:$0xff]
    %v4059 = vld [vmem:[#allocation6 + $0xc0] sm:$0xff]
    %v4060 = vld [vmem:[#allocation6 + $0xc8] sm:$0xff]
    %v4061 = vld [vmem:[#allocation6 + $0xd0] sm:$0xff]
    %v4062 = vld [vmem:[#allocation6 + $0xd8] sm:$0xff]
    %v4063 = vld [vmem:[#allocation6 + $0xe0] sm:$0xff]
    %v4064 = vld [vmem:[#allocation6 + $0xe8] sm:$0xff]
    %v4065 = vld [vmem:[#allocation6 + $0xf0] sm:$0xff]
    %v4066 = vld [vmem:[#allocation6 + $0xf8] sm:$0xff]
    %v4099 = vunpack.c.l.b16 %v4035
    %v4100 = vunpack.c.h.b16 %v4035
    %v4101 = vunpack.c.l.b16 %v4036
    %v4102 = vunpack.c.h.b16 %v4036
    %v4103 = vunpack.c.l.b16 %v4037
    %v4104 = vunpack.c.h.b16 %v4037
    %v4105 = vunpack.c.l.b16 %v4038
    %v4106 = vunpack.c.h.b16 %v4038
    %v4107 = vunpack.c.l.b16 %v4039
    %v4108 = vunpack.c.h.b16 %v4039
    %v4109 = vunpack.c.l.b16 %v4040
    %v4110 = vunpack.c.h.b16 %v4040
    %v4111 = vunpack.c.l.b16 %v4041
    %v4112 = vunpack.c.h.b16 %v4041
    %v4113 = vunpack.c.l.b16 %v4042
    %v4114 = vunpack.c.h.b16 %v4042
    %v4115 = vunpack.c.l.b16 %v4043
    %v4116 = vunpack.c.h.b16 %v4043
    %v4117 = vunpack.c.l.b16 %v4044
    %v4118 = vunpack.c.h.b16 %v4044
    %v4119 = vunpack.c.l.b16 %v4045
    %v4120 = vunpack.c.h.b16 %v4045
    %v4121 = vunpack.c.l.b16 %v4046
    %v4122 = vunpack.c.h.b16 %v4046
    %v4123 = vunpack.c.l.b16 %v4047
    %v4124 = vunpack.c.h.b16 %v4047
    %v4125 = vunpack.c.l.b16 %v4048
    %v4126 = vunpack.c.h.b16 %v4048
    %v4127 = vunpack.c.l.b16 %v4049
    %v4128 = vunpack.c.h.b16 %v4049
    %v4129 = vunpack.c.l.b16 %v4050
    %v4130 = vunpack.c.h.b16 %v4050
    %v4131 = vunpack.c.l.b16 %v4051
    %v4132 = vunpack.c.h.b16 %v4051
    %v4133 = vunpack.c.l.b16 %v4052
    %v4134 = vunpack.c.h.b16 %v4052
    %v4135 = vunpack.c.l.b16 %v4053
    %v4136 = vunpack.c.h.b16 %v4053
    %v4137 = vunpack.c.l.b16 %v4054
    %v4138 = vunpack.c.h.b16 %v4054
    %v4139 = vunpack.c.l.b16 %v4055
    %v4140 = vunpack.c.h.b16 %v4055
    %v4141 = vunpack.c.l.b16 %v4056
    %v4142 = vunpack.c.h.b16 %v4056
    %v4143 = vunpack.c.l.b16 %v4057
    %v4144 = vunpack.c.h.b16 %v4057
    %v4145 = vunpack.c.l.b16 %v4058
    %v4146 = vunpack.c.h.b16 %v4058
    %v4147 = vunpack.c.l.b16 %v4059
    %v4148 = vunpack.c.h.b16 %v4059
    %v4149 = vunpack.c.l.b16 %v4060
    %v4150 = vunpack.c.h.b16 %v4060
    %v4151 = vunpack.c.l.b16 %v4061
    %v4152 = vunpack.c.h.b16 %v4061
    %v4153 = vunpack.c.l.b16 %v4062
    %v4154 = vunpack.c.h.b16 %v4062
    %v4155 = vunpack.c.l.b16 %v4063
    %v4156 = vunpack.c.h.b16 %v4063
    %v4157 = vunpack.c.l.b16 %v4064
    %v4158 = vunpack.c.h.b16 %v4064
    %v4159 = vunpack.c.l.b16 %v4065
    %v4160 = vunpack.c.h.b16 %v4065
    %v4161 = vunpack.c.l.b16 %v4066
    %v4162 = vunpack.c.h.b16 %v4066
    %v4163 = vpack.c.b16 %v4103, %v4099
    %v4164 = vpack.c.b16 %v4104, %v4100
    %v4165 = vpack.c.b16 %v4105, %v4101
    %v4166 = vpack.c.b16 %v4106, %v4102
    %v4167 = vpack.c.b16 %v4111, %v4107
    %v4168 = vpack.c.b16 %v4112, %v4108
    %v4169 = vpack.c.b16 %v4113, %v4109
    %v4170 = vpack.c.b16 %v4114, %v4110
    %v4171 = vpack.c.b16 %v4119, %v4115
    %v4172 = vpack.c.b16 %v4120, %v4116
    %v4173 = vpack.c.b16 %v4121, %v4117
    %v4174 = vpack.c.b16 %v4122, %v4118
    %v4175 = vpack.c.b16 %v4127, %v4123
    %v4176 = vpack.c.b16 %v4128, %v4124
    %v4177 = vpack.c.b16 %v4129, %v4125
    %v4178 = vpack.c.b16 %v4130, %v4126
    %v4179 = vpack.c.b16 %v4135, %v4131
    %v4180 = vpack.c.b16 %v4136, %v4132
    %v4181 = vpack.c.b16 %v4137, %v4133
    %v4182 = vpack.c.b16 %v4138, %v4134
    %v4183 = vpack.c.b16 %v4143, %v4139
    %v4184 = vpack.c.b16 %v4144, %v4140
    %v4185 = vpack.c.b16 %v4145, %v4141
    %v4186 = vpack.c.b16 %v4146, %v4142
    %v4187 = vpack.c.b16 %v4151, %v4147
    %v4188 = vpack.c.b16 %v4152, %v4148
    %v4189 = vpack.c.b16 %v4153, %v4149
    %v4190 = vpack.c.b16 %v4154, %v4150
    %v4191 = vpack.c.b16 %v4159, %v4155
    %v4192 = vpack.c.b16 %v4160, %v4156
    %v4193 = vpack.c.b16 %v4161, %v4157
    %v4194 = vpack.c.b16 %v4162, %v4158
    %4227 = vmatprep.subr.bf16.mxu0 %v4164
    %4228 = vmatpush1.bf16.msra.mxu0 %v4163
    %4229 = vmatprep.subr.bf16.mxu0 %v4168
    %4230 = vmatpush1.bf16.msra.mxu0 %v4167
    %4231 = vmatprep.subr.bf16.mxu0 %v4172
    %4232 = vmatpush1.bf16.msra.mxu0 %v4171
    %4233 = vmatprep.subr.bf16.mxu0 %v4176
    %4234 = vmatpush1.bf16.msra.mxu0 %v4175
    %4235 = vmatprep.subr.bf16.mxu0 %v4180
    %4236 = vmatpush1.bf16.msra.mxu0 %v4179
    %4237 = vmatprep.subr.bf16.mxu0 %v4184
    %4238 = vmatpush1.bf16.msra.mxu0 %v4183
    %4239 = vmatprep.subr.bf16.mxu0 %v4188
    %4240 = vmatpush1.bf16.msra.mxu0 %v4187
    %4241 = vmatprep.subr.bf16.mxu0 %v4192
    %4242 = vmatpush1.bf16.msra.mxu0 %v4191
    %4243 = vmatprep.subr.bf16.mxu0 0
    %4244 = vmatpush1.bf16.msra.mxu0 0
    %4245 = vmatprep.subr.bf16.mxu0 0
    %4246 = vmatpush1.bf16.msra.mxu0 0
    %4247 = vmatprep.subr.bf16.mxu0 0
    %4248 = vmatpush1.bf16.msra.mxu0 0
    %4249 = vmatprep.subr.bf16.mxu0 0
    %4250 = vmatpush1.bf16.msra.mxu0 0
    %4251 = vmatprep.subr.bf16.mxu0 0
    %4252 = vmatpush1.bf16.msra.mxu0 0
    %4253 = vmatprep.subr.bf16.mxu0 0
    %4254 = vmatpush1.bf16.msra.mxu0 0
    %4255 = vmatprep.subr.bf16.mxu0 0
    %4256 = vmatpush1.bf16.msra.mxu0 0
    %4257 = vmatprep.subr.bf16.mxu0 0
    %4258 = vmatpush1.bf16.msra.mxu0 0
    %4259 = vmatprep.mubr.bf16.mxu0 0
    %4260 = vmatmul.mubr.bf16.gmra.mrb[0].mxu0 %v4034
    %v4261 = vpop.f32.mrb[0].mxu0
    %v4262 = vadd.f32 0.0, %v4261
    %v4263 = vpop.f32.mrb[0].mxu0
    %v4264 = vadd.f32 0.0, %v4263
    %v4265 = vpop.f32.mrb[0].mxu0
    %v4266 = vpop.f32.mrb[0].mxu0
    %4267 = vdwg.mxu0
    %4268 = vmatprep.subr.bf16.mxu0 %v4166
    %4269 = vmatpush1.bf16.msra.mxu0 %v4165
    %4270 = vmatprep.subr.bf16.mxu0 %v4170
    %4271 = vmatpush1.bf16.msra.mxu0 %v4169
    %4272 = vmatprep.subr.bf16.mxu0 %v4174
    %4273 = vmatpush1.bf16.msra.mxu0 %v4173
    %4274 = vmatprep.subr.bf16.mxu0 %v4178
    %4275 = vmatpush1.bf16.msra.mxu0 %v4177
    %4276 = vmatprep.subr.bf16.mxu0 %v4182
    %4277 = vmatpush1.bf16.msra.mxu0 %v4181
    %4278 = vmatprep.subr.bf16.mxu0 %v4186
    %4279 = vmatpush1.bf16.msra.mxu0 %v4185
    %4280 = vmatprep.subr.bf16.mxu0 %v4190
    %4281 = vmatpush1.bf16.msra.mxu0 %v4189
    %4282 = vmatprep.subr.bf16.mxu0 %v4194
    %4283 = vmatpush1.bf16.msra.mxu0 %v4193
    %4284 = vmatprep.subr.bf16.mxu0 0
    %4285 = vmatpush1.bf16.msra.mxu0 0
    %4286 = vmatprep.subr.bf16.mxu0 0
    %4287 = vmatpush1.bf16.msra.mxu0 0
    %4288 = vmatprep.subr.bf16.mxu0 0
    %4289 = vmatpush1.bf16.msra.mxu0 0
    %4290 = vmatprep.subr.bf16.mxu0 0
    %4291 = vmatpush1.bf16.msra.mxu0 0
    %4292 = vmatprep.subr.bf16.mxu0 0
    %4293 = vmatpush1.bf16.msra.mxu0 0
    %4294 = vmatprep.subr.bf16.mxu0 0
    %4295 = vmatpush1.bf16.msra.mxu0 0
    %4296 = vmatprep.subr.bf16.mxu0 0
    %4297 = vmatpush1.bf16.msra.mxu0 0
    %4298 = vmatprep.subr.bf16.mxu0 0
    %4299 = vmatpush1.bf16.msra.mxu0 0
    %4300 = vmatprep.mubr.bf16.mxu0 0
    %4301 = vmatmul.mubr.bf16.gmra.mrb[0].mxu0 %v4034
    %v4302 = vpop.f32.mrb[0].mxu0
    %v4303 = vadd.f32 0.0, %v4302
    %v4304 = vpop.f32.mrb[0].mxu0
    %v4305 = vadd.f32 0.0, %v4304
    %v4306 = vpop.f32.mrb[0].mxu0
    %v4307 = vpop.f32.mrb[0].mxu0
    %4308 = vdwg.mxu0
    %v4310 = vlaneseq
    %v4311 = vshrl.u32 %v4310, 7
    %v4312 = vsub.s32 0, %v4311
    %v4313 = vrot.slane %v4033, %v4312
    %v4314 = vlaneseq
    %v4315 = vshrl.u32 %v4314, 7
    %v4316 = vsub.s32 1, %v4315
    %v4317 = vrot.slane %v4033, %v4316
    %v4318 = vlaneseq
    %v4319 = vshrl.u32 %v4318, 7
    %v4320 = vsub.s32 2, %v4319
    %v4321 = vrot.slane %v4033, %v4320
    %v4322 = vlaneseq
    %v4323 = vshrl.u32 %v4322, 7
    %v4324 = vsub.s32 3, %v4323
    %v4325 = vrot.slane %v4033, %v4324
    %v4330 = vadd.f32 %v4313, %v4262
    %v4331 = vadd.f32 %v4317, %v4264
    %v4332 = vadd.f32 %v4321, %v4303
    %v4333 = vadd.f32 %v4325, %v4305
    %v4334 = vpack.c.bf16 %v3616, %v3616
    %v4335 = vld [vmem:[#allocation7] sm:$0xff]
    %v4336 = vld [vmem:[#allocation7 + $0x8] sm:$0xff]
    %v4337 = vld [vmem:[#allocation7 + $0x10] sm:$0xff]
    %v4338 = vld [vmem:[#allocation7 + $0x18] sm:$0xff]
    %v4339 = vld [vmem:[#allocation7 + $0x20] sm:$0xff]
    %v4340 = vld [vmem:[#allocation7 + $0x28] sm:$0xff]
    %v4341 = vld [vmem:[#allocation7 + $0x30] sm:$0xff]
    %v4342 = vld [vmem:[#allocation7 + $0x38] sm:$0xff]
    %v4343 = vld [vmem:[#allocation7 + $0x40] sm:$0xff]
    %v4344 = vld [vmem:[#allocation7 + $0x48] sm:$0xff]
    %v4345 = vld [vmem:[#allocation7 + $0x50] sm:$0xff]
    %v4346 = vld [vmem:[#allocation7 + $0x58] sm:$0xff]
    %v4347 = vld [vmem:[#allocation7 + $0x60] sm:$0xff]
    %v4348 = vld [vmem:[#allocation7 + $0x68] sm:$0xff]
    %v4349 = vld [vmem:[#allocation7 + $0x70] sm:$0xff]
    %v4350 = vld [vmem:[#allocation7 + $0x78] sm:$0xff]
    %v4351 = vld [vmem:[#allocation7 + $0x80] sm:$0xff]
    %v4352 = vld [vmem:[#allocation7 + $0x88] sm:$0xff]
    %v4353 = vld [vmem:[#allocation7 + $0x90] sm:$0xff]
    %v4354 = vld [vmem:[#allocation7 + $0x98] sm:$0xff]
    %v4355 = vld [vmem:[#allocation7 + $0xa0] sm:$0xff]
    %v4356 = vld [vmem:[#allocation7 + $0xa8] sm:$0xff]
    %v4357 = vld [vmem:[#allocation7 + $0xb0] sm:$0xff]
    %v4358 = vld [vmem:[#allocation7 + $0xb8] sm:$0xff]
    %v4359 = vld [vmem:[#allocation7 + $0xc0] sm:$0xff]
    %v4360 = vld [vmem:[#allocation7 + $0xc8] sm:$0xff]
    %v4361 = vld [vmem:[#allocation7 + $0xd0] sm:$0xff]
    %v4362 = vld [vmem:[#allocation7 + $0xd8] sm:$0xff]
    %v4363 = vld [vmem:[#allocation7 + $0xe0] sm:$0xff]
    %v4364 = vld [vmem:[#allocation7 + $0xe8] sm:$0xff]
    %v4365 = vld [vmem:[#allocation7 + $0xf0] sm:$0xff]
    %v4366 = vld [vmem:[#allocation7 + $0xf8] sm:$0xff]
    %v4399 = vunpack.c.l.b16 %v4335
    %v4400 = vunpack.c.h.b16 %v4335
    %v4401 = vunpack.c.l.b16 %v4336
    %v4402 = vunpack.c.h.b16 %v4336
    %v4403 = vunpack.c.l.b16 %v4337
    %v4404 = vunpack.c.h.b16 %v4337
    %v4405 = vunpack.c.l.b16 %v4338
    %v4406 = vunpack.c.h.b16 %v4338
    %v4407 = vunpack.c.l.b16 %v4339
    %v4408 = vunpack.c.h.b16 %v4339
    %v4409 = vunpack.c.l.b16 %v4340
    %v4410 = vunpack.c.h.b16 %v4340
    %v4411 = vunpack.c.l.b16 %v4341
    %v4412 = vunpack.c.h.b16 %v4341
    %v4413 = vunpack.c.l.b16 %v4342
    %v4414 = vunpack.c.h.b16 %v4342
    %v4415 = vunpack.c.l.b16 %v4343
    %v4416 = vunpack.c.h.b16 %v4343
    %v4417 = vunpack.c.l.b16 %v4344
    %v4418 = vunpack.c.h.b16 %v4344
    %v4419 = vunpack.c.l.b16 %v4345
    %v4420 = vunpack.c.h.b16 %v4345
    %v4421 = vunpack.c.l.b16 %v4346
    %v4422 = vunpack.c.h.b16 %v4346
    %v4423 = vunpack.c.l.b16 %v4347
    %v4424 = vunpack.c.h.b16 %v4347
    %v4425 = vunpack.c.l.b16 %v4348
    %v4426 = vunpack.c.h.b16 %v4348
    %v4427 = vunpack.c.l.b16 %v4349
    %v4428 = vunpack.c.h.b16 %v4349
    %v4429 = vunpack.c.l.b16 %v4350
    %v4430 = vunpack.c.h.b16 %v4350
    %v4431 = vunpack.c.l.b16 %v4351
    %v4432 = vunpack.c.h.b16 %v4351
    %v4433 = vunpack.c.l.b16 %v4352
    %v4434 = vunpack.c.h.b16 %v4352
    %v4435 = vunpack.c.l.b16 %v4353
    %v4436 = vunpack.c.h.b16 %v4353
    %v4437 = vunpack.c.l.b16 %v4354
    %v4438 = vunpack.c.h.b16 %v4354
    %v4439 = vunpack.c.l.b16 %v4355
    %v4440 = vunpack.c.h.b16 %v4355
    %v4441 = vunpack.c.l.b16 %v4356
    %v4442 = vunpack.c.h.b16 %v4356
    %v4443 = vunpack.c.l.b16 %v4357
    %v4444 = vunpack.c.h.b16 %v4357
    %v4445 = vunpack.c.l.b16 %v4358
    %v4446 = vunpack.c.h.b16 %v4358
    %v4447 = vunpack.c.l.b16 %v4359
    %v4448 = vunpack.c.h.b16 %v4359
    %v4449 = vunpack.c.l.b16 %v4360
    %v4450 = vunpack.c.h.b16 %v4360
    %v4451 = vunpack.c.l.b16 %v4361
    %v4452 = vunpack.c.h.b16 %v4361
    %v4453 = vunpack.c.l.b16 %v4362
    %v4454 = vunpack.c.h.b16 %v4362
    %v4455 = vunpack.c.l.b16 %v4363
    %v4456 = vunpack.c.h.b16 %v4363
    %v4457 = vunpack.c.l.b16 %v4364
    %v4458 = vunpack.c.h.b16 %v4364
    %v4459 = vunpack.c.l.b16 %v4365
    %v4460 = vunpack.c.h.b16 %v4365
    %v4461 = vunpack.c.l.b16 %v4366
    %v4462 = vunpack.c.h.b16 %v4366
    %v4463 = vpack.c.b16 %v4403, %v4399
    %v4464 = vpack.c.b16 %v4404, %v4400
    %v4465 = vpack.c.b16 %v4405, %v4401
    %v4466 = vpack.c.b16 %v4406, %v4402
    %v4467 = vpack.c.b16 %v4411, %v4407
    %v4468 = vpack.c.b16 %v4412, %v4408
    %v4469 = vpack.c.b16 %v4413, %v4409
    %v4470 = vpack.c.b16 %v4414, %v4410
    %v4471 = vpack.c.b16 %v4419, %v4415
    %v4472 = vpack.c.b16 %v4420, %v4416
    %v4473 = vpack.c.b16 %v4421, %v4417
    %v4474 = vpack.c.b16 %v4422, %v4418
    %v4475 = vpack.c.b16 %v4427, %v4423
    %v4476 = vpack.c.b16 %v4428, %v4424
    %v4477 = vpack.c.b16 %v4429, %v4425
    %v4478 = vpack.c.b16 %v4430, %v4426
    %v4479 = vpack.c.b16 %v4435, %v4431
    %v4480 = vpack.c.b16 %v4436, %v4432
    %v4481 = vpack.c.b16 %v4437, %v4433
    %v4482 = vpack.c.b16 %v4438, %v4434
    %v4483 = vpack.c.b16 %v4443, %v4439
    %v4484 = vpack.c.b16 %v4444, %v4440
    %v4485 = vpack.c.b16 %v4445, %v4441
    %v4486 = vpack.c.b16 %v4446, %v4442
    %v4487 = vpack.c.b16 %v4451, %v4447
    %v4488 = vpack.c.b16 %v4452, %v4448
    %v4489 = vpack.c.b16 %v4453, %v4449
    %v4490 = vpack.c.b16 %v4454, %v4450
    %v4491 = vpack.c.b16 %v4459, %v4455
    %v4492 = vpack.c.b16 %v4460, %v4456
    %v4493 = vpack.c.b16 %v4461, %v4457
    %v4494 = vpack.c.b16 %v4462, %v4458
    %4527 = vmatprep.subr.bf16.mxu0 %v4464
    %4528 = vmatpush1.bf16.msra.mxu0 %v4463
    %4529 = vmatprep.subr.bf16.mxu0 %v4468
    %4530 = vmatpush1.bf16.msra.mxu0 %v4467
    %4531 = vmatprep.subr.bf16.mxu0 %v4472
    %4532 = vmatpush1.bf16.msra.mxu0 %v4471
    %4533 = vmatprep.subr.bf16.mxu0 %v4476
    %4534 = vmatpush1.bf16.msra.mxu0 %v4475
    %4535 = vmatprep.subr.bf16.mxu0 %v4480
    %4536 = vmatpush1.bf16.msra.mxu0 %v4479
    %4537 = vmatprep.subr.bf16.mxu0 %v4484
    %4538 = vmatpush1.bf16.msra.mxu0 %v4483
    %4539 = vmatprep.subr.bf16.mxu0 %v4488
    %4540 = vmatpush1.bf16.msra.mxu0 %v4487
    %4541 = vmatprep.subr.bf16.mxu0 %v4492
    %4542 = vmatpush1.bf16.msra.mxu0 %v4491
    %4543 = vmatprep.subr.bf16.mxu0 0
    %4544 = vmatpush1.bf16.msra.mxu0 0
    %4545 = vmatprep.subr.bf16.mxu0 0
    %4546 = vmatpush1.bf16.msra.mxu0 0
    %4547 = vmatprep.subr.bf16.mxu0 0
    %4548 = vmatpush1.bf16.msra.mxu0 0
    %4549 = vmatprep.subr.bf16.mxu0 0
    %4550 = vmatpush1.bf16.msra.mxu0 0
    %4551 = vmatprep.subr.bf16.mxu0 0
    %4552 = vmatpush1.bf16.msra.mxu0 0
    %4553 = vmatprep.subr.bf16.mxu0 0
    %4554 = vmatpush1.bf16.msra.mxu0 0
    %4555 = vmatprep.subr.bf16.mxu0 0
    %4556 = vmatpush1.bf16.msra.mxu0 0
    %4557 = vmatprep.subr.bf16.mxu0 0
    %4558 = vmatpush1.bf16.msra.mxu0 0
    %4559 = vmatprep.mubr.bf16.mxu0 0
    %4560 = vmatmul.mubr.bf16.gmra.mrb[0].mxu0 %v4334
    %v4561 = vpop.f32.mrb[0].mxu0
    %v4562 = vadd.f32 0.0, %v4561
    %v4563 = vpop.f32.mrb[0].mxu0
    %v4564 = vadd.f32 0.0, %v4563
    %v4565 = vpop.f32.mrb[0].mxu0
    %v4566 = vpop.f32.mrb[0].mxu0
    %4567 = vdwg.mxu0
    %4568 = vmatprep.subr.bf16.mxu0 %v4466
    %4569 = vmatpush1.bf16.msra.mxu0 %v4465
    %4570 = vmatprep.subr.bf16.mxu0 %v4470
    %4571 = vmatpush1.bf16.msra.mxu0 %v4469
    %4572 = vmatprep.subr.bf16.mxu0 %v4474
    %4573 = vmatpush1.bf16.msra.mxu0 %v4473
    %4574 = vmatprep.subr.bf16.mxu0 %v4478
    %4575 = vmatpush1.bf16.msra.mxu0 %v4477
    %4576 = vmatprep.subr.bf16.mxu0 %v4482
    %4577 = vmatpush1.bf16.msra.mxu0 %v4481
    %4578 = vmatprep.subr.bf16.mxu0 %v4486
    %4579 = vmatpush1.bf16.msra.mxu0 %v4485
    %4580 = vmatprep.subr.bf16.mxu0 %v4490
    %4581 = vmatpush1.bf16.msra.mxu0 %v4489
    %4582 = vmatprep.subr.bf16.mxu0 %v4494
    %4583 = vmatpush1.bf16.msra.mxu0 %v4493
    %4584 = vmatprep.subr.bf16.mxu0 0
    %4585 = vmatpush1.bf16.msra.mxu0 0
    %4586 = vmatprep.subr.bf16.mxu0 0
    %4587 = vmatpush1.bf16.msra.mxu0 0
    %4588 = vmatprep.subr.bf16.mxu0 0
    %4589 = vmatpush1.bf16.msra.mxu0 0
    %4590 = vmatprep.subr.bf16.mxu0 0
    %4591 = vmatpush1.bf16.msra.mxu0 0
    %4592 = vmatprep.subr.bf16.mxu0 0
    %4593 = vmatpush1.bf16.msra.mxu0 0
    %4594 = vmatprep.subr.bf16.mxu0 0
    %4595 = vmatpush1.bf16.msra.mxu0 0
    %4596 = vmatprep.subr.bf16.mxu0 0
    %4597 = vmatpush1.bf16.msra.mxu0 0
    %4598 = vmatprep.subr.bf16.mxu0 0
    %4599 = vmatpush1.bf16.msra.mxu0 0
    %4600 = vmatprep.mubr.bf16.mxu0 0
    %4601 = vmatmul.mubr.bf16.gmra.mrb[0].mxu0 %v4334
    %v4602 = vpop.f32.mrb[0].mxu0
    %v4603 = vadd.f32 0.0, %v4602
    %v4604 = vpop.f32.mrb[0].mxu0
    %v4605 = vadd.f32 0.0, %v4604
    %v4606 = vpop.f32.mrb[0].mxu0
    %v4607 = vpop.f32.mrb[0].mxu0
    %4608 = vdwg.mxu0
    %v4609 = vadd.f32 %v4330, %v4562
    %v4610 = vadd.f32 %v4331, %v4564
    %v4611 = vadd.f32 %v4332, %v4603
    %v4612 = vadd.f32 %v4333, %v4605
    %v4613 = vxor.u32 %v4609, 2147483648
    %v4614 = vxor.u32 %v4610, 2147483648
    %v4615 = vxor.u32 %v4611, 2147483648
    %v4616 = vmul.f32 %v4613, 1.442695
    %v4617 = vpow.pop %v4616
    %v4618 = vmul.f32 %v4614, 1.442695
    %v4619 = vpow.pop %v4618
    %v4620 = vmul.f32 %v4615, 1.442695
    %v4621 = vpow.pop %v4620
    %v4622 = vadd.f32 %v4617, 1.0
    %v4623 = vadd.f32 %v4619, 1.0
    %v4624 = vadd.f32 %v4621, 1.0
    %v4625 = vrcp.pop %v4622
    %v4626 = vmul.f32 1.0, %v4625
    %v4627 = vrcp.pop %v4623
    %v4628 = vmul.f32 1.0, %v4627
    %v4629 = vrcp.pop %v4624
    %v4630 = vmul.f32 1.0, %v4629
    %v4631 = vtanh.pop %v4612
    %v4632 = vmul.f32 %v4628, %v3614
    %v4633 = vmul.f32 %v4626, %v4631
    %v4634 = vadd.f32 %v4632, %v4633
    %v4635 = vtanh.pop %v4634
    %v4636 = vmul.f32 %v4630, %v4635
    %v4637 = vmax.f32 %v4636, 0.0
    %v4638 = vpack.c.bf16 %v4637, %v4637
    %v4639 = vld [vmem:[%s7] sm:$0xf]
    %v4640 = vld [vmem:[%s7 + $0x4] sm:$0xf]
    %v4641 = vld [vmem:[%s7 + $0x8] sm:$0xf]
    %v4642 = vld [vmem:[%s7 + $0xc] sm:$0xf]
    %v4643 = vld [vmem:[%s7 + $0x10] sm:$0xf]
    %v4644 = vld [vmem:[%s7 + $0x14] sm:$0xf]
    %v4645 = vld [vmem:[%s7 + $0x18] sm:$0xf]
    %v4646 = vld [vmem:[%s7 + $0x1c] sm:$0xf]
    %v4647 = vld [vmem:[%s7 + $0x20] sm:$0xf]
    %v4648 = vld [vmem:[%s7 + $0x24] sm:$0xf]
    %v4649 = vld [vmem:[%s7 + $0x28] sm:$0xf]
    %v4650 = vld [vmem:[%s7 + $0x2c] sm:$0xf]
    %v4651 = vld [vmem:[%s7 + $0x30] sm:$0xf]
    %v4652 = vld [vmem:[%s7 + $0x34] sm:$0xf]
    %v4653 = vld [vmem:[%s7 + $0x38] sm:$0xf]
    %v4654 = vld [vmem:[%s7 + $0x3c] sm:$0xf]
    %v4655 = vld [vmem:[%s8] sm:$0x1]
    %v4657 = vlaneseq
    %v4658 = vshrl.u32 %v4657, 7
    %v4659 = vsub.s32 0, %v4658
    %v4660 = vrot.slane %v4655, %v4659
    %v4678 = vunpack.c.l.b16 %v4639
    %v4679 = vunpack.c.l.b16 %v4640
    %v4680 = vunpack.c.l.b16 %v4641
    %v4681 = vunpack.c.l.b16 %v4642
    %v4682 = vunpack.c.l.b16 %v4643
    %v4683 = vunpack.c.l.b16 %v4644
    %v4684 = vunpack.c.l.b16 %v4645
    %v4685 = vunpack.c.l.b16 %v4646
    %v4686 = vunpack.c.l.b16 %v4647
    %v4687 = vunpack.c.l.b16 %v4648
    %v4688 = vunpack.c.l.b16 %v4649
    %v4689 = vunpack.c.l.b16 %v4650
    %v4690 = vunpack.c.l.b16 %v4651
    %v4691 = vunpack.c.l.b16 %v4652
    %v4692 = vunpack.c.l.b16 %v4653
    %v4693 = vunpack.c.l.b16 %v4654
    %v4694 = vpack.c.b16 %v4679, %v4678
    %v4695 = vpack.c.b16 %v4681, %v4680
    %v4696 = vpack.c.b16 %v4683, %v4682
    %v4697 = vpack.c.b16 %v4685, %v4684
    %v4698 = vpack.c.b16 %v4687, %v4686
    %v4699 = vpack.c.b16 %v4689, %v4688
    %v4700 = vpack.c.b16 %v4691, %v4690
    %v4701 = vpack.c.b16 %v4693, %v4692
    %4710 = vmatprep.subr.bf16.mxu0 0
    %4711 = vmatpush1.bf16.msra.mxu0 %v4694
    %4712 = vmatprep.subr.bf16.mxu0 0
    %4713 = vmatpush1.bf16.msra.mxu0 %v4695
    %4714 = vmatprep.subr.bf16.mxu0 0
    %4715 = vmatpush1.bf16.msra.mxu0 %v4696
    %4716 = vmatprep.subr.bf16.mxu0 0
    %4717 = vmatpush1.bf16.msra.mxu0 %v4697
    %4718 = vmatprep.subr.bf16.mxu0 0
    %4719 = vmatpush1.bf16.msra.mxu0 %v4698
    %4720 = vmatprep.subr.bf16.mxu0 0
    %4721 = vmatpush1.bf16.msra.mxu0 %v4699
    %4722 = vmatprep.subr.bf16.mxu0 0
    %4723 = vmatpush1.bf16.msra.mxu0 %v4700
    %4724 = vmatprep.subr.bf16.mxu0 0
    %4725 = vmatpush1.bf16.msra.mxu0 %v4701
    %4726 = vmatprep.subr.bf16.mxu0 0
    %4727 = vmatpush1.bf16.msra.mxu0 0
    %4728 = vmatprep.subr.bf16.mxu0 0
    %4729 = vmatpush1.bf16.msra.mxu0 0
    %4730 = vmatprep.subr.bf16.mxu0 0
    %4731 = vmatpush1.bf16.msra.mxu0 0
    %4732 = vmatprep.subr.bf16.mxu0 0
    %4733 = vmatpush1.bf16.msra.mxu0 0
    %4734 = vmatprep.subr.bf16.mxu0 0
    %4735 = vmatpush1.bf16.msra.mxu0 0
    %4736 = vmatprep.subr.bf16.mxu0 0
    %4737 = vmatpush1.bf16.msra.mxu0 0
    %4738 = vmatprep.subr.bf16.mxu0 0
    %4739 = vmatpush1.bf16.msra.mxu0 0
    %4740 = vmatprep.subr.bf16.mxu0 0
    %4741 = vmatpush1.bf16.msra.mxu0 0
    %4742 = vmatprep.mubr.bf16.mxu0 0
    %4743 = vmatmul.mubr.bf16.gmra.mrb[0].mxu0 %v4638
    %v4744 = vpop.f32.mrb[0].mxu0
    %v4745 = vadd.f32 %v4660, %v4744
    %v4746 = vpop.f32.mrb[0].mxu0
    %v4747 = vpop.f32.mrb[0].mxu0
    %v4748 = vpop.f32.mrb[0].mxu0
    %4749 = vdwg.mxu0
    %4750 = vst [vmem:[%s9 + $0x10] sm:$0xff] %v4745
    %v4751 = vld [vmem:[#allocation4] sm:$0xff]
    %v4752 = vld [vmem:[#allocation4 + $0x8] sm:$0xff]
    %v4753 = vld [vmem:[#allocation4 + $0x10] sm:$0xff]
    %v4754 = vld [vmem:[#allocation4 + $0x18] sm:$0xff]
    %v4755 = vld [vmem:[#allocation4 + $0x20] sm:$0xff]
    %v4756 = vld [vmem:[#allocation4 + $0x28] sm:$0xff]
    %v4757 = vld [vmem:[#allocation4 + $0x30] sm:$0xff]
    %v4758 = vld [vmem:[#allocation4 + $0x38] sm:$0xff]
    %v4759 = vld [vmem:[#allocation4 + $0x40] sm:$0xff]
    %v4760 = vld [vmem:[#allocation4 + $0x48] sm:$0xff]
    %v4761 = vld [vmem:[#allocation4 + $0x50] sm:$0xff]
    %v4762 = vld [vmem:[#allocation4 + $0x58] sm:$0xff]
    %v4763 = vld [vmem:[#allocation4 + $0x60] sm:$0xff]
    %v4764 = vld [vmem:[#allocation4 + $0x68] sm:$0xff]
    %v4765 = vld [vmem:[#allocation4 + $0x70] sm:$0xff]
    %v4766 = vld [vmem:[#allocation4 + $0x78] sm:$0xff]
    %v4767 = vld [vmem:[#allocation4 + $0x80] sm:$0xff]
    %v4768 = vld [vmem:[#allocation4 + $0x88] sm:$0xff]
    %v4769 = vld [vmem:[#allocation4 + $0x90] sm:$0xff]
    %v4770 = vld [vmem:[#allocation4 + $0x98] sm:$0xff]
    %v4771 = vld [vmem:[#allocation4 + $0xa0] sm:$0xff]
    %v4772 = vld [vmem:[#allocation4 + $0xa8] sm:$0xff]
    %v4773 = vld [vmem:[#allocation4 + $0xb0] sm:$0xff]
    %v4774 = vld [vmem:[#allocation4 + $0xb8] sm:$0xff]
    %v4775 = vld [vmem:[#allocation4 + $0xc0] sm:$0xff]
    %v4776 = vld [vmem:[#allocation4 + $0xc8] sm:$0xff]
    %v4777 = vld [vmem:[#allocation4 + $0xd0] sm:$0xff]
    %v4778 = vld [vmem:[#allocation4 + $0xd8] sm:$0xff]
    %v4779 = vld [vmem:[#allocation4 + $0xe0] sm:$0xff]
    %v4780 = vld [vmem:[#allocation4 + $0xe8] sm:$0xff]
    %v4781 = vld [vmem:[#allocation4 + $0xf0] sm:$0xff]
    %v4782 = vld [vmem:[#allocation4 + $0xf8] sm:$0xff]
    %v4815 = vunpack.c.l.b16 %v4751
    %v4816 = vunpack.c.h.b16 %v4751
    %v4817 = vunpack.c.l.b16 %v4752
    %v4818 = vunpack.c.h.b16 %v4752
    %v4819 = vunpack.c.l.b16 %v4753
    %v4820 = vunpack.c.h.b16 %v4753
    %v4821 = vunpack.c.l.b16 %v4754
    %v4822 = vunpack.c.h.b16 %v4754
    %v4823 = vunpack.c.l.b16 %v4755
    %v4824 = vunpack.c.h.b16 %v4755
    %v4825 = vunpack.c.l.b16 %v4756
    %v4826 = vunpack.c.h.b16 %v4756
    %v4827 = vunpack.c.l.b16 %v4757
    %v4828 = vunpack.c.h.b16 %v4757
    %v4829 = vunpack.c.l.b16 %v4758
    %v4830 = vunpack.c.h.b16 %v4758
    %v4831 = vunpack.c.l.b16 %v4759
    %v4832 = vunpack.c.h.b16 %v4759
    %v4833 = vunpack.c.l.b16 %v4760
    %v4834 = vunpack.c.h.b16 %v4760
    %v4835 = vunpack.c.l.b16 %v4761
    %v4836 = vunpack.c.h.b16 %v4761
    %v4837 = vunpack.c.l.b16 %v4762
    %v4838 = vunpack.c.h.b16 %v4762
    %v4839 = vunpack.c.l.b16 %v4763
    %v4840 = vunpack.c.h.b16 %v4763
    %v4841 = vunpack.c.l.b16 %v4764
    %v4842 = vunpack.c.h.b16 %v4764
    %v4843 = vunpack.c.l.b16 %v4765
    %v4844 = vunpack.c.h.b16 %v4765
    %v4845 = vunpack.c.l.b16 %v4766
    %v4846 = vunpack.c.h.b16 %v4766
    %v4847 = vunpack.c.l.b16 %v4767
    %v4848 = vunpack.c.h.b16 %v4767
    %v4849 = vunpack.c.l.b16 %v4768
    %v4850 = vunpack.c.h.b16 %v4768
    %v4851 = vunpack.c.l.b16 %v4769
    %v4852 = vunpack.c.h.b16 %v4769
    %v4853 = vunpack.c.l.b16 %v4770
    %v4854 = vunpack.c.h.b16 %v4770
    %v4855 = vunpack.c.l.b16 %v4771
    %v4856 = vunpack.c.h.b16 %v4771
    %v4857 = vunpack.c.l.b16 %v4772
    %v4858 = vunpack.c.h.b16 %v4772
    %v4859 = vunpack.c.l.b16 %v4773
    %v4860 = vunpack.c.h.b16 %v4773
    %v4861 = vunpack.c.l.b16 %v4774
    %v4862 = vunpack.c.h.b16 %v4774
    %v4863 = vunpack.c.l.b16 %v4775
    %v4864 = vunpack.c.h.b16 %v4775
    %v4865 = vunpack.c.l.b16 %v4776
    %v4866 = vunpack.c.h.b16 %v4776
    %v4867 = vunpack.c.l.b16 %v4777
    %v4868 = vunpack.c.h.b16 %v4777
    %v4869 = vunpack.c.l.b16 %v4778
    %v4870 = vunpack.c.h.b16 %v4778
    %v4871 = vunpack.c.l.b16 %v4779
    %v4872 = vunpack.c.h.b16 %v4779
    %v4873 = vunpack.c.l.b16 %v4780
    %v4874 = vunpack.c.h.b16 %v4780
    %v4875 = vunpack.c.l.b16 %v4781
    %v4876 = vunpack.c.h.b16 %v4781
    %v4877 = vunpack.c.l.b16 %v4782
    %v4878 = vunpack.c.h.b16 %v4782
    %v4879 = vpack.c.b16 %v4819, %v4815
    %v4880 = vpack.c.b16 %v4820, %v4816
    %v4881 = vpack.c.b16 %v4821, %v4817
    %v4882 = vpack.c.b16 %v4822, %v4818
    %v4883 = vpack.c.b16 %v4827, %v4823
    %v4884 = vpack.c.b16 %v4828, %v4824
    %v4885 = vpack.c.b16 %v4829, %v4825
    %v4886 = vpack.c.b16 %v4830, %v4826
    %v4887 = vpack.c.b16 %v4835, %v4831
    %v4888 = vpack.c.b16 %v4836, %v4832
    %v4889 = vpack.c.b16 %v4837, %v4833
    %v4890 = vpack.c.b16 %v4838, %v4834
    %v4891 = vpack.c.b16 %v4843, %v4839
    %v4892 = vpack.c.b16 %v4844, %v4840
    %v4893 = vpack.c.b16 %v4845, %v4841
    %v4894 = vpack.c.b16 %v4846, %v4842
    %v4895 = vpack.c.b16 %v4851, %v4847
    %v4896 = vpack.c.b16 %v4852, %v4848
    %v4897 = vpack.c.b16 %v4853, %v4849
    %v4898 = vpack.c.b16 %v4854, %v4850
    %v4899 = vpack.c.b16 %v4859, %v4855
    %v4900 = vpack.c.b16 %v4860, %v4856
    %v4901 = vpack.c.b16 %v4861, %v4857
    %v4902 = vpack.c.b16 %v4862, %v4858
    %v4903 = vpack.c.b16 %v4867, %v4863
    %v4904 = vpack.c.b16 %v4868, %v4864
    %v4905 = vpack.c.b16 %v4869, %v4865
    %v4906 = vpack.c.b16 %v4870, %v4866
    %v4907 = vpack.c.b16 %v4875, %v4871
    %v4908 = vpack.c.b16 %v4876, %v4872
    %v4909 = vpack.c.b16 %v4877, %v4873
    %v4910 = vpack.c.b16 %v4878, %v4874
    %4943 = vmatprep.subr.bf16.mxu0 %v4880
    %4944 = vmatpush1.bf16.msra.mxu0 %v4879
    %4945 = vmatprep.subr.bf16.mxu0 %v4884
    %4946 = vmatpush1.bf16.msra.mxu0 %v4883
    %4947 = vmatprep.subr.bf16.mxu0 %v4888
    %4948 = vmatpush1.bf16.msra.mxu0 %v4887
    %4949 = vmatprep.subr.bf16.mxu0 %v4892
    %4950 = vmatpush1.bf16.msra.mxu0 %v4891
    %4951 = vmatprep.subr.bf16.mxu0 %v4896
    %4952 = vmatpush1.bf16.msra.mxu0 %v4895
    %4953 = vmatprep.subr.bf16.mxu0 %v4900
    %4954 = vmatpush1.bf16.msra.mxu0 %v4899
    %4955 = vmatprep.subr.bf16.mxu0 %v4904
    %4956 = vmatpush1.bf16.msra.mxu0 %v4903
    %4957 = vmatprep.subr.bf16.mxu0 %v4908
    %4958 = vmatpush1.bf16.msra.mxu0 %v4907
    %4959 = vmatprep.subr.bf16.mxu0 0
    %4960 = vmatpush1.bf16.msra.mxu0 0
    %4961 = vmatprep.subr.bf16.mxu0 0
    %4962 = vmatpush1.bf16.msra.mxu0 0
    %4963 = vmatprep.subr.bf16.mxu0 0
    %4964 = vmatpush1.bf16.msra.mxu0 0
    %4965 = vmatprep.subr.bf16.mxu0 0
    %4966 = vmatpush1.bf16.msra.mxu0 0
    %4967 = vmatprep.subr.bf16.mxu0 0
    %4968 = vmatpush1.bf16.msra.mxu0 0
    %4969 = vmatprep.subr.bf16.mxu0 0
    %4970 = vmatpush1.bf16.msra.mxu0 0
    %4971 = vmatprep.subr.bf16.mxu0 0
    %4972 = vmatpush1.bf16.msra.mxu0 0
    %4973 = vmatprep.subr.bf16.mxu0 0
    %4974 = vmatpush1.bf16.msra.mxu0 0
    %4975 = vmatprep.mubr.bf16.mxu0 0
    %4976 = vmatmul.mubr.bf16.gmra.mrb[0].mxu0 %v4034
    %v4977 = vpop.f32.mrb[0].mxu0
    %v4978 = vadd.f32 0.0, %v4977
    %v4979 = vpop.f32.mrb[0].mxu0
    %v4980 = vadd.f32 0.0, %v4979
    %v4981 = vpop.f32.mrb[0].mxu0
    %v4982 = vpop.f32.mrb[0].mxu0
    %4983 = vdwg.mxu0
    %4984 = vmatprep.subr.bf16.mxu0 %v4882
    %4985 = vmatpush1.bf16.msra.mxu0 %v4881
    %4986 = vmatprep.subr.bf16.mxu0 %v4886
    %4987 = vmatpush1.bf16.msra.mxu0 %v4885
    %4988 = vmatprep.subr.bf16.mxu0 %v4890
    %4989 = vmatpush1.bf16.msra.mxu0 %v4889
    %4990 = vmatprep.subr.bf16.mxu0 %v4894
    %4991 = vmatpush1.bf16.msra.mxu0 %v4893
    %4992 = vmatprep.subr.bf16.mxu0 %v4898
    %4993 = vmatpush1.bf16.msra.mxu0 %v4897
    %4994 = vmatprep.subr.bf16.mxu0 %v4902
    %4995 = vmatpush1.bf16.msra.mxu0 %v4901
    %4996 = vmatprep.subr.bf16.mxu0 %v4906
    %4997 = vmatpush1.bf16.msra.mxu0 %v4905
    %4998 = vmatprep.subr.bf16.mxu0 %v4910
    %4999 = vmatpush1.bf16.msra.mxu0 %v4909
    %5000 = vmatprep.subr.bf16.mxu0 0
    %5001 = vmatpush1.bf16.msra.mxu0 0
    %5002 = vmatprep.subr.bf16.mxu0 0
    %5003 = vmatpush1.bf16.msra.mxu0 0
    %5004 = vmatprep.subr.bf16.mxu0 0
    %5005 = vmatpush1.bf16.msra.mxu0 0
    %5006 = vmatprep.subr.bf16.mxu0 0
    %5007 = vmatpush1.bf16.msra.mxu0 0
    %5008 = vmatprep.subr.bf16.mxu0 0
    %5009 = vmatpush1.bf16.msra.mxu0 0
    %5010 = vmatprep.subr.bf16.mxu0 0
    %5011 = vmatpush1.bf16.msra.mxu0 0
    %5012 = vmatprep.subr.bf16.mxu0 0
    %5013 = vmatpush1.bf16.msra.mxu0 0
    %5014 = vmatprep.subr.bf16.mxu0 0
    %5015 = vmatpush1.bf16.msra.mxu0 0
    %5016 = vmatprep.mubr.bf16.mxu0 0
    %5017 = vmatmul.mubr.bf16.gmra.mrb[0].mxu0 %v4034
    %v5018 = vpop.f32.mrb[0].mxu0
    %v5019 = vadd.f32 0.0, %v5018
    %v5020 = vpop.f32.mrb[0].mxu0
    %v5021 = vadd.f32 0.0, %v5020
    %v5022 = vpop.f32.mrb[0].mxu0
    %v5023 = vpop.f32.mrb[0].mxu0
    %5024 = vdwg.mxu0
    %v5025 = vadd.f32 %v383, %v4978
    %v5026 = vadd.f32 %v385, %v4980
    %v5027 = vadd.f32 %v456, %v5019
    %v5028 = vadd.f32 %v458, %v5021
    %v5029 = vxor.u32 %v5025, 2147483648
    %v5030 = vxor.u32 %v5026, 2147483648
    %v5031 = vxor.u32 %v5027, 2147483648
    %v5032 = vmul.f32 %v5029, 1.442695
    %v5033 = vpow.pop %v5032
    %v5034 = vmul.f32 %v5030, 1.442695
    %v5035 = vpow.pop %v5034
    %v5036 = vmul.f32 %v5031, 1.442695
    %v5037 = vpow.pop %v5036
    %v5038 = vadd.f32 %v5033, 1.0
    %v5039 = vadd.f32 %v5035, 1.0
    %v5040 = vadd.f32 %v5037, 1.0
    %v5041 = vrcp.pop %v5038
    %v5042 = vmul.f32 1.0, %v5041
    %v5043 = vrcp.pop %v5039
    %v5044 = vmul.f32 1.0, %v5043
    %v5045 = vrcp.pop %v5040
    %v5046 = vmul.f32 1.0, %v5045
    %v5047 = vtanh.pop %v5028
    %v5048 = vmul.f32 %v5044, %v4030
    %v5049 = vmul.f32 %v5042, %v5047
    %v5050 = vadd.f32 %v5048, %v5049
    %v5051 = vtanh.pop %v5050
    %v5052 = vmul.f32 %v5046, %v5051
    %v5053 = vld [vmem:[%s6] sm:$0xf]
    %v5054 = vpack.c.bf16 %v5052, %v5052
    %v5055 = vld [vmem:[#allocation6] sm:$0xff]
    %v5056 = vld [vmem:[#allocation6 + $0x8] sm:$0xff]
    %v5057 = vld [vmem:[#allocation6 + $0x10] sm:$0xff]
    %v5058 = vld [vmem:[#allocation6 + $0x18] sm:$0xff]
    %v5059 = vld [vmem:[#allocation6 + $0x20] sm:$0xff]
    %v5060 = vld [vmem:[#allocation6 + $0x28] sm:$0xff]
    %v5061 = vld [vmem:[#allocation6 + $0x30] sm:$0xff]
    %v5062 = vld [vmem:[#allocation6 + $0x38] sm:$0xff]
    %v5063 = vld [vmem:[#allocation6 + $0x40] sm:$0xff]
    %v5064 = vld [vmem:[#allocation6 + $0x48] sm:$0xff]
    %v5065 = vld [vmem:[#allocation6 + $0x50] sm:$0xff]
    %v5066 = vld [vmem:[#allocation6 + $0x58] sm:$0xff]
    %v5067 = vld [vmem:[#allocation6 + $0x60] sm:$0xff]
    %v5068 = vld [vmem:[#allocation6 + $0x68] sm:$0xff]
    %v5069 = vld [vmem:[#allocation6 + $0x70] sm:$0xff]
    %v5070 = vld [vmem:[#allocation6 + $0x78] sm:$0xff]
    %v5071 = vld [vmem:[#allocation6 + $0x80] sm:$0xff]
    %v5072 = vld [vmem:[#allocation6 + $0x88] sm:$0xff]
    %v5073 = vld [vmem:[#allocation6 + $0x90] sm:$0xff]
    %v5074 = vld [vmem:[#allocation6 + $0x98] sm:$0xff]
    %v5075 = vld [vmem:[#allocation6 + $0xa0] sm:$0xff]
    %v5076 = vld [vmem:[#allocation6 + $0xa8] sm:$0xff]
    %v5077 = vld [vmem:[#allocation6 + $0xb0] sm:$0xff]
    %v5078 = vld [vmem:[#allocation6 + $0xb8] sm:$0xff]
    %v5079 = vld [vmem:[#allocation6 + $0xc0] sm:$0xff]
    %v5080 = vld [vmem:[#allocation6 + $0xc8] sm:$0xff]
    %v5081 = vld [vmem:[#allocation6 + $0xd0] sm:$0xff]
    %v5082 = vld [vmem:[#allocation6 + $0xd8] sm:$0xff]
    %v5083 = vld [vmem:[#allocation6 + $0xe0] sm:$0xff]
    %v5084 = vld [vmem:[#allocation6 + $0xe8] sm:$0xff]
    %v5085 = vld [vmem:[#allocation6 + $0xf0] sm:$0xff]
    %v5086 = vld [vmem:[#allocation6 + $0xf8] sm:$0xff]
    %v5119 = vunpack.c.l.b16 %v5055
    %v5120 = vunpack.c.h.b16 %v5055
    %v5121 = vunpack.c.l.b16 %v5056
    %v5122 = vunpack.c.h.b16 %v5056
    %v5123 = vunpack.c.l.b16 %v5057
    %v5124 = vunpack.c.h.b16 %v5057
    %v5125 = vunpack.c.l.b16 %v5058
    %v5126 = vunpack.c.h.b16 %v5058
    %v5127 = vunpack.c.l.b16 %v5059
    %v5128 = vunpack.c.h.b16 %v5059
    %v5129 = vunpack.c.l.b16 %v5060
    %v5130 = vunpack.c.h.b16 %v5060
    %v5131 = vunpack.c.l.b16 %v5061
    %v5132 = vunpack.c.h.b16 %v5061
    %v5133 = vunpack.c.l.b16 %v5062
    %v5134 = vunpack.c.h.b16 %v5062
    %v5135 = vunpack.c.l.b16 %v5063
    %v5136 = vunpack.c.h.b16 %v5063
    %v5137 = vunpack.c.l.b16 %v5064
    %v5138 = vunpack.c.h.b16 %v5064
    %v5139 = vunpack.c.l.b16 %v5065
    %v5140 = vunpack.c.h.b16 %v5065
    %v5141 = vunpack.c.l.b16 %v5066
    %v5142 = vunpack.c.h.b16 %v5066
    %v5143 = vunpack.c.l.b16 %v5067
    %v5144 = vunpack.c.h.b16 %v5067
    %v5145 = vunpack.c.l.b16 %v5068
    %v5146 = vunpack.c.h.b16 %v5068
    %v5147 = vunpack.c.l.b16 %v5069
    %v5148 = vunpack.c.h.b16 %v5069
    %v5149 = vunpack.c.l.b16 %v5070
    %v5150 = vunpack.c.h.b16 %v5070
    %v5151 = vunpack.c.l.b16 %v5071
    %v5152 = vunpack.c.h.b16 %v5071
    %v5153 = vunpack.c.l.b16 %v5072
    %v5154 = vunpack.c.h.b16 %v5072
    %v5155 = vunpack.c.l.b16 %v5073
    %v5156 = vunpack.c.h.b16 %v5073
    %v5157 = vunpack.c.l.b16 %v5074
    %v5158 = vunpack.c.h.b16 %v5074
    %v5159 = vunpack.c.l.b16 %v5075
    %v5160 = vunpack.c.h.b16 %v5075
    %v5161 = vunpack.c.l.b16 %v5076
    %v5162 = vunpack.c.h.b16 %v5076
    %v5163 = vunpack.c.l.b16 %v5077
    %v5164 = vunpack.c.h.b16 %v5077
    %v5165 = vunpack.c.l.b16 %v5078
    %v5166 = vunpack.c.h.b16 %v5078
    %v5167 = vunpack.c.l.b16 %v5079
    %v5168 = vunpack.c.h.b16 %v5079
    %v5169 = vunpack.c.l.b16 %v5080
    %v5170 = vunpack.c.h.b16 %v5080
    %v5171 = vunpack.c.l.b16 %v5081
    %v5172 = vunpack.c.h.b16 %v5081
    %v5173 = vunpack.c.l.b16 %v5082
    %v5174 = vunpack.c.h.b16 %v5082
    %v5175 = vunpack.c.l.b16 %v5083
    %v5176 = vunpack.c.h.b16 %v5083
    %v5177 = vunpack.c.l.b16 %v5084
    %v5178 = vunpack.c.h.b16 %v5084
    %v5179 = vunpack.c.l.b16 %v5085
    %v5180 = vunpack.c.h.b16 %v5085
    %v5181 = vunpack.c.l.b16 %v5086
    %v5182 = vunpack.c.h.b16 %v5086
    %v5183 = vpack.c.b16 %v5123, %v5119
    %v5184 = vpack.c.b16 %v5124, %v5120
    %v5185 = vpack.c.b16 %v5125, %v5121
    %v5186 = vpack.c.b16 %v5126, %v5122
    %v5187 = vpack.c.b16 %v5131, %v5127
    %v5188 = vpack.c.b16 %v5132, %v5128
    %v5189 = vpack.c.b16 %v5133, %v5129
    %v5190 = vpack.c.b16 %v5134, %v5130
    %v5191 = vpack.c.b16 %v5139, %v5135
    %v5192 = vpack.c.b16 %v5140, %v5136
    %v5193 = vpack.c.b16 %v5141, %v5137
    %v5194 = vpack.c.b16 %v5142, %v5138
    %v5195 = vpack.c.b16 %v5147, %v5143
    %v5196 = vpack.c.b16 %v5148, %v5144
    %v5197 = vpack.c.b16 %v5149, %v5145
    %v5198 = vpack.c.b16 %v5150, %v5146
    %v5199 = vpack.c.b16 %v5155, %v5151
    %v5200 = vpack.c.b16 %v5156, %v5152
    %v5201 = vpack.c.b16 %v5157, %v5153
    %v5202 = vpack.c.b16 %v5158, %v5154
    %v5203 = vpack.c.b16 %v5163, %v5159
    %v5204 = vpack.c.b16 %v5164, %v5160
    %v5205 = vpack.c.b16 %v5165, %v5161
    %v5206 = vpack.c.b16 %v5166, %v5162
    %v5207 = vpack.c.b16 %v5171, %v5167
    %v5208 = vpack.c.b16 %v5172, %v5168
    %v5209 = vpack.c.b16 %v5173, %v5169
    %v5210 = vpack.c.b16 %v5174, %v5170
    %v5211 = vpack.c.b16 %v5179, %v5175
    %v5212 = vpack.c.b16 %v5180, %v5176
    %v5213 = vpack.c.b16 %v5181, %v5177
    %v5214 = vpack.c.b16 %v5182, %v5178
    %5247 = vmatprep.subr.bf16.mxu0 %v5184
    %5248 = vmatpush1.bf16.msra.mxu0 %v5183
    %5249 = vmatprep.subr.bf16.mxu0 %v5188
    %5250 = vmatpush1.bf16.msra.mxu0 %v5187
    %5251 = vmatprep.subr.bf16.mxu0 %v5192
    %5252 = vmatpush1.bf16.msra.mxu0 %v5191
    %5253 = vmatprep.subr.bf16.mxu0 %v5196
    %5254 = vmatpush1.bf16.msra.mxu0 %v5195
    %5255 = vmatprep.subr.bf16.mxu0 %v5200
    %5256 = vmatpush1.bf16.msra.mxu0 %v5199
    %5257 = vmatprep.subr.bf16.mxu0 %v5204
    %5258 = vmatpush1.bf16.msra.mxu0 %v5203
    %5259 = vmatprep.subr.bf16.mxu0 %v5208
    %5260 = vmatpush1.bf16.msra.mxu0 %v5207
    %5261 = vmatprep.subr.bf16.mxu0 %v5212
    %5262 = vmatpush1.bf16.msra.mxu0 %v5211
    %5263 = vmatprep.subr.bf16.mxu0 0
    %5264 = vmatpush1.bf16.msra.mxu0 0
    %5265 = vmatprep.subr.bf16.mxu0 0
    %5266 = vmatpush1.bf16.msra.mxu0 0
    %5267 = vmatprep.subr.bf16.mxu0 0
    %5268 = vmatpush1.bf16.msra.mxu0 0
    %5269 = vmatprep.subr.bf16.mxu0 0
    %5270 = vmatpush1.bf16.msra.mxu0 0
    %5271 = vmatprep.subr.bf16.mxu0 0
    %5272 = vmatpush1.bf16.msra.mxu0 0
    %5273 = vmatprep.subr.bf16.mxu0 0
    %5274 = vmatpush1.bf16.msra.mxu0 0
    %5275 = vmatprep.subr.bf16.mxu0 0
    %5276 = vmatpush1.bf16.msra.mxu0 0
    %5277 = vmatprep.subr.bf16.mxu0 0
    %5278 = vmatpush1.bf16.msra.mxu0 0
    %5279 = vmatprep.mubr.bf16.mxu0 0
    %5280 = vmatmul.mubr.bf16.gmra.mrb[0].mxu0 %v5054
    %v5281 = vpop.f32.mrb[0].mxu0
    %v5282 = vadd.f32 0.0, %v5281
    %v5283 = vpop.f32.mrb[0].mxu0
    %v5284 = vadd.f32 0.0, %v5283
    %v5285 = vpop.f32.mrb[0].mxu0
    %v5286 = vpop.f32.mrb[0].mxu0
    %5287 = vdwg.mxu0
    %5288 = vmatprep.subr.bf16.mxu0 %v5186
    %5289 = vmatpush1.bf16.msra.mxu0 %v5185
    %5290 = vmatprep.subr.bf16.mxu0 %v5190
    %5291 = vmatpush1.bf16.msra.mxu0 %v5189
    %5292 = vmatprep.subr.bf16.mxu0 %v5194
    %5293 = vmatpush1.bf16.msra.mxu0 %v5193
    %5294 = vmatprep.subr.bf16.mxu0 %v5198
    %5295 = vmatpush1.bf16.msra.mxu0 %v5197
    %5296 = vmatprep.subr.bf16.mxu0 %v5202
    %5297 = vmatpush1.bf16.msra.mxu0 %v5201
    %5298 = vmatprep.subr.bf16.mxu0 %v5206
    %5299 = vmatpush1.bf16.msra.mxu0 %v5205
    %5300 = vmatprep.subr.bf16.mxu0 %v5210
    %5301 = vmatpush1.bf16.msra.mxu0 %v5209
    %5302 = vmatprep.subr.bf16.mxu0 %v5214
    %5303 = vmatpush1.bf16.msra.mxu0 %v5213
    %5304 = vmatprep.subr.bf16.mxu0 0
    %5305 = vmatpush1.bf16.msra.mxu0 0
    %5306 = vmatprep.subr.bf16.mxu0 0
    %5307 = vmatpush1.bf16.msra.mxu0 0
    %5308 = vmatprep.subr.bf16.mxu0 0
    %5309 = vmatpush1.bf16.msra.mxu0 0
    %5310 = vmatprep.subr.bf16.mxu0 0
    %5311 = vmatpush1.bf16.msra.mxu0 0
    %5312 = vmatprep.subr.bf16.mxu0 0
    %5313 = vmatpush1.bf16.msra.mxu0 0
    %5314 = vmatprep.subr.bf16.mxu0 0
    %5315 = vmatpush1.bf16.msra.mxu0 0
    %5316 = vmatprep.subr.bf16.mxu0 0
    %5317 = vmatpush1.bf16.msra.mxu0 0
    %5318 = vmatprep.subr.bf16.mxu0 0
    %5319 = vmatpush1.bf16.msra.mxu0 0
    %5320 = vmatprep.mubr.bf16.mxu0 0
    %5321 = vmatmul.mubr.bf16.gmra.mrb[0].mxu0 %v5054
    %v5322 = vpop.f32.mrb[0].mxu0
    %v5323 = vadd.f32 0.0, %v5322
    %v5324 = vpop.f32.mrb[0].mxu0
    %v5325 = vadd.f32 0.0, %v5324
    %v5326 = vpop.f32.mrb[0].mxu0
    %v5327 = vpop.f32.mrb[0].mxu0
    %5328 = vdwg.mxu0
    %v5330 = vlaneseq
    %v5331 = vshrl.u32 %v5330, 7
    %v5332 = vsub.s32 0, %v5331
    %v5333 = vrot.slane %v5053, %v5332
    %v5334 = vlaneseq
    %v5335 = vshrl.u32 %v5334, 7
    %v5336 = vsub.s32 1, %v5335
    %v5337 = vrot.slane %v5053, %v5336
    %v5338 = vlaneseq
    %v5339 = vshrl.u32 %v5338, 7
    %v5340 = vsub.s32 2, %v5339
    %v5341 = vrot.slane %v5053, %v5340
    %v5342 = vlaneseq
    %v5343 = vshrl.u32 %v5342, 7
    %v5344 = vsub.s32 3, %v5343
    %v5345 = vrot.slane %v5053, %v5344
    %v5350 = vadd.f32 %v5333, %v5282
    %v5351 = vadd.f32 %v5337, %v5284
    %v5352 = vadd.f32 %v5341, %v5323
    %v5353 = vadd.f32 %v5345, %v5325
    %v5354 = vpack.c.bf16 %v4636, %v4636
    %v5355 = vld [vmem:[#allocation7] sm:$0xff]
    %v5356 = vld [vmem:[#allocation7 + $0x8] sm:$0xff]
    %v5357 = vld [vmem:[#allocation7 + $0x10] sm:$0xff]
    %v5358 = vld [vmem:[#allocation7 + $0x18] sm:$0xff]
    %v5359 = vld [vmem:[#allocation7 + $0x20] sm:$0xff]
    %v5360 = vld [vmem:[#allocation7 + $0x28] sm:$0xff]
    %v5361 = vld [vmem:[#allocation7 + $0x30] sm:$0xff]
    %v5362 = vld [vmem:[#allocation7 + $0x38] sm:$0xff]
    %v5363 = vld [vmem:[#allocation7 + $0x40] sm:$0xff]
    %v5364 = vld [vmem:[#allocation7 + $0x48] sm:$0xff]
    %v5365 = vld [vmem:[#allocation7 + $0x50] sm:$0xff]
    %v5366 = vld [vmem:[#allocation7 + $0x58] sm:$0xff]
    %v5367 = vld [vmem:[#allocation7 + $0x60] sm:$0xff]
    %v5368 = vld [vmem:[#allocation7 + $0x68] sm:$0xff]
    %v5369 = vld [vmem:[#allocation7 + $0x70] sm:$0xff]
    %v5370 = vld [vmem:[#allocation7 + $0x78] sm:$0xff]
    %v5371 = vld [vmem:[#allocation7 + $0x80] sm:$0xff]
    %v5372 = vld [vmem:[#allocation7 + $0x88] sm:$0xff]
    %v5373 = vld [vmem:[#allocation7 + $0x90] sm:$0xff]
    %v5374 = vld [vmem:[#allocation7 + $0x98] sm:$0xff]
    %v5375 = vld [vmem:[#allocation7 + $0xa0] sm:$0xff]
    %v5376 = vld [vmem:[#allocation7 + $0xa8] sm:$0xff]
    %v5377 = vld [vmem:[#allocation7 + $0xb0] sm:$0xff]
    %v5378 = vld [vmem:[#allocation7 + $0xb8] sm:$0xff]
    %v5379 = vld [vmem:[#allocation7 + $0xc0] sm:$0xff]
    %v5380 = vld [vmem:[#allocation7 + $0xc8] sm:$0xff]
    %v5381 = vld [vmem:[#allocation7 + $0xd0] sm:$0xff]
    %v5382 = vld [vmem:[#allocation7 + $0xd8] sm:$0xff]
    %v5383 = vld [vmem:[#allocation7 + $0xe0] sm:$0xff]
    %v5384 = vld [vmem:[#allocation7 + $0xe8] sm:$0xff]
    %v5385 = vld [vmem:[#allocation7 + $0xf0] sm:$0xff]
    %v5386 = vld [vmem:[#allocation7 + $0xf8] sm:$0xff]
    %v5419 = vunpack.c.l.b16 %v5355
    %v5420 = vunpack.c.h.b16 %v5355
    %v5421 = vunpack.c.l.b16 %v5356
    %v5422 = vunpack.c.h.b16 %v5356
    %v5423 = vunpack.c.l.b16 %v5357
    %v5424 = vunpack.c.h.b16 %v5357
    %v5425 = vunpack.c.l.b16 %v5358
    %v5426 = vunpack.c.h.b16 %v5358
    %v5427 = vunpack.c.l.b16 %v5359
    %v5428 = vunpack.c.h.b16 %v5359
    %v5429 = vunpack.c.l.b16 %v5360
    %v5430 = vunpack.c.h.b16 %v5360
    %v5431 = vunpack.c.l.b16 %v5361
    %v5432 = vunpack.c.h.b16 %v5361
    %v5433 = vunpack.c.l.b16 %v5362
    %v5434 = vunpack.c.h.b16 %v5362
    %v5435 = vunpack.c.l.b16 %v5363
    %v5436 = vunpack.c.h.b16 %v5363
    %v5437 = vunpack.c.l.b16 %v5364
    %v5438 = vunpack.c.h.b16 %v5364
    %v5439 = vunpack.c.l.b16 %v5365
    %v5440 = vunpack.c.h.b16 %v5365
    %v5441 = vunpack.c.l.b16 %v5366
    %v5442 = vunpack.c.h.b16 %v5366
    %v5443 = vunpack.c.l.b16 %v5367
    %v5444 = vunpack.c.h.b16 %v5367
    %v5445 = vunpack.c.l.b16 %v5368
    %v5446 = vunpack.c.h.b16 %v5368
    %v5447 = vunpack.c.l.b16 %v5369
    %v5448 = vunpack.c.h.b16 %v5369
    %v5449 = vunpack.c.l.b16 %v5370
    %v5450 = vunpack.c.h.b16 %v5370
    %v5451 = vunpack.c.l.b16 %v5371
    %v5452 = vunpack.c.h.b16 %v5371
    %v5453 = vunpack.c.l.b16 %v5372
    %v5454 = vunpack.c.h.b16 %v5372
    %v5455 = vunpack.c.l.b16 %v5373
    %v5456 = vunpack.c.h.b16 %v5373
    %v5457 = vunpack.c.l.b16 %v5374
    %v5458 = vunpack.c.h.b16 %v5374
    %v5459 = vunpack.c.l.b16 %v5375
    %v5460 = vunpack.c.h.b16 %v5375
    %v5461 = vunpack.c.l.b16 %v5376
    %v5462 = vunpack.c.h.b16 %v5376
    %v5463 = vunpack.c.l.b16 %v5377
    %v5464 = vunpack.c.h.b16 %v5377
    %v5465 = vunpack.c.l.b16 %v5378
    %v5466 = vunpack.c.h.b16 %v5378
    %v5467 = vunpack.c.l.b16 %v5379
    %v5468 = vunpack.c.h.b16 %v5379
    %v5469 = vunpack.c.l.b16 %v5380
    %v5470 = vunpack.c.h.b16 %v5380
    %v5471 = vunpack.c.l.b16 %v5381
    %v5472 = vunpack.c.h.b16 %v5381
    %v5473 = vunpack.c.l.b16 %v5382
    %v5474 = vunpack.c.h.b16 %v5382
    %v5475 = vunpack.c.l.b16 %v5383
    %v5476 = vunpack.c.h.b16 %v5383
    %v5477 = vunpack.c.l.b16 %v5384
    %v5478 = vunpack.c.h.b16 %v5384
    %v5479 = vunpack.c.l.b16 %v5385
    %v5480 = vunpack.c.h.b16 %v5385
    %v5481 = vunpack.c.l.b16 %v5386
    %v5482 = vunpack.c.h.b16 %v5386
    %v5483 = vpack.c.b16 %v5423, %v5419
    %v5484 = vpack.c.b16 %v5424, %v5420
    %v5485 = vpack.c.b16 %v5425, %v5421
    %v5486 = vpack.c.b16 %v5426, %v5422
    %v5487 = vpack.c.b16 %v5431, %v5427
    %v5488 = vpack.c.b16 %v5432, %v5428
    %v5489 = vpack.c.b16 %v5433, %v5429
    %v5490 = vpack.c.b16 %v5434, %v5430
    %v5491 = vpack.c.b16 %v5439, %v5435
    %v5492 = vpack.c.b16 %v5440, %v5436
    %v5493 = vpack.c.b16 %v5441, %v5437
    %v5494 = vpack.c.b16 %v5442, %v5438
    %v5495 = vpack.c.b16 %v5447, %v5443
    %v5496 = vpack.c.b16 %v5448, %v5444
    %v5497 = vpack.c.b16 %v5449, %v5445
    %v5498 = vpack.c.b16 %v5450, %v5446
    %v5499 = vpack.c.b16 %v5455, %v5451
    %v5500 = vpack.c.b16 %v5456, %v5452
    %v5501 = vpack.c.b16 %v5457, %v5453
    %v5502 = vpack.c.b16 %v5458, %v5454
    %v5503 = vpack.c.b16 %v5463, %v5459
    %v5504 = vpack.c.b16 %v5464, %v5460
    %v5505 = vpack.c.b16 %v5465, %v5461
    %v5506 = vpack.c.b16 %v5466, %v5462
    %v5507 = vpack.c.b16 %v5471, %v5467
    %v5508 = vpack.c.b16 %v5472, %v5468
    %v5509 = vpack.c.b16 %v5473, %v5469
    %v5510 = vpack.c.b16 %v5474, %v5470
    %v5511 = vpack.c.b16 %v5479, %v5475
    %v5512 = vpack.c.b16 %v5480, %v5476
    %v5513 = vpack.c.b16 %v5481, %v5477
    %v5514 = vpack.c.b16 %v5482, %v5478
    %5547 = vmatprep.subr.bf16.mxu0 %v5484
    %5548 = vmatpush1.bf16.msra.mxu0 %v5483
    %5549 = vmatprep.subr.bf16.mxu0 %v5488
    %5550 = vmatpush1.bf16.msra.mxu0 %v5487
    %5551 = vmatprep.subr.bf16.mxu0 %v5492
    %5552 = vmatpush1.bf16.msra.mxu0 %v5491
    %5553 = vmatprep.subr.bf16.mxu0 %v5496
    %5554 = vmatpush1.bf16.msra.mxu0 %v5495
    %5555 = vmatprep.subr.bf16.mxu0 %v5500
    %5556 = vmatpush1.bf16.msra.mxu0 %v5499
    %5557 = vmatprep.subr.bf16.mxu0 %v5504
    %5558 = vmatpush1.bf16.msra.mxu0 %v5503
    %5559 = vmatprep.subr.bf16.mxu0 %v5508
    %5560 = vmatpush1.bf16.msra.mxu0 %v5507
    %5561 = vmatprep.subr.bf16.mxu0 %v5512
    %5562 = vmatpush1.bf16.msra.mxu0 %v5511
    %5563 = vmatprep.subr.bf16.mxu0 0
    %5564 = vmatpush1.bf16.msra.mxu0 0
    %5565 = vmatprep.subr.bf16.mxu0 0
    %5566 = vmatpush1.bf16.msra.mxu0 0
    %5567 = vmatprep.subr.bf16.mxu0 0
    %5568 = vmatpush1.bf16.msra.mxu0 0
    %5569 = vmatprep.subr.bf16.mxu0 0
    %5570 = vmatpush1.bf16.msra.mxu0 0
    %5571 = vmatprep.subr.bf16.mxu0 0
    %5572 = vmatpush1.bf16.msra.mxu0 0
    %5573 = vmatprep.subr.bf16.mxu0 0
    %5574 = vmatpush1.bf16.msra.mxu0 0
    %5575 = vmatprep.subr.bf16.mxu0 0
    %5576 = vmatpush1.bf16.msra.mxu0 0
    %5577 = vmatprep.subr.bf16.mxu0 0
    %5578 = vmatpush1.bf16.msra.mxu0 0
    %5579 = vmatprep.mubr.bf16.mxu0 0
    %5580 = vmatmul.mubr.bf16.gmra.mrb[0].mxu0 %v5354
    %v5581 = vpop.f32.mrb[0].mxu0
    %v5582 = vadd.f32 0.0, %v5581
    %v5583 = vpop.f32.mrb[0].mxu0
    %v5584 = vadd.f32 0.0, %v5583
    %v5585 = vpop.f32.mrb[0].mxu0
    %v5586 = vpop.f32.mrb[0].mxu0
    %5587 = vdwg.mxu0
    %5588 = vmatprep.subr.bf16.mxu0 %v5486
    %5589 = vmatpush1.bf16.msra.mxu0 %v5485
    %5590 = vmatprep.subr.bf16.mxu0 %v5490
    %5591 = vmatpush1.bf16.msra.mxu0 %v5489
    %5592 = vmatprep.subr.bf16.mxu0 %v5494
    %5593 = vmatpush1.bf16.msra.mxu0 %v5493
    %5594 = vmatprep.subr.bf16.mxu0 %v5498
    %5595 = vmatpush1.bf16.msra.mxu0 %v5497
    %5596 = vmatprep.subr.bf16.mxu0 %v5502
    %5597 = vmatpush1.bf16.msra.mxu0 %v5501
    %5598 = vmatprep.subr.bf16.mxu0 %v5506
    %5599 = vmatpush1.bf16.msra.mxu0 %v5505
    %5600 = vmatprep.subr.bf16.mxu0 %v5510
    %5601 = vmatpush1.bf16.msra.mxu0 %v5509
    %5602 = vmatprep.subr.bf16.mxu0 %v5514
    %5603 = vmatpush1.bf16.msra.mxu0 %v5513
    %5604 = vmatprep.subr.bf16.mxu0 0
    %5605 = vmatpush1.bf16.msra.mxu0 0
    %5606 = vmatprep.subr.bf16.mxu0 0
    %5607 = vmatpush1.bf16.msra.mxu0 0
    %5608 = vmatprep.subr.bf16.mxu0 0
    %5609 = vmatpush1.bf16.msra.mxu0 0
    %5610 = vmatprep.subr.bf16.mxu0 0
    %5611 = vmatpush1.bf16.msra.mxu0 0
    %5612 = vmatprep.subr.bf16.mxu0 0
    %5613 = vmatpush1.bf16.msra.mxu0 0
    %5614 = vmatprep.subr.bf16.mxu0 0
    %5615 = vmatpush1.bf16.msra.mxu0 0
    %5616 = vmatprep.subr.bf16.mxu0 0
    %5617 = vmatpush1.bf16.msra.mxu0 0
    %5618 = vmatprep.subr.bf16.mxu0 0
    %5619 = vmatpush1.bf16.msra.mxu0 0
    %5620 = vmatprep.mubr.bf16.mxu0 0
    %5621 = vmatmul.mubr.bf16.gmra.mrb[0].mxu0 %v5354
    %v5622 = vpop.f32.mrb[0].mxu0
    %v5623 = vadd.f32 0.0, %v5622
    %v5624 = vpop.f32.mrb[0].mxu0
    %v5625 = vadd.f32 0.0, %v5624
    %v5626 = vpop.f32.mrb[0].mxu0
    %v5627 = vpop.f32.mrb[0].mxu0
    %5628 = vdwg.mxu0
    %v5629 = vadd.f32 %v5350, %v5582
    %v5630 = vadd.f32 %v5351, %v5584
    %v5631 = vadd.f32 %v5352, %v5623
    %v5632 = vadd.f32 %v5353, %v5625
    %v5633 = vxor.u32 %v5629, 2147483648
    %v5634 = vxor.u32 %v5630, 2147483648
    %v5635 = vxor.u32 %v5631, 2147483648
    %v5636 = vmul.f32 %v5633, 1.442695
    %v5637 = vpow.pop %v5636
    %v5638 = vmul.f32 %v5634, 1.442695
    %v5639 = vpow.pop %v5638
    %v5640 = vmul.f32 %v5635, 1.442695
    %v5641 = vpow.pop %v5640
    %v5642 = vadd.f32 %v5637, 1.0
    %v5643 = vadd.f32 %v5639, 1.0
    %v5644 = vadd.f32 %v5641, 1.0
    %v5645 = vrcp.pop %v5642
    %v5646 = vmul.f32 1.0, %v5645
    %v5647 = vrcp.pop %v5643
    %v5648 = vmul.f32 1.0, %v5647
    %v5649 = vrcp.pop %v5644
    %v5650 = vmul.f32 1.0, %v5649
    %v5651 = vtanh.pop %v5632
    %v5652 = vmul.f32 %v5648, %v4634
    %v5653 = vmul.f32 %v5646, %v5651
    %v5654 = vadd.f32 %v5652, %v5653
    %v5655 = vtanh.pop %v5654
    %v5656 = vmul.f32 %v5650, %v5655
    %v5657 = vmax.f32 %v5656, 0.0
    %v5658 = vpack.c.bf16 %v5657, %v5657
    %v5659 = vld [vmem:[%s7] sm:$0xf]
    %v5660 = vld [vmem:[%s7 + $0x4] sm:$0xf]
    %v5661 = vld [vmem:[%s7 + $0x8] sm:$0xf]
    %v5662 = vld [vmem:[%s7 + $0xc] sm:$0xf]
    %v5663 = vld [vmem:[%s7 + $0x10] sm:$0xf]
    %v5664 = vld [vmem:[%s7 + $0x14] sm:$0xf]
    %v5665 = vld [vmem:[%s7 + $0x18] sm:$0xf]
    %v5666 = vld [vmem:[%s7 + $0x1c] sm:$0xf]
    %v5667 = vld [vmem:[%s7 + $0x20] sm:$0xf]
    %v5668 = vld [vmem:[%s7 + $0x24] sm:$0xf]
    %v5669 = vld [vmem:[%s7 + $0x28] sm:$0xf]
    %v5670 = vld [vmem:[%s7 + $0x2c] sm:$0xf]
    %v5671 = vld [vmem:[%s7 + $0x30] sm:$0xf]
    %v5672 = vld [vmem:[%s7 + $0x34] sm:$0xf]
    %v5673 = vld [vmem:[%s7 + $0x38] sm:$0xf]
    %v5674 = vld [vmem:[%s7 + $0x3c] sm:$0xf]
    %v5675 = vld [vmem:[%s8] sm:$0x1]
    %v5677 = vlaneseq
    %v5678 = vshrl.u32 %v5677, 7
    %v5679 = vsub.s32 0, %v5678
    %v5680 = vrot.slane %v5675, %v5679
    %v5698 = vunpack.c.l.b16 %v5659
    %v5699 = vunpack.c.l.b16 %v5660
    %v5700 = vunpack.c.l.b16 %v5661
    %v5701 = vunpack.c.l.b16 %v5662
    %v5702 = vunpack.c.l.b16 %v5663
    %v5703 = vunpack.c.l.b16 %v5664
    %v5704 = vunpack.c.l.b16 %v5665
    %v5705 = vunpack.c.l.b16 %v5666
    %v5706 = vunpack.c.l.b16 %v5667
    %v5707 = vunpack.c.l.b16 %v5668
    %v5708 = vunpack.c.l.b16 %v5669
    %v5709 = vunpack.c.l.b16 %v5670
    %v5710 = vunpack.c.l.b16 %v5671
    %v5711 = vunpack.c.l.b16 %v5672
    %v5712 = vunpack.c.l.b16 %v5673
    %v5713 = vunpack.c.l.b16 %v5674
    %v5714 = vpack.c.b16 %v5699, %v5698
    %v5715 = vpack.c.b16 %v5701, %v5700
    %v5716 = vpack.c.b16 %v5703, %v5702
    %v5717 = vpack.c.b16 %v5705, %v5704
    %v5718 = vpack.c.b16 %v5707, %v5706
    %v5719 = vpack.c.b16 %v5709, %v5708
    %v5720 = vpack.c.b16 %v5711, %v5710
    %v5721 = vpack.c.b16 %v5713, %v5712
    %5730 = vmatprep.subr.bf16.mxu0 0
    %5731 = vmatpush1.bf16.msra.mxu0 %v5714
    %5732 = vmatprep.subr.bf16.mxu0 0
    %5733 = vmatpush1.bf16.msra.mxu0 %v5715
    %5734 = vmatprep.subr.bf16.mxu0 0
    %5735 = vmatpush1.bf16.msra.mxu0 %v5716
    %5736 = vmatprep.subr.bf16.mxu0 0
    %5737 = vmatpush1.bf16.msra.mxu0 %v5717
    %5738 = vmatprep.subr.bf16.mxu0 0
    %5739 = vmatpush1.bf16.msra.mxu0 %v5718
    %5740 = vmatprep.subr.bf16.mxu0 0
    %5741 = vmatpush1.bf16.msra.mxu0 %v5719
    %5742 = vmatprep.subr.bf16.mxu0 0
    %5743 = vmatpush1.bf16.msra.mxu0 %v5720
    %5744 = vmatprep.subr.bf16.mxu0 0
    %5745 = vmatpush1.bf16.msra.mxu0 %v5721
    %5746 = vmatprep.subr.bf16.mxu0 0
    %5747 = vmatpush1.bf16.msra.mxu0 0
    %5748 = vmatprep.subr.bf16.mxu0 0
    %5749 = vmatpush1.bf16.msra.mxu0 0
    %5750 = vmatprep.subr.bf16.mxu0 0
    %5751 = vmatpush1.bf16.msra.mxu0 0
    %5752 = vmatprep.subr.bf16.mxu0 0
    %5753 = vmatpush1.bf16.msra.mxu0 0
    %5754 = vmatprep.subr.bf16.mxu0 0
    %5755 = vmatpush1.bf16.msra.mxu0 0
    %5756 = vmatprep.subr.bf16.mxu0 0
    %5757 = vmatpush1.bf16.msra.mxu0 0
    %5758 = vmatprep.subr.bf16.mxu0 0
    %5759 = vmatpush1.bf16.msra.mxu0 0
    %5760 = vmatprep.subr.bf16.mxu0 0
    %5761 = vmatpush1.bf16.msra.mxu0 0
    %5762 = vmatprep.mubr.bf16.mxu0 0
    %5763 = vmatmul.mubr.bf16.gmra.mrb[0].mxu0 %v5658
    %v5764 = vpop.f32.mrb[0].mxu0
    %v5765 = vadd.f32 %v5680, %v5764
    %v5766 = vpop.f32.mrb[0].mxu0
    %v5767 = vpop.f32.mrb[0].mxu0
    %v5768 = vpop.f32.mrb[0].mxu0
    %5769 = vdwg.mxu0
    %5770 = vst [vmem:[%s9 + $0x18] sm:$0xff] %v5765
    // Predicated region
    $region54: #{lstm_forward.1} parent=1 // pred_check
      _
    $region55: #{lstm_forward.1} parent=1 // pred_check_branch
      %5772 = sbr.rel (0) target = $region57
    $region56: #{lstm_forward.1} parent=1 // pred_region
      _
    $region57: #{lstm_forward.1} parent=1 // pred_fallthru
      _
    // Predicated region
    $region58: #{lstm_forward.1} parent=1 // pred_check
      _
    $region59: #{lstm_forward.1} parent=1 // pred_check_branch
      %5774 = sbr.rel (0) target = $region61
    $region60: #{lstm_forward.1} parent=1 // pred_region
      _
    $region61: #{lstm_forward.1} parent=1 // pred_fallthru
      _
    %5775 = vsyncpa [#allocation3], 1
    %5776 = vsyncpa [#allocation5], 1
    %5777 = vsyncpa [#allocation8], 1

</llo_original>
